<compile_context>
chip_gen: v7x
topology: tpu7x:2x2x1
jax: 0.10.0
libtpu: 0.0.40
codegen_flags: <defaults>
</compile_context>

<pallas_src>
import functools
import math

import jax
import jax.numpy as jnp
from jax.experimental import pallas as pl
from jax.experimental.pallas import tpu as pltpu

B = 2            # batch
D = 256          # latent feature dim (fixed by the module: Linear(256, 784))
H = 784          # hidden dim of the h2h MLP
H_PAD = 896      # 784 zero-padded to 7*128 (exact; see _pad_params)
BN_EPS = 1e-5    # nn.BatchNorm1d default eps
MAX_TT = 128     # timesteps per grid tile -> matmul M = B*MAX_TT = 256 rows


def _round_up(x, m):
    return ((x + m - 1) // m) * m


def _bn_train(h, gamma, beta):
    # nn.BatchNorm1d in (default) training mode: biased batch statistics.
    mu = jnp.mean(h, axis=0, keepdims=True)
    var = jnp.mean((h - mu) ** 2, axis=0, keepdims=True)
    return (h - mu) * jax.lax.rsqrt(var + BN_EPS) * gamma + beta


def _vmem_limit_bytes():
    # Generation-aware VMEM budget: v7x has 64 MiB/TensorCore, v5e/v6e have 128 MiB.
    try:
        cap = pltpu.get_tpu_info().vmem_capacity_bytes
    except Exception:
        cap = 64 * 1024 * 1024
    return max(32 * 1024 * 1024, min(cap - 16 * 1024 * 1024, 100 * 1024 * 1024))


def drnet_kernel(y0_ref, gc_tp_ref, gc_tpm1_ref, gp_ref, gi_ref, eps_ref,
                 w1_ref, b1_ref, g1_ref, be1_ref,
                 w2_ref, b2_ref, g2_ref, be2_ref,
                 w3_ref, b3_ref,
                 out_ref, loss_ref, *, T, Tt, out_row):
    Bb, Dd = y0_ref.shape
    M = Bb * Tt
    j = pl.program_id(0)

    # Per-timestep diffusion coefficients from an iota (VPU).  Global t = j*Tt + i + 1.
    Tf = jnp.float32(T)
    i_col = jax.lax.broadcasted_iota(jnp.int32, (Tt, 1), 0).astype(jnp.float32)
    t_col = i_col + (j * Tt + 1).astype(jnp.float32)
    a_t = (t_col + 1.0) / (Tf + 1.0)                 # a_t / a_T  (a_T == 1)
    a_tm = t_col / (Tf + 1.0)                        # a_{t-1}
    sigma = jnp.sqrt(a_t * (1.0 - a_t))
    lam = jnp.where(t_col <= Tf, 1.0 / a_tm - 1.0 / a_t, 0.0)   # padded steps -> 0

    def per_row(c):                                  # (Tt,1) -> (B*Tt,1), batch-major
        return jnp.concatenate([c] * Bb, axis=0)

    a_t_c, a_tm_c, sig_c, lam_c = (per_row(c) for c in (a_t, a_tm, sigma, lam))

    # Flatten the (B, Tt, D) tile blocks into one batch-major (B*Tt, D) matmul slab.
    gc_tp = gc_tp_ref[...].reshape(M, Dd)            # g_cumsum[:, :, t_prime]
    gc_tm1 = gc_tpm1_ref[...].reshape(M, Dd)         # g_cumsum[:, :, t_prime - 1]
    x_point = gp_ref[...].reshape(M, Dd)             # g_pixel[:, :, t_prime - 1]
    learned_x = gi_ref[...].reshape(M, Dd)           # g_inf[:, :, t_prime - 1]
    noise = 0.1 * eps_ref[...].reshape(M, Dd)        # 0.1 * eps  (pre-sampled)

    y0 = jnp.concatenate(
        [jnp.broadcast_to(y0_ref[b:b + 1, :], (Tt, Dd)) for b in range(Bb)], axis=0)

    y_t = y0 - a_t_c * gc_tm1 + sig_c * noise
    expected = y0 - a_tm_c * gc_tp
    inp = y_t + learned_x
    target = expected - (y_t + x_point)

    def bn_relu(h, gamma, beta):
        # BatchNorm1d (training, biased stats) per *timestep* over the batch only:
        # slab b holds all Tt timesteps of batch element b (rows are batch-major).
        slabs = [h[b * Tt:(b + 1) * Tt, :] for b in range(Bb)]
        mu = slabs[0]
        for s in slabs[1:]:
            mu = mu + s
        mu = mu * (1.0 / Bb)
        var = (slabs[0] - mu) ** 2
        for s in slabs[1:]:
            var = var + (s - mu) ** 2
        var = var * (1.0 / Bb)
        scale = jax.lax.rsqrt(var + BN_EPS) * gamma
        shift = beta - mu * scale
        return jnp.concatenate(
            [jnp.maximum(s * scale + shift, 0.0) for s in slabs], axis=0)

    # h2h MLP hot path: 3 MXU matmuls with M = B*Tt rows, f32 accumulation.
    h1 = jnp.dot(inp, w1_ref[...], preferred_element_type=jnp.float32) + b1_ref[...]
    h1 = bn_relu(h1, g1_ref[...], be1_ref[...])
    h2 = jnp.dot(h1, w2_ref[...], preferred_element_type=jnp.float32) + b2_ref[...]
    h2 = bn_relu(h2, g2_ref[...], be2_ref[...])
    out = jnp.dot(h2, w3_ref[...], preferred_element_type=jnp.float32) + b3_ref[...]

    # lambda_t-weighted MSE (mean over B*D per step) summed over this tile's steps.
    diff = out - target
    wsum = jnp.sum(lam_c * (diff * diff)) * (1.0 / (Bb * Dd))
    loss_ref[...] = jnp.broadcast_to(wsum, (1, 1, 1))

    # Per-tile `out` write (row `out_row` of each batch slab).  The wrapper keeps the
    # last tile's block, which is the MLP output at t == T, just like the torch loop.
    rows = jnp.concatenate(
        [out[b * Tt + out_row:b * Tt + out_row + 1, :] for b in range(Bb)], axis=0)
    out_ref[...] = rows.reshape(1, Bb, Dd)


def _pad_params(params):
    """Zero-pad hidden dim 784 -> 896.  Exact: padded units have weight/bias/gamma/
    beta = 0, so BN keeps them at 0 and they contribute nothing to later layers."""
    def p(a, rows, cols):
        a = a.astype(jnp.float32)
        return jnp.pad(a, ((0, rows - a.shape[0]), (0, cols - a.shape[1])))
    return dict(
        w1=p(params["w1"], D, H_PAD), b1=p(params["b1"], 1, H_PAD),
        g1=p(params["g1"], 1, H_PAD), be1=p(params["be1"], 1, H_PAD),
        w2=p(params["w2"], H_PAD, H_PAD), b2=p(params["b2"], 1, H_PAD),
        g2=p(params["g2"], 1, H_PAD), be2=p(params["be2"], 1, H_PAD),
        w3=p(params["w3"], H_PAD, D), b3=p(params["b3"], 1, D),
    )


def drnet_forward(T, g_cumsum, g_pixel, g_inf, eps_all, L0, params):
    """g_* are (B, D, T) like the PyTorch NCL inputs; eps_all is (T, B, D) pre-sampled
    standard normal noise (one draw per timestep, standing in for torch.randn_like)."""
    Bb, Dd, _ = g_cumsum.shape

    # ---- layout plumbing only (flip/roll/transpose/pad); no model compute hoisted ----
    gt = jnp.transpose(g_cumsum, (0, 2, 1)).astype(jnp.float32)   # (B, T, D) time-major
    pt = jnp.transpose(g_pixel, (0, 2, 1)).astype(jnp.float32)
    it = jnp.transpose(g_inf, (0, 2, 1)).astype(jnp.float32)
    et = jnp.transpose(eps_all, (1, 0, 2)).astype(jnp.float32)    # (B, T, D)

    y0 = gt[:, T - 1, :]                                          # latent_y_0
    # Index i = t-1 (t = 1..T):  flip -> g_cumsum[:, :, T - t]          (t_prime)
    #                            roll -> g_cumsum[:, :, T - t - 1]      (t_prime - 1;
    #                                    wraps to index T-1 at t == T, matching torch's
    #                                    negative-index semantics).
    gc_tp = jnp.flip(gt, axis=1)
    gc_tpm1 = jnp.roll(gc_tp, shift=-1, axis=1)
    gp_o = jnp.roll(jnp.flip(pt, axis=1), shift=-1, axis=1)
    gi_o = jnp.roll(jnp.flip(it, axis=1), shift=-1, axis=1)
    eps_o = et

    # ---- time tiling: Tt timesteps per grid step -> matmul M = B*Tt ----
    Tt = min(MAX_TT, _round_up(T, 8))
    num_tiles = pl.cdiv(T, Tt)
    T_pad = num_tiles * Tt
    if T_pad != T:
        padw = ((0, 0), (0, T_pad - T), (0, 0))
        gc_tp, gc_tpm1, gp_o, gi_o, eps_o = (
            jnp.pad(a, padw) for a in (gc_tp, gc_tpm1, gp_o, gi_o, eps_o))
    out_row = (T - 1) - (num_tiles - 1) * Tt    # local index of t == T in the last tile

    pp = _pad_params(params)

    const = lambda j: (0, 0)
    stream = lambda j: (0, j, 0)
    in_specs = [
        pl.BlockSpec((Bb, Dd), const),                  # latent_y_0
        pl.BlockSpec((Bb, Tt, Dd), stream),             # g_cumsum[:, :, t_prime]
        pl.BlockSpec((Bb, Tt, Dd), stream),             # g_cumsum[:, :, t_prime - 1]
        pl.BlockSpec((Bb, Tt, Dd), stream),             # g_pixel[:, :, t_prime - 1]
        pl.BlockSpec((Bb, Tt, Dd), stream),             # g_inf[:, :, t_prime - 1]
        pl.BlockSpec((Bb, Tt, Dd), stream),             # epsilon per timestep
        # Constant-index weight / BN-param blocks: DMA'd once, reused by every tile.
        pl.BlockSpec((Dd, H_PAD), const), pl.BlockSpec((1, H_PAD), const),
        pl.BlockSpec((1, H_PAD), const), pl.BlockSpec((1, H_PAD), const),
        pl.BlockSpec((H_PAD, H_PAD), const), pl.BlockSpec((1, H_PAD), const),
        pl.BlockSpec((1, H_PAD), const), pl.BlockSpec((1, H_PAD), const),
        pl.BlockSpec((H_PAD, Dd), const), pl.BlockSpec((1, Dd), const),
    ]
    out_specs = (
        pl.BlockSpec((1, Bb, Dd), lambda j: (j, 0, 0)),   # per-tile `out`
        pl.BlockSpec((1, 1, 1), lambda j: (j, 0, 0)),     # per-tile weighted-loss partial
    )
    out_shape = (
        jax.ShapeDtypeStruct((num_tiles, Bb, Dd), jnp.float32),
        jax.ShapeDtypeStruct((num_tiles, 1, 1), jnp.float32),
    )

    kernel = functools.partial(drnet_kernel, T=T, Tt=Tt, out_row=out_row)
    out_tiles, loss_tiles = pl.pallas_call(
        kernel,
        out_shape=out_shape,
        grid=(num_tiles,),
        in_specs=in_specs,
        out_specs=out_specs,
        compiler_params=pltpu.CompilerParams(
            # Per-tile outputs + lambda-masked partial losses make every grid step
            # independent, so the tile axis can be split across v7x's 2 TensorCores.
            dimension_semantics=("parallel",),
            vmem_limit_bytes=_vmem_limit_bytes()),
    )(y0, gc_tp, gc_tpm1, gp_o, gi_o, eps_o,
      pp["w1"], pp["b1"], pp["g1"], pp["be1"],
      pp["w2"], pp["b2"], pp["g2"], pp["be2"],
      pp["w3"], pp["b3"])

    out = out_tiles[num_tiles - 1]
    L = jnp.asarray(L0, jnp.float32) + jnp.sum(loss_tiles)
    return out, L


def drnet_ref(T, g_cumsum, g_pixel, g_inf, eps_all, L0, params):
    """Pure-JAX reference mirroring the PyTorch forward (loss_fn = nn.MSELoss, mean)."""
    def mlp(x):
        h1 = x @ params["w1"] + params["b1"]
        h1 = jnp.maximum(_bn_train(h1, params["g1"], params["be1"]), 0.0)
        h2 = h1 @ params["w2"] + params["b2"]
        h2 = jnp.maximum(_bn_train(h2, params["g2"], params["be2"]), 0.0)
        return h2 @ params["w3"] + params["b3"]

    y0 = g_cumsum[:, :, T - 1]
    L = jnp.asarray(L0, jnp.float32)
    out = None
    for t in range(1, T + 1):
        a_t = (t + 1) / (T + 1)
        a_tm = t / (T + 1)
        t_prime = T - t
        sigma = math.sqrt(a_t * (1.0 - a_t))
        eps = eps_all[t - 1]
        y_t = y0 - a_t * g_cumsum[:, :, t_prime - 1] + sigma * (0.1 * eps)
        expected = y0 - a_tm * g_cumsum[:, :, t_prime]
        x_point = g_pixel[:, :, t_prime - 1]
        learned = g_inf[:, :, t_prime - 1]
        out = mlp(y_t + learned)
        loss = jnp.mean((out - (expected - (y_t + x_point))) ** 2)
        L = L + (1.0 / a_tm - 1.0 / a_t) * loss
    return out, L


if __name__ == "__main__":
    key = jax.random.PRNGKey(0)
    T = 8
    keys = jax.random.split(key, 16)
    g_cumsum = jax.random.normal(keys[0], (B, D, T), jnp.float32)
    g_pixel = jax.random.normal(keys[1], (B, D, T), jnp.float32)
    g_inf = jax.random.normal(keys[2], (B, D, T), jnp.float32)
    # TODO(synk): torch.randn_like noise is pre-sampled per timestep here instead of
    # drawn in-kernel (pltpu.prng_* could generate it on-chip to drop this stream).
    eps_all = jax.random.normal(keys[3], (T, B, D), jnp.float32)

    # Deterministic synthetic parameters (Linear weights stored already transposed
    # so the kernel computes x @ W).
    params = {
        "w1": 0.05 * jax.random.normal(keys[4], (D, H), jnp.float32),
        "b1": 0.01 * jax.random.normal(keys[5], (1, H), jnp.float32),
        "g1": 1.0 + 0.1 * jax.random.normal(keys[6], (1, H), jnp.float32),
        "be1": 0.1 * jax.random.normal(keys[7], (1, H), jnp.float32),
        "w2": 0.03 * jax.random.normal(keys[8], (H, H), jnp.float32),
        "b2": 0.01 * jax.random.normal(keys[9], (1, H), jnp.float32),
        "g2": 1.0 + 0.1 * jax.random.normal(keys[10], (1, H), jnp.float32),
        "be2": 0.1 * jax.random.normal(keys[11], (1, H), jnp.float32),
        "w3": 0.05 * jax.random.normal(keys[12], (H, D), jnp.float32),
        "b3": 0.01 * jax.random.normal(keys[13], (1, D), jnp.float32),
    }

    L0 = 0.0
    out, L = drnet_forward(T, g_cumsum, g_pixel, g_inf, eps_all, L0, params)
    out, L = jax.block_until_ready((out, L))

    out_ref, L_ref = drnet_ref(T, g_cumsum, g_pixel, g_inf, eps_all, L0, params)
    assert jnp.allclose(out, out_ref, rtol=5e-2, atol=5e-2), "out mismatch"
    assert jnp.allclose(L, L_ref, rtol=5e-2, atol=5e-2), "L mismatch"
    print("KERNEL_OK")
</pallas_src>

<mosaic_0001>
module attributes {stable_mosaic.version = 11 : i64} {
  func.func @drnet_kernel(%arg0: i32, %arg1: memref<2x256xf32, #tpu.memory_space<vmem>>, %arg2: memref<2x8x256xf32, #tpu.memory_space<vmem>>, %arg3: memref<2x8x256xf32, #tpu.memory_space<vmem>>, %arg4: memref<2x8x256xf32, #tpu.memory_space<vmem>>, %arg5: memref<2x8x256xf32, #tpu.memory_space<vmem>>, %arg6: memref<2x8x256xf32, #tpu.memory_space<vmem>>, %arg7: memref<256x896xf32, #tpu.memory_space<vmem>>, %arg8: memref<1x896xf32, #tpu.memory_space<vmem>>, %arg9: memref<1x896xf32, #tpu.memory_space<vmem>>, %arg10: memref<1x896xf32, #tpu.memory_space<vmem>>, %arg11: memref<896x896xf32, #tpu.memory_space<vmem>>, %arg12: memref<1x896xf32, #tpu.memory_space<vmem>>, %arg13: memref<1x896xf32, #tpu.memory_space<vmem>>, %arg14: memref<1x896xf32, #tpu.memory_space<vmem>>, %arg15: memref<896x256xf32, #tpu.memory_space<vmem>>, %arg16: memref<1x256xf32, #tpu.memory_space<vmem>>, %arg17: memref<1x2x256xf32, #tpu.memory_space<vmem>>, %arg18: memref<1x1x1xf32, #tpu.memory_space<vmem>>) attributes {dimension_semantics = [#tpu.dimension_semantics<parallel>], iteration_bounds = array<i64: 1>, scalar_prefetch = 0 : i64, scratch_operands = 0 : i64, tpu.core_type = #tpu.core_type<tc>, window_params = [{pipeline_mode = #tpu.pipeline_mode<synchronous>, transform_indices = @transform_0, window_bounds = array<i64: 2, 256>}, {transform_indices = @transform_1, window_bounds = array<i64: 2, 8, 256>}, {transform_indices = @transform_2, window_bounds = array<i64: 2, 8, 256>}, {transform_indices = @transform_3, window_bounds = array<i64: 2, 8, 256>}, {transform_indices = @transform_4, window_bounds = array<i64: 2, 8, 256>}, {transform_indices = @transform_5, window_bounds = array<i64: 2, 8, 256>}, {pipeline_mode = #tpu.pipeline_mode<synchronous>, transform_indices = @transform_6, window_bounds = array<i64: 256, 896>}, {pipeline_mode = #tpu.pipeline_mode<synchronous>, transform_indices = @transform_7, window_bounds = array<i64: 1, 896>}, {pipeline_mode = #tpu.pipeline_mode<synchronous>, transform_indices = @transform_8, window_bounds = array<i64: 1, 896>}, {pipeline_mode = #tpu.pipeline_mode<synchronous>, transform_indices = @transform_9, window_bounds = array<i64: 1, 896>}, {pipeline_mode = #tpu.pipeline_mode<synchronous>, transform_indices = @transform_10, window_bounds = array<i64: 896, 896>}, {pipeline_mode = #tpu.pipeline_mode<synchronous>, transform_indices = @transform_11, window_bounds = array<i64: 1, 896>}, {pipeline_mode = #tpu.pipeline_mode<synchronous>, transform_indices = @transform_12, window_bounds = array<i64: 1, 896>}, {pipeline_mode = #tpu.pipeline_mode<synchronous>, transform_indices = @transform_13, window_bounds = array<i64: 1, 896>}, {pipeline_mode = #tpu.pipeline_mode<synchronous>, transform_indices = @transform_14, window_bounds = array<i64: 896, 256>}, {pipeline_mode = #tpu.pipeline_mode<synchronous>, transform_indices = @transform_15, window_bounds = array<i64: 1, 256>}, {transform_indices = @transform_16, window_bounds = array<i64: 1, 2, 256>}, {transform_indices = @transform_17, window_bounds = array<i64: 1, 1, 1>}]} {
    %0 = tpu.iota {dimensions = array<i32: 0>} : vector<8x1xi32>
    %1 = arith.sitofp %0 : vector<8x1xi32> to vector<8x1xf32>
    %c8_i32 = arith.constant 8 : i32
    %2 = arith.muli %arg0, %c8_i32 : i32
    %c1_i32 = arith.constant 1 : i32
    %3 = arith.addi %2, %c1_i32 : i32
    %4 = arith.sitofp %3 : i32 to f32
    %5 = vector.broadcast %4 : f32 to vector<8x1xf32>
    %6 = arith.addf %1, %5 : vector<8x1xf32>
    %cst = arith.constant 1.000000e+00 : f32
    %7 = vector.broadcast %cst : f32 to vector<8x1xf32>
    %8 = arith.addf %6, %7 : vector<8x1xf32>
    %cst_0 = arith.constant 8.000000e+00 : f32
    %cst_1 = arith.constant 1.000000e+00 : f32
    %9 = arith.addf %cst_0, %cst_1 : f32
    %10 = vector.broadcast %9 : f32 to vector<8x1xf32>
    %11 = arith.divf %8, %10 : vector<8x1xf32>
    %cst_2 = arith.constant 8.000000e+00 : f32
    %cst_3 = arith.constant 1.000000e+00 : f32
    %12 = arith.addf %cst_2, %cst_3 : f32
    %13 = vector.broadcast %12 : f32 to vector<8x1xf32>
    %14 = arith.divf %6, %13 : vector<8x1xf32>
    %cst_4 = arith.constant 1.000000e+00 : f32
    %15 = vector.broadcast %cst_4 : f32 to vector<8x1xf32>
    %16 = arith.subf %15, %11 : vector<8x1xf32>
    %17 = arith.mulf %11, %16 : vector<8x1xf32>
    %18 = math.sqrt %17 : vector<8x1xf32>
    %cst_5 = arith.constant 8.000000e+00 : f32
    %19 = vector.broadcast %cst_5 : f32 to vector<8x1xf32>
    %20 = arith.cmpf ole, %6, %19 : vector<8x1xf32>
    %cst_6 = arith.constant 1.000000e+00 : f32
    %21 = vector.broadcast %cst_6 : f32 to vector<8x1xf32>
    %22 = arith.divf %21, %14 : vector<8x1xf32>
    %cst_7 = arith.constant 1.000000e+00 : f32
    %23 = vector.broadcast %cst_7 : f32 to vector<8x1xf32>
    %24 = arith.divf %23, %11 : vector<8x1xf32>
    %25 = arith.subf %22, %24 : vector<8x1xf32>
    %cst_8 = arith.constant 0.000000e+00 : f32
    %26 = vector.broadcast %cst_8 : f32 to vector<8x1xf32>
    %27 = arith.select %20, %25, %26 : vector<8x1xi1>, vector<8x1xf32>
    %28 = tpu.concatenate %11, %11 in 0 : vector<8x1xf32>, vector<8x1xf32> -> vector<16x1xf32>
    %29 = tpu.concatenate %14, %14 in 0 : vector<8x1xf32>, vector<8x1xf32> -> vector<16x1xf32>
    %30 = tpu.concatenate %18, %18 in 0 : vector<8x1xf32>, vector<8x1xf32> -> vector<16x1xf32>
    %31 = tpu.concatenate %27, %27 in 0 : vector<8x1xf32>, vector<8x1xf32> -> vector<16x1xf32>
    %c0 = arith.constant 0 : index
    %c0_9 = arith.constant 0 : index
    %c0_10 = arith.constant 0 : index
    %32 = vector.load %arg2[%c0, %c0_9, %c0_10] : memref<2x8x256xf32, #tpu.memory_space<vmem>>, vector<2x8x256xf32>
    %33 = vector.shape_cast %32 : vector<2x8x256xf32> to vector<16x256xf32>
    %c0_11 = arith.constant 0 : index
    %c0_12 = arith.constant 0 : index
    %c0_13 = arith.constant 0 : index
    %34 = vector.load %arg3[%c0_11, %c0_12, %c0_13] : memref<2x8x256xf32, #tpu.memory_space<vmem>>, vector<2x8x256xf32>
    %35 = vector.shape_cast %34 : vector<2x8x256xf32> to vector<16x256xf32>
    %c0_14 = arith.constant 0 : index
    %c0_15 = arith.constant 0 : index
    %c0_16 = arith.constant 0 : index
    %36 = vector.load %arg4[%c0_14, %c0_15, %c0_16] : memref<2x8x256xf32, #tpu.memory_space<vmem>>, vector<2x8x256xf32>
    %37 = vector.shape_cast %36 : vector<2x8x256xf32> to vector<16x256xf32>
    %c0_17 = arith.constant 0 : index
    %c0_18 = arith.constant 0 : index
    %c0_19 = arith.constant 0 : index
    %38 = vector.load %arg5[%c0_17, %c0_18, %c0_19] : memref<2x8x256xf32, #tpu.memory_space<vmem>>, vector<2x8x256xf32>
    %39 = vector.shape_cast %38 : vector<2x8x256xf32> to vector<16x256xf32>
    %c0_20 = arith.constant 0 : index
    %c0_21 = arith.constant 0 : index
    %c0_22 = arith.constant 0 : index
    %40 = vector.load %arg6[%c0_20, %c0_21, %c0_22] : memref<2x8x256xf32, #tpu.memory_space<vmem>>, vector<2x8x256xf32>
    %41 = vector.shape_cast %40 : vector<2x8x256xf32> to vector<16x256xf32>
    %cst_23 = arith.constant 1.000000e-01 : f32
    %42 = vector.broadcast %cst_23 : f32 to vector<16x256xf32>
    %43 = arith.mulf %42, %41 : vector<16x256xf32>
    %c0_24 = arith.constant 0 : index
    %c0_25 = arith.constant 0 : index
    %44 = vector.load %arg1[%c0_24, %c0_25] : memref<2x256xf32, #tpu.memory_space<vmem>>, vector<1x256xf32>
    %45 = vector.shape_cast %44 : vector<1x256xf32> to vector<1x256xf32>
    %46 = vector.broadcast %45 : vector<1x256xf32> to vector<8x256xf32>
    %c1 = arith.constant 1 : index
    %c0_26 = arith.constant 0 : index
    %47 = vector.load %arg1[%c1, %c0_26] : memref<2x256xf32, #tpu.memory_space<vmem>>, vector<1x256xf32>
    %48 = vector.shape_cast %47 : vector<1x256xf32> to vector<1x256xf32>
    %49 = vector.broadcast %48 : vector<1x256xf32> to vector<8x256xf32>
    %50 = tpu.concatenate %46, %49 in 0 : vector<8x256xf32>, vector<8x256xf32> -> vector<16x256xf32>
    %51 = vector.broadcast %28 : vector<16x1xf32> to vector<16x256xf32>
    %52 = arith.mulf %51, %35 : vector<16x256xf32>
    %53 = arith.subf %50, %52 : vector<16x256xf32>
    %54 = vector.broadcast %30 : vector<16x1xf32> to vector<16x256xf32>
    %55 = arith.mulf %54, %43 : vector<16x256xf32>
    %56 = arith.addf %53, %55 : vector<16x256xf32>
    %57 = vector.broadcast %29 : vector<16x1xf32> to vector<16x256xf32>
    %58 = arith.mulf %57, %33 : vector<16x256xf32>
    %59 = arith.subf %50, %58 : vector<16x256xf32>
    %60 = arith.addf %56, %39 : vector<16x256xf32>
    %61 = arith.addf %56, %37 : vector<16x256xf32>
    %62 = arith.subf %59, %61 : vector<16x256xf32>
    %c0_27 = arith.constant 0 : index
    %c0_28 = arith.constant 0 : index
    %63 = vector.load %arg7[%c0_27, %c0_28] : memref<256x896xf32, #tpu.memory_space<vmem>>, vector<256x896xf32>
    %cst_29 = arith.constant dense<0.000000e+00> : vector<16x896xf32>
    %64 = tpu.matmul %60, %63, %cst_29 {dimension_numbers = #tpu.dot_dimension_numbers<[1], [0], [0], [1], [0, 0, 1, 1], [], []>} : vector<16x256xf32>, vector<256x896xf32>, vector<16x896xf32> -> vector<16x896xf32>
    %c0_30 = arith.constant 0 : index
    %c0_31 = arith.constant 0 : index
    %65 = vector.load %arg8[%c0_30, %c0_31] : memref<1x896xf32, #tpu.memory_space<vmem>>, vector<1x896xf32>
    %66 = vector.broadcast %65 : vector<1x896xf32> to vector<16x896xf32>
    %67 = arith.addf %64, %66 : vector<16x896xf32>
    %c0_32 = arith.constant 0 : index
    %c0_33 = arith.constant 0 : index
    %68 = vector.load %arg9[%c0_32, %c0_33] : memref<1x896xf32, #tpu.memory_space<vmem>>, vector<1x896xf32>
    %c0_34 = arith.constant 0 : index
    %c0_35 = arith.constant 0 : index
    %69 = vector.load %arg10[%c0_34, %c0_35] : memref<1x896xf32, #tpu.memory_space<vmem>>, vector<1x896xf32>
    %70 = vector.extract_strided_slice %67 {offsets = [0, 0], sizes = [8, 896], strides = [1, 1]} : vector<16x896xf32> to vector<8x896xf32>
    %71 = vector.extract_strided_slice %67 {offsets = [8, 0], sizes = [8, 896], strides = [1, 1]} : vector<16x896xf32> to vector<8x896xf32>
    %72 = arith.addf %70, %71 : vector<8x896xf32>
    %cst_36 = arith.constant 5.000000e-01 : f32
    %73 = vector.broadcast %cst_36 : f32 to vector<8x896xf32>
    %74 = arith.mulf %72, %73 : vector<8x896xf32>
    %75 = arith.subf %70, %74 : vector<8x896xf32>
    %76 = arith.mulf %75, %75 : vector<8x896xf32>
    %77 = arith.subf %71, %74 : vector<8x896xf32>
    %78 = arith.mulf %77, %77 : vector<8x896xf32>
    %79 = arith.addf %76, %78 : vector<8x896xf32>
    %cst_37 = arith.constant 5.000000e-01 : f32
    %80 = vector.broadcast %cst_37 : f32 to vector<8x896xf32>
    %81 = arith.mulf %79, %80 : vector<8x896xf32>
    %cst_38 = arith.constant 9.99999974E-6 : f32
    %82 = vector.broadcast %cst_38 : f32 to vector<8x896xf32>
    %83 = arith.addf %81, %82 : vector<8x896xf32>
    %84 = math.rsqrt %83 : vector<8x896xf32>
    %85 = vector.broadcast %68 : vector<1x896xf32> to vector<8x896xf32>
    %86 = arith.mulf %84, %85 : vector<8x896xf32>
    %87 = arith.mulf %74, %86 : vector<8x896xf32>
    %88 = vector.broadcast %69 : vector<1x896xf32> to vector<8x896xf32>
    %89 = arith.subf %88, %87 : vector<8x896xf32>
    %90 = arith.mulf %70, %86 : vector<8x896xf32>
    %91 = arith.addf %90, %89 : vector<8x896xf32>
    %cst_39 = arith.constant 0.000000e+00 : f32
    %92 = vector.broadcast %cst_39 : f32 to vector<8x896xf32>
    %93 = arith.maximumf %91, %92 : vector<8x896xf32>
    %94 = arith.mulf %71, %86 : vector<8x896xf32>
    %95 = arith.addf %94, %89 : vector<8x896xf32>
    %cst_40 = arith.constant 0.000000e+00 : f32
    %96 = vector.broadcast %cst_40 : f32 to vector<8x896xf32>
    %97 = arith.maximumf %95, %96 : vector<8x896xf32>
    %98 = tpu.concatenate %93, %97 in 0 : vector<8x896xf32>, vector<8x896xf32> -> vector<16x896xf32>
    %c0_41 = arith.constant 0 : index
    %c0_42 = arith.constant 0 : index
    %99 = vector.load %arg11[%c0_41, %c0_42] : memref<896x896xf32, #tpu.memory_space<vmem>>, vector<896x896xf32>
    %cst_43 = arith.constant dense<0.000000e+00> : vector<16x896xf32>
    %100 = tpu.matmul %98, %99, %cst_43 {dimension_numbers = #tpu.dot_dimension_numbers<[1], [0], [0], [1], [0, 0, 1, 1], [], []>} : vector<16x896xf32>, vector<896x896xf32>, vector<16x896xf32> -> vector<16x896xf32>
    %c0_44 = arith.constant 0 : index
    %c0_45 = arith.constant 0 : index
    %101 = vector.load %arg12[%c0_44, %c0_45] : memref<1x896xf32, #tpu.memory_space<vmem>>, vector<1x896xf32>
    %102 = vector.broadcast %101 : vector<1x896xf32> to vector<16x896xf32>
    %103 = arith.addf %100, %102 : vector<16x896xf32>
    %c0_46 = arith.constant 0 : index
    %c0_47 = arith.constant 0 : index
    %104 = vector.load %arg13[%c0_46, %c0_47] : memref<1x896xf32, #tpu.memory_space<vmem>>, vector<1x896xf32>
    %c0_48 = arith.constant 0 : index
    %c0_49 = arith.constant 0 : index
    %105 = vector.load %arg14[%c0_48, %c0_49] : memref<1x896xf32, #tpu.memory_space<vmem>>, vector<1x896xf32>
    %106 = vector.extract_strided_slice %103 {offsets = [0, 0], sizes = [8, 896], strides = [1, 1]} : vector<16x896xf32> to vector<8x896xf32>
    %107 = vector.extract_strided_slice %103 {offsets = [8, 0], sizes = [8, 896], strides = [1, 1]} : vector<16x896xf32> to vector<8x896xf32>
    %108 = arith.addf %106, %107 : vector<8x896xf32>
    %cst_50 = arith.constant 5.000000e-01 : f32
    %109 = vector.broadcast %cst_50 : f32 to vector<8x896xf32>
    %110 = arith.mulf %108, %109 : vector<8x896xf32>
    %111 = arith.subf %106, %110 : vector<8x896xf32>
    %112 = arith.mulf %111, %111 : vector<8x896xf32>
    %113 = arith.subf %107, %110 : vector<8x896xf32>
    %114 = arith.mulf %113, %113 : vector<8x896xf32>
    %115 = arith.addf %112, %114 : vector<8x896xf32>
    %cst_51 = arith.constant 5.000000e-01 : f32
    %116 = vector.broadcast %cst_51 : f32 to vector<8x896xf32>
    %117 = arith.mulf %115, %116 : vector<8x896xf32>
    %cst_52 = arith.constant 9.99999974E-6 : f32
    %118 = vector.broadcast %cst_52 : f32 to vector<8x896xf32>
    %119 = arith.addf %117, %118 : vector<8x896xf32>
    %120 = math.rsqrt %119 : vector<8x896xf32>
    %121 = vector.broadcast %104 : vector<1x896xf32> to vector<8x896xf32>
    %122 = arith.mulf %120, %121 : vector<8x896xf32>
    %123 = arith.mulf %110, %122 : vector<8x896xf32>
    %124 = vector.broadcast %105 : vector<1x896xf32> to vector<8x896xf32>
    %125 = arith.subf %124, %123 : vector<8x896xf32>
    %126 = arith.mulf %106, %122 : vector<8x896xf32>
    %127 = arith.addf %126, %125 : vector<8x896xf32>
    %cst_53 = arith.constant 0.000000e+00 : f32
    %128 = vector.broadcast %cst_53 : f32 to vector<8x896xf32>
    %129 = arith.maximumf %127, %128 : vector<8x896xf32>
    %130 = arith.mulf %107, %122 : vector<8x896xf32>
    %131 = arith.addf %130, %125 : vector<8x896xf32>
    %cst_54 = arith.constant 0.000000e+00 : f32
    %132 = vector.broadcast %cst_54 : f32 to vector<8x896xf32>
    %133 = arith.maximumf %131, %132 : vector<8x896xf32>
    %134 = tpu.concatenate %129, %133 in 0 : vector<8x896xf32>, vector<8x896xf32> -> vector<16x896xf32>
    %c0_55 = arith.constant 0 : index
    %c0_56 = arith.constant 0 : index
    %135 = vector.load %arg15[%c0_55, %c0_56] : memref<896x256xf32, #tpu.memory_space<vmem>>, vector<896x256xf32>
    %cst_57 = arith.constant dense<0.000000e+00> : vector<16x256xf32>
    %136 = tpu.matmul %134, %135, %cst_57 {dimension_numbers = #tpu.dot_dimension_numbers<[1], [0], [0], [1], [0, 0, 1, 1], [], []>} : vector<16x896xf32>, vector<896x256xf32>, vector<16x256xf32> -> vector<16x256xf32>
    %c0_58 = arith.constant 0 : index
    %c0_59 = arith.constant 0 : index
    %137 = vector.load %arg16[%c0_58, %c0_59] : memref<1x256xf32, #tpu.memory_space<vmem>>, vector<1x256xf32>
    %138 = vector.broadcast %137 : vector<1x256xf32> to vector<16x256xf32>
    %139 = arith.addf %136, %138 : vector<16x256xf32>
    %140 = arith.subf %139, %62 : vector<16x256xf32>
    %141 = arith.mulf %140, %140 : vector<16x256xf32>
    %142 = vector.broadcast %31 : vector<16x1xf32> to vector<16x256xf32>
    %143 = arith.mulf %142, %141 : vector<16x256xf32>
    %144 = vector.shape_cast %143 : vector<16x256xf32> to vector<1x16x256xf32>
    %cst_60 = arith.constant dense<0.000000e+00> : vector<1xf32>
    %145 = vector.multi_reduction <add>, %144, %cst_60 [1, 2] : vector<1x16x256xf32> to vector<1xf32>
    %146 = vector.shape_cast %145 : vector<1xf32> to vector<1x1x1xf32>
    %147 = vector.extract %146[0, 0, 0] : f32 from vector<1x1x1xf32>
    %cst_61 = arith.constant 0.001953125 : f32
    %148 = arith.mulf %147, %cst_61 : f32
    %149 = vector.broadcast %148 : f32 to vector<1x1x1xf32>
    %c0_62 = arith.constant 0 : index
    %c0_63 = arith.constant 0 : index
    %c0_64 = arith.constant 0 : index
    %150 = vector.load %arg18[%c0_62, %c0_63, %c0_64] : memref<1x1x1xf32, #tpu.memory_space<vmem>>, vector<1x1x1xf32>
    tpu.vector_store %arg18[%c0_62, %c0_63, %c0_64], %149 {strides = array<i32>} : memref<1x1x1xf32, #tpu.memory_space<vmem>>, vector<1x1x1xf32>,
    %151 = vector.extract_strided_slice %139 {offsets = [7, 0], sizes = [1, 256], strides = [1, 1]} : vector<16x256xf32> to vector<1x256xf32>
    %152 = vector.extract_strided_slice %139 {offsets = [15, 0], sizes = [1, 256], strides = [1, 1]} : vector<16x256xf32> to vector<1x256xf32>
    %153 = tpu.concatenate %151, %152 in 0 : vector<1x256xf32>, vector<1x256xf32> -> vector<2x256xf32>
    %154 = vector.shape_cast %153 : vector<2x256xf32> to vector<1x2x256xf32>
    %c0_65 = arith.constant 0 : index
    %c0_66 = arith.constant 0 : index
    %c0_67 = arith.constant 0 : index
    %155 = vector.load %arg17[%c0_65, %c0_66, %c0_67] : memref<1x2x256xf32, #tpu.memory_space<vmem>>, vector<1x2x256xf32>
    tpu.vector_store %arg17[%c0_65, %c0_66, %c0_67], %154 {strides = array<i32>} : memref<1x2x256xf32, #tpu.memory_space<vmem>>, vector<1x2x256xf32>,
    return
  }
  func.func @transform_0(%arg0: i32) -> (i32, i32) {
    %c0_i32 = arith.constant 0 : i32
    %c0_i32_0 = arith.constant 0 : i32
    %c0_i32_1 = arith.constant 0 : i32
    return %c0_i32, %c0_i32_0 : i32, i32
  }
  func.func @transform_1(%arg0: i32) -> (i32, i32, i32) {
    %c0_i32 = arith.constant 0 : i32
    %c0_i32_0 = arith.constant 0 : i32
    %c0_i32_1 = arith.constant 0 : i32
    return %c0_i32, %arg0, %c0_i32_0 : i32, i32, i32
  }
  func.func @transform_2(%arg0: i32) -> (i32, i32, i32) {
    %c0_i32 = arith.constant 0 : i32
    %c0_i32_0 = arith.constant 0 : i32
    %c0_i32_1 = arith.constant 0 : i32
    return %c0_i32, %arg0, %c0_i32_0 : i32, i32, i32
  }
  func.func @transform_3(%arg0: i32) -> (i32, i32, i32) {
    %c0_i32 = arith.constant 0 : i32
    %c0_i32_0 = arith.constant 0 : i32
    %c0_i32_1 = arith.constant 0 : i32
    return %c0_i32, %arg0, %c0_i32_0 : i32, i32, i32
  }
  func.func @transform_4(%arg0: i32) -> (i32, i32, i32) {
    %c0_i32 = arith.constant 0 : i32
    %c0_i32_0 = arith.constant 0 : i32
    %c0_i32_1 = arith.constant 0 : i32
    return %c0_i32, %arg0, %c0_i32_0 : i32, i32, i32
  }
  func.func @transform_5(%arg0: i32) -> (i32, i32, i32) {
    %c0_i32 = arith.constant 0 : i32
    %c0_i32_0 = arith.constant 0 : i32
    %c0_i32_1 = arith.constant 0 : i32
    return %c0_i32, %arg0, %c0_i32_0 : i32, i32, i32
  }
  func.func @transform_6(%arg0: i32) -> (i32, i32) {
    %c0_i32 = arith.constant 0 : i32
    %c0_i32_0 = arith.constant 0 : i32
    %c0_i32_1 = arith.constant 0 : i32
    return %c0_i32, %c0_i32_0 : i32, i32
  }
  func.func @transform_7(%arg0: i32) -> (i32, i32) {
    %c0_i32 = arith.constant 0 : i32
    %c0_i32_0 = arith.constant 0 : i32
    %c0_i32_1 = arith.constant 0 : i32
    return %c0_i32, %c0_i32_0 : i32, i32
  }
  func.func @transform_8(%arg0: i32) -> (i32, i32) {
    %c0_i32 = arith.constant 0 : i32
    %c0_i32_0 = arith.constant 0 : i32
    %c0_i32_1 = arith.constant 0 : i32
    return %c0_i32, %c0_i32_0 : i32, i32
  }
  func.func @transform_9(%arg0: i32) -> (i32, i32) {
    %c0_i32 = arith.constant 0 : i32
    %c0_i32_0 = arith.constant 0 : i32
    %c0_i32_1 = arith.constant 0 : i32
    return %c0_i32, %c0_i32_0 : i32, i32
  }
  func.func @transform_10(%arg0: i32) -> (i32, i32) {
    %c0_i32 = arith.constant 0 : i32
    %c0_i32_0 = arith.constant 0 : i32
    %c0_i32_1 = arith.constant 0 : i32
    return %c0_i32, %c0_i32_0 : i32, i32
  }
  func.func @transform_11(%arg0: i32) -> (i32, i32) {
    %c0_i32 = arith.constant 0 : i32
    %c0_i32_0 = arith.constant 0 : i32
    %c0_i32_1 = arith.constant 0 : i32
    return %c0_i32, %c0_i32_0 : i32, i32
  }
  func.func @transform_12(%arg0: i32) -> (i32, i32) {
    %c0_i32 = arith.constant 0 : i32
    %c0_i32_0 = arith.constant 0 : i32
    %c0_i32_1 = arith.constant 0 : i32
    return %c0_i32, %c0_i32_0 : i32, i32
  }
  func.func @transform_13(%arg0: i32) -> (i32, i32) {
    %c0_i32 = arith.constant 0 : i32
    %c0_i32_0 = arith.constant 0 : i32
    %c0_i32_1 = arith.constant 0 : i32
    return %c0_i32, %c0_i32_0 : i32, i32
  }
  func.func @transform_14(%arg0: i32) -> (i32, i32) {
    %c0_i32 = arith.constant 0 : i32
    %c0_i32_0 = arith.constant 0 : i32
    %c0_i32_1 = arith.constant 0 : i32
    return %c0_i32, %c0_i32_0 : i32, i32
  }
  func.func @transform_15(%arg0: i32) -> (i32, i32) {
    %c0_i32 = arith.constant 0 : i32
    %c0_i32_0 = arith.constant 0 : i32
    %c0_i32_1 = arith.constant 0 : i32
    return %c0_i32, %c0_i32_0 : i32, i32
  }
  func.func @transform_16(%arg0: i32) -> (i32, i32, i32) {
    %c0_i32 = arith.constant 0 : i32
    %c0_i32_0 = arith.constant 0 : i32
    %c0_i32_1 = arith.constant 0 : i32
    return %arg0, %c0_i32, %c0_i32_0 : i32, i32, i32
  }
  func.func @transform_17(%arg0: i32) -> (i32, i32, i32) {
    %c0_i32 = arith.constant 0 : i32
    %c0_i32_0 = arith.constant 0 : i32
    %c0_i32_1 = arith.constant 0 : i32
    return %arg0, %c0_i32, %c0_i32_0 : i32, i32, i32
  }
}

</mosaic_0001>

<llo_original>
// kernel: tpu_custom_call.1
$region0: #{tpu_custom_call.1}
  #allocation0 [shape = 'u32[]', space=smem, size = 0x4, offset = 0x4, fixed_abs, tag = 'smem constant byte address 0x4 - core index']
  #allocation1 [shape = 'u32[144,128]{1,0:T(1,128)}', space=vmem, size = 0x12000, scoped, tag = 'internal scratch']
  %s0 = inlined_call_operand.hbm [shape: f32[2,256], index: 0, kind: input, shape index: {}]
  %s1 = inlined_call_operand.hbm [shape: f32[2,8,256], index: 1, kind: input, shape index: {}]
  %s2 = inlined_call_operand.hbm [shape: f32[2,8,256], index: 2, kind: input, shape index: {}]
  %s3 = inlined_call_operand.hbm [shape: f32[2,8,256], index: 3, kind: input, shape index: {}]
  %s4 = inlined_call_operand.hbm [shape: f32[2,8,256], index: 4, kind: input, shape index: {}]
  %s5 = inlined_call_operand.hbm [shape: f32[2,8,256], index: 5, kind: input, shape index: {}]
  %s6 = inlined_call_operand.hbm [shape: f32[256,896], index: 6, kind: input, shape index: {}]
  %s7 = inlined_call_operand.hbm [shape: f32[1,896], index: 7, kind: input, shape index: {}]
  %s8 = inlined_call_operand.hbm [shape: f32[1,896], index: 8, kind: input, shape index: {}]
  %s9 = inlined_call_operand.hbm [shape: f32[1,896], index: 9, kind: input, shape index: {}]
  %s10 = inlined_call_operand.hbm [shape: f32[896,896], index: 10, kind: input, shape index: {}]
  %s11 = inlined_call_operand.hbm [shape: f32[1,896], index: 11, kind: input, shape index: {}]
  %s12 = inlined_call_operand.hbm [shape: f32[1,896], index: 12, kind: input, shape index: {}]
  %s13 = inlined_call_operand.hbm [shape: f32[1,896], index: 13, kind: input, shape index: {}]
  %s14 = inlined_call_operand.hbm [shape: f32[896,256], index: 14, kind: input, shape index: {}]
  %s15 = inlined_call_operand.hbm [shape: f32[1,256], index: 15, kind: input, shape index: {}]
  %s16 = inlined_call_operand.hbm [shape: f32[1,2,256], index: 16, kind: output, shape index: {0}]
  %s17 = inlined_call_operand.hbm [shape: f32[1,1,1], index: 17, kind: output, shape index: {1}]
  %18 = xla_tuple %s16, %s17
  %s19 = sld [smem:[#allocation0]]
  $region146: #{tpu_custom_call.1} parent=0
    _
  %s21 = ssub.s32 1, %s19
  %s22 = scalar_select 0, %s21, %s19
  $region1: #{tpu_custom_call.1} parent=0
    #allocation2 [shape = 'u8[2048]{0}', space=vmem, size = 0x800, scoped, tag = 'input window, operand 0, single buffered']
    #allocation3 [shape = 's32[1]{0}', space=sflag, size = 0x4, scoped, tag = 'scoped memory for tpu_custom_call.1']
    #allocation4 [shape = 's32[1]{0}', space=sflag, size = 0x4, scoped, tag = 'scoped memory for tpu_custom_call.1']
    #allocation5 [shape = 'u8[16384]{0}', space=vmem, size = 0x4000, scoped, tag = 'input window, operand 1, single buffered']
    #allocation6 [shape = 's32[1]{0}', space=sflag, size = 0x4, scoped, tag = 'scoped memory for tpu_custom_call.1']
    #allocation7 [shape = 'u8[16384]{0}', space=vmem, size = 0x4000, scoped, tag = 'input window, operand 2, single buffered']
    #allocation8 [shape = 'u8[16384]{0}', space=vmem, size = 0x4000, scoped, tag = 'input window, operand 3, single buffered']
    #allocation9 [shape = 's32[1]{0}', space=sflag, size = 0x4, scoped, tag = 'scoped memory for tpu_custom_call.1']
    #allocation10 [shape = 'u8[16384]{0}', space=vmem, size = 0x4000, scoped, tag = 'input window, operand 4, single buffered']
    #allocation11 [shape = 'u8[16384]{0}', space=vmem, size = 0x4000, scoped, tag = 'input window, operand 5, single buffered']
    #allocation12 [shape = 's32[1]{0}', space=sflag, size = 0x4, scoped, tag = 'scoped memory for tpu_custom_call.1']
    #allocation13 [shape = 'u8[917504]{0}', space=vmem, size = 0xe0000, scoped, tag = 'input window, operand 6, single buffered']
    #allocation14 [shape = 'u8[3584]{0}', space=vmem, size = 0x1000, scoped, tag = 'input window, operand 7, single buffered']
    #allocation15 [shape = 's32[1]{0}', space=sflag, size = 0x4, scoped, tag = 'scoped memory for tpu_custom_call.1']
    #allocation16 [shape = 'u8[3584]{0}', space=vmem, size = 0x1000, scoped, tag = 'input window, operand 8, single buffered']
    #allocation17 [shape = 'u8[3584]{0}', space=vmem, size = 0x1000, scoped, tag = 'input window, operand 9, single buffered']
    #allocation18 [shape = 's32[1]{0}', space=sflag, size = 0x4, scoped, tag = 'scoped memory for tpu_custom_call.1']
    #allocation19 [shape = 'u8[3211264]{0}', space=vmem, size = 0x310000, scoped, tag = 'input window, operand 10, single buffered']
    #allocation20 [shape = 'u8[3584]{0}', space=vmem, size = 0x1000, scoped, tag = 'input window, operand 11, single buffered']
    #allocation21 [shape = 's32[1]{0}', space=sflag, size = 0x4, scoped, tag = 'scoped memory for tpu_custom_call.1']
    #allocation22 [shape = 'u8[3584]{0}', space=vmem, size = 0x1000, scoped, tag = 'input window, operand 12, single buffered']
    #allocation23 [shape = 'u8[3584]{0}', space=vmem, size = 0x1000, scoped, tag = 'input window, operand 13, single buffered']
    #allocation24 [shape = 's32[1]{0}', space=sflag, size = 0x4, scoped, tag = 'scoped memory for tpu_custom_call.1']
    #allocation25 [shape = 'u8[917504]{0}', space=vmem, size = 0xe0000, scoped, tag = 'input window, operand 14, single buffered']
    #allocation26 [shape = 'u8[1024]{0}', space=vmem, size = 0x400, scoped, tag = 'input window, operand 15, single buffered']
    #allocation27 [shape = 's32[1]{0}', space=sflag, size = 0x4, scoped, tag = 'scoped memory for tpu_custom_call.1']
    #allocation28 [shape = 'u8[2048]{0}', space=vmem, size = 0x800, scoped, tag = 'output window, operand 0, single buffered']
    #allocation29 [shape = 'u8[512]{0}', space=vmem, size = 0x400, scoped, tag = 'output window, operand 1, single buffered']
    #allocation30 [shape = 's32[1]{0}', space=sflag, size = 0x4, scoped, tag = 'scoped memory for tpu_custom_call.1']
    %23 = vsyncpa [#allocation3], 0
    %24 = vsyncpa [#allocation6], 0
    %25 = vsyncpa [#allocation9], 0
    %26 = vsyncpa [#allocation12], 0
    %27 = vsyncpa [#allocation15], 0
    %28 = vsyncpa [#allocation18], 0
    %29 = vsyncpa [#allocation21], 0
    %30 = vsyncpa [#allocation24], 0
    %31 = vsyncpa [#allocation27], 0
    %32 = vsyncpa [#allocation4], 0
    %33 = vsyncpa [#allocation30], 0
    // Predicated region
    $region2: #{tpu_custom_call.1} parent=1 // pred_check
      _
    $region3: #{tpu_custom_call.1} parent=1 // pred_check_branch
      %35 = sbr.rel (0) target = $region5
    $region4: #{tpu_custom_call.1} parent=1 // pred_region
      %s37 = ssub.s32 64, 64
      %38 = vsyncadd [#allocation3], %s37
      %s40 = sshll.u32 [#allocation2], 4
      %s41 = int_to_ptr.vmem [resolvable:$true] %s40
      %43 = dma.hbm_to_vmem [thread:$0]  %s0, 64, %s41, [#allocation3]
    $region5: #{tpu_custom_call.1} parent=1 // pred_fallthru
      _
    // Predicated region
    $region6: #{tpu_custom_call.1} parent=1 // pred_check
      _
    $region7: #{tpu_custom_call.1} parent=1 // pred_check_branch
      %45 = sbr.rel (0) target = $region9
    $region8: #{tpu_custom_call.1} parent=1 // pred_region
      %s47 = ssub.s32 512, 512
      %48 = vsyncadd [#allocation6], %s47
      %s49 = sshll.u32 [#allocation5], 4
      %s50 = int_to_ptr.vmem [resolvable:$true] %s49
      %55 = dma.hbm_to_vmem [thread:$0]  %s1, 512, %s50, [#allocation6], 256, 256, 16
    $region9: #{tpu_custom_call.1} parent=1 // pred_fallthru
      _
    // Predicated region
    $region10: #{tpu_custom_call.1} parent=1 // pred_check
      _
    $region11: #{tpu_custom_call.1} parent=1 // pred_check_branch
      %57 = sbr.rel (0) target = $region13
    $region12: #{tpu_custom_call.1} parent=1 // pred_region
      %s59 = ssub.s32 512, 512
      %60 = vsyncadd [#allocation6], %s59
      %s61 = sshll.u32 [#allocation7], 4
      %s62 = int_to_ptr.vmem [resolvable:$true] %s61
      %67 = dma.hbm_to_vmem [thread:$0]  %s2, 512, %s62, [#allocation6], 256, 256, 16
    $region13: #{tpu_custom_call.1} parent=1 // pred_fallthru
      _
    // Predicated region
    $region14: #{tpu_custom_call.1} parent=1 // pred_check
      _
    $region15: #{tpu_custom_call.1} parent=1 // pred_check_branch
      %69 = sbr.rel (0) target = $region17
    $region16: #{tpu_custom_call.1} parent=1 // pred_region
      %s71 = ssub.s32 512, 512
      %72 = vsyncadd [#allocation9], %s71
      %s73 = sshll.u32 [#allocation8], 4
      %s74 = int_to_ptr.vmem [resolvable:$true] %s73
      %79 = dma.hbm_to_vmem [thread:$0]  %s3, 512, %s74, [#allocation9], 256, 256, 16
    $region17: #{tpu_custom_call.1} parent=1 // pred_fallthru
      _
    // Predicated region
    $region18: #{tpu_custom_call.1} parent=1 // pred_check
      _
    $region19: #{tpu_custom_call.1} parent=1 // pred_check_branch
      %81 = sbr.rel (0) target = $region21
    $region20: #{tpu_custom_call.1} parent=1 // pred_region
      %s83 = ssub.s32 512, 512
      %84 = vsyncadd [#allocation9], %s83
      %s85 = sshll.u32 [#allocation10], 4
      %s86 = int_to_ptr.vmem [resolvable:$true] %s85
      %91 = dma.hbm_to_vmem [thread:$0]  %s4, 512, %s86, [#allocation9], 256, 256, 16
    $region21: #{tpu_custom_call.1} parent=1 // pred_fallthru
      _
    // Predicated region
    $region22: #{tpu_custom_call.1} parent=1 // pred_check
      _
    $region23: #{tpu_custom_call.1} parent=1 // pred_check_branch
      %93 = sbr.rel (0) target = $region25
    $region24: #{tpu_custom_call.1} parent=1 // pred_region
      %s95 = ssub.s32 512, 512
      %96 = vsyncadd [#allocation12], %s95
      %s97 = sshll.u32 [#allocation11], 4
      %s98 = int_to_ptr.vmem [resolvable:$true] %s97
      %103 = dma.hbm_to_vmem [thread:$0]  %s5, 512, %s98, [#allocation12], 256, 256, 16
    $region25: #{tpu_custom_call.1} parent=1 // pred_fallthru
      _
    // Predicated region
    $region26: #{tpu_custom_call.1} parent=1 // pred_check
      _
    $region27: #{tpu_custom_call.1} parent=1 // pred_check_branch
      %105 = sbr.rel (0) target = $region29
    $region28: #{tpu_custom_call.1} parent=1 // pred_region
      %s107 = ssub.s32 28672, 28672
      %108 = vsyncadd [#allocation12], %s107
      %s109 = sshll.u32 [#allocation13], 4
      %s110 = int_to_ptr.vmem [resolvable:$true] %s109
      %115 = dma.hbm_to_vmem [thread:$0]  %s6, 28672, %s110, [#allocation12], 896, 896, 56
    $region29: #{tpu_custom_call.1} parent=1 // pred_fallthru
      _
    // Predicated region
    $region30: #{tpu_custom_call.1} parent=1 // pred_check
      _
    $region31: #{tpu_custom_call.1} parent=1 // pred_check_branch
      %117 = sbr.rel (0) target = $region33
    $region32: #{tpu_custom_call.1} parent=1 // pred_region
      %s119 = ssub.s32 112, 112
      %120 = vsyncadd [#allocation15], %s119
      %s122 = sshll.u32 [#allocation14], 4
      %s123 = int_to_ptr.vmem [resolvable:$true] %s122
      %125 = dma.hbm_to_vmem [thread:$0]  %s7, 112, %s123, [#allocation15]
    $region33: #{tpu_custom_call.1} parent=1 // pred_fallthru
      _
    // Predicated region
    $region34: #{tpu_custom_call.1} parent=1 // pred_check
      _
    $region35: #{tpu_custom_call.1} parent=1 // pred_check_branch
      %127 = sbr.rel (0) target = $region37
    $region36: #{tpu_custom_call.1} parent=1 // pred_region
      %s129 = ssub.s32 112, 112
      %130 = vsyncadd [#allocation15], %s129
      %s132 = sshll.u32 [#allocation16], 4
      %s133 = int_to_ptr.vmem [resolvable:$true] %s132
      %135 = dma.hbm_to_vmem [thread:$0]  %s8, 112, %s133, [#allocation15]
    $region37: #{tpu_custom_call.1} parent=1 // pred_fallthru
      _
    // Predicated region
    $region38: #{tpu_custom_call.1} parent=1 // pred_check
      _
    $region39: #{tpu_custom_call.1} parent=1 // pred_check_branch
      %137 = sbr.rel (0) target = $region41
    $region40: #{tpu_custom_call.1} parent=1 // pred_region
      %s139 = ssub.s32 112, 112
      %140 = vsyncadd [#allocation18], %s139
      %s142 = sshll.u32 [#allocation17], 4
      %s143 = int_to_ptr.vmem [resolvable:$true] %s142
      %145 = dma.hbm_to_vmem [thread:$0]  %s9, 112, %s143, [#allocation18]
    $region41: #{tpu_custom_call.1} parent=1 // pred_fallthru
      _
    // Predicated region
    $region42: #{tpu_custom_call.1} parent=1 // pred_check
      _
    $region43: #{tpu_custom_call.1} parent=1 // pred_check_branch
      %147 = sbr.rel (0) target = $region45
    $region44: #{tpu_custom_call.1} parent=1 // pred_region
      %s149 = ssub.s32 100352, 100352
      %150 = vsyncadd [#allocation18], %s149
      %s151 = sshll.u32 [#allocation19], 4
      %s152 = int_to_ptr.vmem [resolvable:$true] %s151
      %157 = dma.hbm_to_vmem [thread:$0]  %s10, 100352, %s152, [#allocation18], 896, 896, 56
    $region45: #{tpu_custom_call.1} parent=1 // pred_fallthru
      _
    // Predicated region
    $region46: #{tpu_custom_call.1} parent=1 // pred_check
      _
    $region47: #{tpu_custom_call.1} parent=1 // pred_check_branch
      %159 = sbr.rel (0) target = $region49
    $region48: #{tpu_custom_call.1} parent=1 // pred_region
      %s161 = ssub.s32 112, 112
      %162 = vsyncadd [#allocation21], %s161
      %s164 = sshll.u32 [#allocation20], 4
      %s165 = int_to_ptr.vmem [resolvable:$true] %s164
      %167 = dma.hbm_to_vmem [thread:$0]  %s11, 112, %s165, [#allocation21]
    $region49: #{tpu_custom_call.1} parent=1 // pred_fallthru
      _
    // Predicated region
    $region50: #{tpu_custom_call.1} parent=1 // pred_check
      _
    $region51: #{tpu_custom_call.1} parent=1 // pred_check_branch
      %169 = sbr.rel (0) target = $region53
    $region52: #{tpu_custom_call.1} parent=1 // pred_region
      %s171 = ssub.s32 112, 112
      %172 = vsyncadd [#allocation21], %s171
      %s174 = sshll.u32 [#allocation22], 4
      %s175 = int_to_ptr.vmem [resolvable:$true] %s174
      %177 = dma.hbm_to_vmem [thread:$0]  %s12, 112, %s175, [#allocation21]
    $region53: #{tpu_custom_call.1} parent=1 // pred_fallthru
      _
    // Predicated region
    $region54: #{tpu_custom_call.1} parent=1 // pred_check
      _
    $region55: #{tpu_custom_call.1} parent=1 // pred_check_branch
      %179 = sbr.rel (0) target = $region57
    $region56: #{tpu_custom_call.1} parent=1 // pred_region
      %s181 = ssub.s32 112, 112
      %182 = vsyncadd [#allocation24], %s181
      %s184 = sshll.u32 [#allocation23], 4
      %s185 = int_to_ptr.vmem [resolvable:$true] %s184
      %187 = dma.hbm_to_vmem [thread:$0]  %s13, 112, %s185, [#allocation24]
    $region57: #{tpu_custom_call.1} parent=1 // pred_fallthru
      _
    // Predicated region
    $region58: #{tpu_custom_call.1} parent=1 // pred_check
      _
    $region59: #{tpu_custom_call.1} parent=1 // pred_check_branch
      %189 = sbr.rel (0) target = $region61
    $region60: #{tpu_custom_call.1} parent=1 // pred_region
      %s191 = ssub.s32 28672, 28672
      %192 = vsyncadd [#allocation24], %s191
      %s193 = sshll.u32 [#allocation25], 4
      %s194 = int_to_ptr.vmem [resolvable:$true] %s193
      %199 = dma.hbm_to_vmem [thread:$0]  %s14, 28672, %s194, [#allocation24], 256, 256, 16
    $region61: #{tpu_custom_call.1} parent=1 // pred_fallthru
      _
    // Predicated region
    $region62: #{tpu_custom_call.1} parent=1 // pred_check
      _
    $region63: #{tpu_custom_call.1} parent=1 // pred_check_branch
      %201 = sbr.rel (0) target = $region65
    $region64: #{tpu_custom_call.1} parent=1 // pred_region
      %s203 = ssub.s32 32, 32
      %204 = vsyncadd [#allocation27], %s203
      %s206 = sshll.u32 [#allocation26], 4
      %s207 = int_to_ptr.vmem [resolvable:$true] %s206
      %209 = dma.hbm_to_vmem [thread:$0]  %s15, 32, %s207, [#allocation27]
    $region65: #{tpu_custom_call.1} parent=1 // pred_fallthru
      _
    // Predicated region
    $region66: #{tpu_custom_call.1} parent=1 // pred_check
      _
    $region67: #{tpu_custom_call.1} parent=1 // pred_check_branch
      %211 = sbr.rel (0) target = $region69
    $region68: #{tpu_custom_call.1} parent=1 // pred_region
      %212 = dma.done [#allocation3], 64
    $region69: #{tpu_custom_call.1} parent=1 // pred_fallthru
      _
    // Predicated region
    $region70: #{tpu_custom_call.1} parent=1 // pred_check
      _
    $region71: #{tpu_custom_call.1} parent=1 // pred_check_branch
      %214 = sbr.rel (0) target = $region73
    $region72: #{tpu_custom_call.1} parent=1 // pred_region
      %215 = dma.done [#allocation6], 512
    $region73: #{tpu_custom_call.1} parent=1 // pred_fallthru
      _
    // Predicated region
    $region74: #{tpu_custom_call.1} parent=1 // pred_check
      _
    $region75: #{tpu_custom_call.1} parent=1 // pred_check_branch
      %217 = sbr.rel (0) target = $region77
    $region76: #{tpu_custom_call.1} parent=1 // pred_region
      %218 = dma.done [#allocation6], 512
    $region77: #{tpu_custom_call.1} parent=1 // pred_fallthru
      _
    // Predicated region
    $region78: #{tpu_custom_call.1} parent=1 // pred_check
      _
    $region79: #{tpu_custom_call.1} parent=1 // pred_check_branch
      %220 = sbr.rel (0) target = $region81
    $region80: #{tpu_custom_call.1} parent=1 // pred_region
      %221 = dma.done [#allocation9], 512
    $region81: #{tpu_custom_call.1} parent=1 // pred_fallthru
      _
    // Predicated region
    $region82: #{tpu_custom_call.1} parent=1 // pred_check
      _
    $region83: #{tpu_custom_call.1} parent=1 // pred_check_branch
      %223 = sbr.rel (0) target = $region85
    $region84: #{tpu_custom_call.1} parent=1 // pred_region
      %224 = dma.done [#allocation9], 512
    $region85: #{tpu_custom_call.1} parent=1 // pred_fallthru
      _
    // Predicated region
    $region86: #{tpu_custom_call.1} parent=1 // pred_check
      _
    $region87: #{tpu_custom_call.1} parent=1 // pred_check_branch
      %226 = sbr.rel (0) target = $region89
    $region88: #{tpu_custom_call.1} parent=1 // pred_region
      %227 = dma.done [#allocation12], 512
    $region89: #{tpu_custom_call.1} parent=1 // pred_fallthru
      _
    // Predicated region
    $region90: #{tpu_custom_call.1} parent=1 // pred_check
      _
    $region91: #{tpu_custom_call.1} parent=1 // pred_check_branch
      %229 = sbr.rel (0) target = $region93
    $region92: #{tpu_custom_call.1} parent=1 // pred_region
      %230 = dma.done [#allocation12], 28672
    $region93: #{tpu_custom_call.1} parent=1 // pred_fallthru
      _
    // Predicated region
    $region94: #{tpu_custom_call.1} parent=1 // pred_check
      _
    $region95: #{tpu_custom_call.1} parent=1 // pred_check_branch
      %232 = sbr.rel (0) target = $region97
    $region96: #{tpu_custom_call.1} parent=1 // pred_region
      %233 = dma.done [#allocation15], 112
    $region97: #{tpu_custom_call.1} parent=1 // pred_fallthru
      _
    // Predicated region
    $region98: #{tpu_custom_call.1} parent=1 // pred_check
      _
    $region99: #{tpu_custom_call.1} parent=1 // pred_check_branch
      %235 = sbr.rel (0) target = $region101
    $region100: #{tpu_custom_call.1} parent=1 // pred_region
      %236 = dma.done [#allocation15], 112
    $region101: #{tpu_custom_call.1} parent=1 // pred_fallthru
      _
    // Predicated region
    $region102: #{tpu_custom_call.1} parent=1 // pred_check
      _
    $region103: #{tpu_custom_call.1} parent=1 // pred_check_branch
      %238 = sbr.rel (0) target = $region105
    $region104: #{tpu_custom_call.1} parent=1 // pred_region
      %239 = dma.done [#allocation18], 112
    $region105: #{tpu_custom_call.1} parent=1 // pred_fallthru
      _
    // Predicated region
    $region106: #{tpu_custom_call.1} parent=1 // pred_check
      _
    $region107: #{tpu_custom_call.1} parent=1 // pred_check_branch
      %241 = sbr.rel (0) target = $region109
    $region108: #{tpu_custom_call.1} parent=1 // pred_region
      %242 = dma.done [#allocation18], 100352
    $region109: #{tpu_custom_call.1} parent=1 // pred_fallthru
      _
    // Predicated region
    $region110: #{tpu_custom_call.1} parent=1 // pred_check
      _
    $region111: #{tpu_custom_call.1} parent=1 // pred_check_branch
      %244 = sbr.rel (0) target = $region113
    $region112: #{tpu_custom_call.1} parent=1 // pred_region
      %245 = dma.done [#allocation21], 112
    $region113: #{tpu_custom_call.1} parent=1 // pred_fallthru
      _
    // Predicated region
    $region114: #{tpu_custom_call.1} parent=1 // pred_check
      _
    $region115: #{tpu_custom_call.1} parent=1 // pred_check_branch
      %247 = sbr.rel (0) target = $region117
    $region116: #{tpu_custom_call.1} parent=1 // pred_region
      %248 = dma.done [#allocation21], 112
    $region117: #{tpu_custom_call.1} parent=1 // pred_fallthru
      _
    // Predicated region
    $region118: #{tpu_custom_call.1} parent=1 // pred_check
      _
    $region119: #{tpu_custom_call.1} parent=1 // pred_check_branch
      %250 = sbr.rel (0) target = $region121
    $region120: #{tpu_custom_call.1} parent=1 // pred_region
      %251 = dma.done [#allocation24], 112
    $region121: #{tpu_custom_call.1} parent=1 // pred_fallthru
      _
    // Predicated region
    $region122: #{tpu_custom_call.1} parent=1 // pred_check
      _
    $region123: #{tpu_custom_call.1} parent=1 // pred_check_branch
      %253 = sbr.rel (0) target = $region125
    $region124: #{tpu_custom_call.1} parent=1 // pred_region
      %254 = dma.done [#allocation24], 28672
    $region125: #{tpu_custom_call.1} parent=1 // pred_fallthru
      _
    // Predicated region
    $region126: #{tpu_custom_call.1} parent=1 // pred_check
      _
    $region127: #{tpu_custom_call.1} parent=1 // pred_check_branch
      %256 = sbr.rel (0) target = $region129
    $region128: #{tpu_custom_call.1} parent=1 // pred_region
      %257 = dma.done [#allocation27], 32
    $region129: #{tpu_custom_call.1} parent=1 // pred_fallthru
      _
    %v258 = vlaneseq
    %v259 = vshrl.u32 %v258, 7
    %v260 = vcvt.s32.f32 %v259
    %s261 = smul.u32 0, 8
    %s262 = sadd.s32 %s261, 1
    %s263 = scvt.s32.f32 %s262
    %v264 = vstv %s263
    %v265 = vadd.f32 %v260, %v264
    %v266 = vadd.f32 %v265, 1.0
    %v267 = vrcp.pop 9.0
    %v268 = vmul.f32 %v266, %v267
    %v269 = vmul.f32 %v265, %v267
    %v270 = vsub.f32 1.0, %v268
    %v271 = vmul.f32 %v268, %v270
    %v272 = vrsqrt.pop %v271
    %v273 = vmul.f32 %v271, %v272
    %vm274 = vcmp.eq.f32.partialorder %v271, inf
    %v275 = vsel %vm274, %v271, %v273
    %vm276 = vcmp.eq.f32.partialorder %v271, 0.0
    %v277 = vand.u32 %v271, 2147483648
    %v278 = vsel %vm276, %v277, %v275
    %vm279 = vcmp.le.f32.partialorder %v265, 8.0
    %v280 = vrcp.pop %v269
    %v281 = vmul.f32 1.0, %v280
    %v282 = vrcp.pop %v268
    %v283 = vmul.f32 1.0, %v282
    %v284 = vsub.f32 %v281, %v283
    %v285 = vsel %vm279, %v284, 0.0
    %v286 = vld [vmem:[#allocation5] sm:$0xff]
    %v287 = vld [vmem:[#allocation5 + $0x8] sm:$0xff]
    %v288 = vld [vmem:[#allocation5 + $0x10] sm:$0xff]
    %v289 = vld [vmem:[#allocation5 + $0x18] sm:$0xff]
    %v290 = vld [vmem:[#allocation7] sm:$0xff]
    %v291 = vld [vmem:[#allocation7 + $0x8] sm:$0xff]
    %v292 = vld [vmem:[#allocation7 + $0x10] sm:$0xff]
    %v293 = vld [vmem:[#allocation7 + $0x18] sm:$0xff]
    %v294 = vld [vmem:[#allocation8] sm:$0xff]
    %v295 = vld [vmem:[#allocation8 + $0x8] sm:$0xff]
    %v296 = vld [vmem:[#allocation8 + $0x10] sm:$0xff]
    %v297 = vld [vmem:[#allocation8 + $0x18] sm:$0xff]
    %v298 = vld [vmem:[#allocation10] sm:$0xff]
    %v299 = vld [vmem:[#allocation10 + $0x8] sm:$0xff]
    %v300 = vld [vmem:[#allocation10 + $0x10] sm:$0xff]
    %v301 = vld [vmem:[#allocation10 + $0x18] sm:$0xff]
    %v302 = vld [vmem:[#allocation11] sm:$0xff]
    %v303 = vld [vmem:[#allocation11 + $0x8] sm:$0xff]
    %v304 = vld [vmem:[#allocation11 + $0x10] sm:$0xff]
    %v305 = vld [vmem:[#allocation11 + $0x18] sm:$0xff]
    %v306 = vmul.f32 %v302, 0.1
    %v307 = vmul.f32 %v303, 0.1
    %v308 = vmul.f32 %v304, 0.1
    %v309 = vmul.f32 %v305, 0.1
    %v310 = vld [vmem:[#allocation2] ss:$2 sm:$0x3]
    %v312 = vlaneseq
    %v313 = vshrl.u32 %v312, 7
    %v314 = vsub.s32 0, %v313
    %v315 = vrot.slane %v310, %v314
    %v316 = vlaneseq
    %v317 = vshrl.u32 %v316, 7
    %v318 = vsub.s32 1, %v317
    %v319 = vrot.slane %v310, %v318
    %s322 = scalar_lea.vmem [#allocation2], 1
    %v323 = vld [vmem:[%s322] ss:$2 sm:$0x3]
    %v325 = vlaneseq
    %v326 = vshrl.u32 %v325, 7
    %v327 = vsub.s32 0, %v326
    %v328 = vrot.slane %v323, %v327
    %v329 = vlaneseq
    %v330 = vshrl.u32 %v329, 7
    %v331 = vsub.s32 1, %v330
    %v332 = vrot.slane %v323, %v331
    %336 = vset.pattern.permute.xlu0 0
    %337 = vperm.xlu0 %336, %v268
    %v338 = vpop.permute.xlu0 %337
    %v340 = vmul.f32 %v338, %v290
    %v341 = vmul.f32 %v338, %v291
    %v342 = vmul.f32 %v338, %v292
    %v343 = vmul.f32 %v338, %v293
    %v344 = vsub.f32 %v315, %v340
    %v345 = vsub.f32 %v319, %v341
    %v346 = vsub.f32 %v328, %v342
    %v347 = vsub.f32 %v332, %v343
    %349 = vset.pattern.permute.xlu0 0
    %350 = vperm.xlu0 %349, %v278
    %v351 = vpop.permute.xlu0 %350
    %v353 = vmul.f32 %v351, %v306
    %v354 = vmul.f32 %v351, %v307
    %v355 = vmul.f32 %v351, %v308
    %v356 = vmul.f32 %v351, %v309
    %v357 = vadd.f32 %v344, %v353
    %v358 = vadd.f32 %v345, %v354
    %v359 = vadd.f32 %v346, %v355
    %v360 = vadd.f32 %v347, %v356
    %362 = vset.pattern.permute.xlu0 0
    %363 = vperm.xlu0 %362, %v269
    %v364 = vpop.permute.xlu0 %363
    %v366 = vmul.f32 %v364, %v286
    %v367 = vmul.f32 %v364, %v287
    %v368 = vmul.f32 %v364, %v288
    %v369 = vmul.f32 %v364, %v289
    %v370 = vsub.f32 %v315, %v366
    %v371 = vsub.f32 %v319, %v367
    %v372 = vsub.f32 %v328, %v368
    %v373 = vsub.f32 %v332, %v369
    %v374 = vadd.f32 %v357, %v298
    %v375 = vadd.f32 %v358, %v299
    %v376 = vadd.f32 %v359, %v300
    %v377 = vadd.f32 %v360, %v301
    %v378 = vadd.f32 %v357, %v294
    %v379 = vadd.f32 %v358, %v295
    %v380 = vadd.f32 %v359, %v296
    %v381 = vadd.f32 %v360, %v297
    %v382 = vsub.f32 %v370, %v378
    %v383 = vsub.f32 %v371, %v379
    %v384 = vsub.f32 %v372, %v380
    %v385 = vsub.f32 %v373, %v381
    %v386 = vld [vmem:[#allocation13] sm:$0xff]
    %v387 = vld [vmem:[#allocation13 + $0x8] sm:$0xff]
    %v388 = vld [vmem:[#allocation13 + $0x10] sm:$0xff]
    %v389 = vld [vmem:[#allocation13 + $0x18] sm:$0xff]
    %v390 = vld [vmem:[#allocation13 + $0x20] sm:$0xff]
    %v391 = vld [vmem:[#allocation13 + $0x28] sm:$0xff]
    %v392 = vld [vmem:[#allocation13 + $0x30] sm:$0xff]
    %v393 = vld [vmem:[#allocation13 + $0x38] sm:$0xff]
    %v394 = vld [vmem:[#allocation13 + $0x40] sm:$0xff]
    %v395 = vld [vmem:[#allocation13 + $0x48] sm:$0xff]
    %v396 = vld [vmem:[#allocation13 + $0x50] sm:$0xff]
    %v397 = vld [vmem:[#allocation13 + $0x58] sm:$0xff]
    %v398 = vld [vmem:[#allocation13 + $0x60] sm:$0xff]
    %v399 = vld [vmem:[#allocation13 + $0x68] sm:$0xff]
    %v400 = vld [vmem:[#allocation13 + $0x70] sm:$0xff]
    %v401 = vld [vmem:[#allocation13 + $0x78] sm:$0xff]
    %v402 = vld [vmem:[#allocation13 + $0x80] sm:$0xff]
    %v403 = vld [vmem:[#allocation13 + $0x88] sm:$0xff]
    %v404 = vld [vmem:[#allocation13 + $0x90] sm:$0xff]
    %v405 = vld [vmem:[#allocation13 + $0x98] sm:$0xff]
    %v406 = vld [vmem:[#allocation13 + $0xa0] sm:$0xff]
    %v407 = vld [vmem:[#allocation13 + $0xa8] sm:$0xff]
    %v408 = vld [vmem:[#allocation13 + $0xb0] sm:$0xff]
    %v409 = vld [vmem:[#allocation13 + $0xb8] sm:$0xff]
    %v410 = vld [vmem:[#allocation13 + $0xc0] sm:$0xff]
    %v411 = vld [vmem:[#allocation13 + $0xc8] sm:$0xff]
    %v412 = vld [vmem:[#allocation13 + $0xd0] sm:$0xff]
    %v413 = vld [vmem:[#allocation13 + $0xd8] sm:$0xff]
    %v414 = vld [vmem:[#allocation13 + $0xe0] sm:$0xff]
    %v415 = vld [vmem:[#allocation13 + $0xe8] sm:$0xff]
    %v416 = vld [vmem:[#allocation13 + $0xf0] sm:$0xff]
    %v417 = vld [vmem:[#allocation13 + $0xf8] sm:$0xff]
    %v418 = vld [vmem:[#allocation13 + $0x100] sm:$0xff]
    %v419 = vld [vmem:[#allocation13 + $0x108] sm:$0xff]
    %v420 = vld [vmem:[#allocation13 + $0x110] sm:$0xff]
    %v421 = vld [vmem:[#allocation13 + $0x118] sm:$0xff]
    %v422 = vld [vmem:[#allocation13 + $0x120] sm:$0xff]
    %v423 = vld [vmem:[#allocation13 + $0x128] sm:$0xff]
    %v424 = vld [vmem:[#allocation13 + $0x130] sm:$0xff]
    %v425 = vld [vmem:[#allocation13 + $0x138] sm:$0xff]
    %v426 = vld [vmem:[#allocation13 + $0x140] sm:$0xff]
    %v427 = vld [vmem:[#allocation13 + $0x148] sm:$0xff]
    %v428 = vld [vmem:[#allocation13 + $0x150] sm:$0xff]
    %v429 = vld [vmem:[#allocation13 + $0x158] sm:$0xff]
    %v430 = vld [vmem:[#allocation13 + $0x160] sm:$0xff]
    %v431 = vld [vmem:[#allocation13 + $0x168] sm:$0xff]
    %v432 = vld [vmem:[#allocation13 + $0x170] sm:$0xff]
    %v433 = vld [vmem:[#allocation13 + $0x178] sm:$0xff]
    %v434 = vld [vmem:[#allocation13 + $0x180] sm:$0xff]
    %v435 = vld [vmem:[#allocation13 + $0x188] sm:$0xff]
    %v436 = vld [vmem:[#allocation13 + $0x190] sm:$0xff]
    %v437 = vld [vmem:[#allocation13 + $0x198] sm:$0xff]
    %v438 = vld [vmem:[#allocation13 + $0x1a0] sm:$0xff]
    %v439 = vld [vmem:[#allocation13 + $0x1a8] sm:$0xff]
    %v440 = vld [vmem:[#allocation13 + $0x1b0] sm:$0xff]
    %v441 = vld [vmem:[#allocation13 + $0x1b8] sm:$0xff]
    %v442 = vld [vmem:[#allocation13 + $0x1c0] sm:$0xff]
    %v443 = vld [vmem:[#allocation13 + $0x1c8] sm:$0xff]
    %v444 = vld [vmem:[#allocation13 + $0x1d0] sm:$0xff]
    %v445 = vld [vmem:[#allocation13 + $0x1d8] sm:$0xff]
    %v446 = vld [vmem:[#allocation13 + $0x1e0] sm:$0xff]
    %v447 = vld [vmem:[#allocation13 + $0x1e8] sm:$0xff]
    %v448 = vld [vmem:[#allocation13 + $0x1f0] sm:$0xff]
    %v449 = vld [vmem:[#allocation13 + $0x1f8] sm:$0xff]
    %v450 = vld [vmem:[#allocation13 + $0x200] sm:$0xff]
    %v451 = vld [vmem:[#allocation13 + $0x208] sm:$0xff]
    %v452 = vld [vmem:[#allocation13 + $0x210] sm:$0xff]
    %v453 = vld [vmem:[#allocation13 + $0x218] sm:$0xff]
    %v454 = vld [vmem:[#allocation13 + $0x220] sm:$0xff]
    %v455 = vld [vmem:[#allocation13 + $0x228] sm:$0xff]
    %v456 = vld [vmem:[#allocation13 + $0x230] sm:$0xff]
    %v457 = vld [vmem:[#allocation13 + $0x238] sm:$0xff]
    %v458 = vld [vmem:[#allocation13 + $0x240] sm:$0xff]
    %v459 = vld [vmem:[#allocation13 + $0x248] sm:$0xff]
    %v460 = vld [vmem:[#allocation13 + $0x250] sm:$0xff]
    %v461 = vld [vmem:[#allocation13 + $0x258] sm:$0xff]
    %v462 = vld [vmem:[#allocation13 + $0x260] sm:$0xff]
    %v463 = vld [vmem:[#allocation13 + $0x268] sm:$0xff]
    %v464 = vld [vmem:[#allocation13 + $0x270] sm:$0xff]
    %v465 = vld [vmem:[#allocation13 + $0x278] sm:$0xff]
    %v466 = vld [vmem:[#allocation13 + $0x280] sm:$0xff]
    %v467 = vld [vmem:[#allocation13 + $0x288] sm:$0xff]
    %v468 = vld [vmem:[#allocation13 + $0x290] sm:$0xff]
    %v469 = vld [vmem:[#allocation13 + $0x298] sm:$0xff]
    %v470 = vld [vmem:[#allocation13 + $0x2a0] sm:$0xff]
    %v471 = vld [vmem:[#allocation13 + $0x2a8] sm:$0xff]
    %v472 = vld [vmem:[#allocation13 + $0x2b0] sm:$0xff]
    %v473 = vld [vmem:[#allocation13 + $0x2b8] sm:$0xff]
    %v474 = vld [vmem:[#allocation13 + $0x2c0] sm:$0xff]
    %v475 = vld [vmem:[#allocation13 + $0x2c8] sm:$0xff]
    %v476 = vld [vmem:[#allocation13 + $0x2d0] sm:$0xff]
    %v477 = vld [vmem:[#allocation13 + $0x2d8] sm:$0xff]
    %v478 = vld [vmem:[#allocation13 + $0x2e0] sm:$0xff]
    %v479 = vld [vmem:[#allocation13 + $0x2e8] sm:$0xff]
    %v480 = vld [vmem:[#allocation13 + $0x2f0] sm:$0xff]
    %v481 = vld [vmem:[#allocation13 + $0x2f8] sm:$0xff]
    %v482 = vld [vmem:[#allocation13 + $0x300] sm:$0xff]
    %v483 = vld [vmem:[#allocation13 + $0x308] sm:$0xff]
    %v484 = vld [vmem:[#allocation13 + $0x310] sm:$0xff]
    %v485 = vld [vmem:[#allocation13 + $0x318] sm:$0xff]
    %v486 = vld [vmem:[#allocation13 + $0x320] sm:$0xff]
    %v487 = vld [vmem:[#allocation13 + $0x328] sm:$0xff]
    %v488 = vld [vmem:[#allocation13 + $0x330] sm:$0xff]
    %v489 = vld [vmem:[#allocation13 + $0x338] sm:$0xff]
    %v490 = vld [vmem:[#allocation13 + $0x340] sm:$0xff]
    %v491 = vld [vmem:[#allocation13 + $0x348] sm:$0xff]
    %v492 = vld [vmem:[#allocation13 + $0x350] sm:$0xff]
    %v493 = vld [vmem:[#allocation13 + $0x358] sm:$0xff]
    %v494 = vld [vmem:[#allocation13 + $0x360] sm:$0xff]
    %v495 = vld [vmem:[#allocation13 + $0x368] sm:$0xff]
    %v496 = vld [vmem:[#allocation13 + $0x370] sm:$0xff]
    %v497 = vld [vmem:[#allocation13 + $0x378] sm:$0xff]
    %v498 = vld [vmem:[#allocation13 + $0x380] sm:$0xff]
    %v499 = vld [vmem:[#allocation13 + $0x388] sm:$0xff]
    %v500 = vld [vmem:[#allocation13 + $0x390] sm:$0xff]
    %v501 = vld [vmem:[#allocation13 + $0x398] sm:$0xff]
    %v502 = vld [vmem:[#allocation13 + $0x3a0] sm:$0xff]
    %v503 = vld [vmem:[#allocation13 + $0x3a8] sm:$0xff]
    %v504 = vld [vmem:[#allocation13 + $0x3b0] sm:$0xff]
    %v505 = vld [vmem:[#allocation13 + $0x3b8] sm:$0xff]
    %v506 = vld [vmem:[#allocation13 + $0x3c0] sm:$0xff]
    %v507 = vld [vmem:[#allocation13 + $0x3c8] sm:$0xff]
    %v508 = vld [vmem:[#allocation13 + $0x3d0] sm:$0xff]
    %v509 = vld [vmem:[#allocation13 + $0x3d8] sm:$0xff]
    %v510 = vld [vmem:[#allocation13 + $0x3e0] sm:$0xff]
    %v511 = vld [vmem:[#allocation13 + $0x3e8] sm:$0xff]
    %v512 = vld [vmem:[#allocation13 + $0x3f0] sm:$0xff]
    %v513 = vld [vmem:[#allocation13 + $0x3f8] sm:$0xff]
    %v514 = vld [vmem:[#allocation13 + $0x400] sm:$0xff]
    %v515 = vld [vmem:[#allocation13 + $0x408] sm:$0xff]
    %v516 = vld [vmem:[#allocation13 + $0x410] sm:$0xff]
    %v517 = vld [vmem:[#allocation13 + $0x418] sm:$0xff]
    %v518 = vld [vmem:[#allocation13 + $0x420] sm:$0xff]
    %v519 = vld [vmem:[#allocation13 + $0x428] sm:$0xff]
    %v520 = vld [vmem:[#allocation13 + $0x430] sm:$0xff]
    %v521 = vld [vmem:[#allocation13 + $0x438] sm:$0xff]
    %v522 = vld [vmem:[#allocation13 + $0x440] sm:$0xff]
    %v523 = vld [vmem:[#allocation13 + $0x448] sm:$0xff]
    %v524 = vld [vmem:[#allocation13 + $0x450] sm:$0xff]
    %v525 = vld [vmem:[#allocation13 + $0x458] sm:$0xff]
    %v526 = vld [vmem:[#allocation13 + $0x460] sm:$0xff]
    %v527 = vld [vmem:[#allocation13 + $0x468] sm:$0xff]
    %v528 = vld [vmem:[#allocation13 + $0x470] sm:$0xff]
    %v529 = vld [vmem:[#allocation13 + $0x478] sm:$0xff]
    %v530 = vld [vmem:[#allocation13 + $0x480] sm:$0xff]
    %v531 = vld [vmem:[#allocation13 + $0x488] sm:$0xff]
    %v532 = vld [vmem:[#allocation13 + $0x490] sm:$0xff]
    %v533 = vld [vmem:[#allocation13 + $0x498] sm:$0xff]
    %v534 = vld [vmem:[#allocation13 + $0x4a0] sm:$0xff]
    %v535 = vld [vmem:[#allocation13 + $0x4a8] sm:$0xff]
    %v536 = vld [vmem:[#allocation13 + $0x4b0] sm:$0xff]
    %v537 = vld [vmem:[#allocation13 + $0x4b8] sm:$0xff]
    %v538 = vld [vmem:[#allocation13 + $0x4c0] sm:$0xff]
    %v539 = vld [vmem:[#allocation13 + $0x4c8] sm:$0xff]
    %v540 = vld [vmem:[#allocation13 + $0x4d0] sm:$0xff]
    %v541 = vld [vmem:[#allocation13 + $0x4d8] sm:$0xff]
    %v542 = vld [vmem:[#allocation13 + $0x4e0] sm:$0xff]
    %v543 = vld [vmem:[#allocation13 + $0x4e8] sm:$0xff]
    %v544 = vld [vmem:[#allocation13 + $0x4f0] sm:$0xff]
    %v545 = vld [vmem:[#allocation13 + $0x4f8] sm:$0xff]
    %v546 = vld [vmem:[#allocation13 + $0x500] sm:$0xff]
    %v547 = vld [vmem:[#allocation13 + $0x508] sm:$0xff]
    %v548 = vld [vmem:[#allocation13 + $0x510] sm:$0xff]
    %v549 = vld [vmem:[#allocation13 + $0x518] sm:$0xff]
    %v550 = vld [vmem:[#allocation13 + $0x520] sm:$0xff]
    %v551 = vld [vmem:[#allocation13 + $0x528] sm:$0xff]
    %v552 = vld [vmem:[#allocation13 + $0x530] sm:$0xff]
    %v553 = vld [vmem:[#allocation13 + $0x538] sm:$0xff]
    %v554 = vld [vmem:[#allocation13 + $0x540] sm:$0xff]
    %v555 = vld [vmem:[#allocation13 + $0x548] sm:$0xff]
    %v556 = vld [vmem:[#allocation13 + $0x550] sm:$0xff]
    %v557 = vld [vmem:[#allocation13 + $0x558] sm:$0xff]
    %v558 = vld [vmem:[#allocation13 + $0x560] sm:$0xff]
    %v559 = vld [vmem:[#allocation13 + $0x568] sm:$0xff]
    %v560 = vld [vmem:[#allocation13 + $0x570] sm:$0xff]
    %v561 = vld [vmem:[#allocation13 + $0x578] sm:$0xff]
    %v562 = vld [vmem:[#allocation13 + $0x580] sm:$0xff]
    %v563 = vld [vmem:[#allocation13 + $0x588] sm:$0xff]
    %v564 = vld [vmem:[#allocation13 + $0x590] sm:$0xff]
    %v565 = vld [vmem:[#allocation13 + $0x598] sm:$0xff]
    %v566 = vld [vmem:[#allocation13 + $0x5a0] sm:$0xff]
    %v567 = vld [vmem:[#allocation13 + $0x5a8] sm:$0xff]
    %v568 = vld [vmem:[#allocation13 + $0x5b0] sm:$0xff]
    %v569 = vld [vmem:[#allocation13 + $0x5b8] sm:$0xff]
    %v570 = vld [vmem:[#allocation13 + $0x5c0] sm:$0xff]
    %v571 = vld [vmem:[#allocation13 + $0x5c8] sm:$0xff]
    %v572 = vld [vmem:[#allocation13 + $0x5d0] sm:$0xff]
    %v573 = vld [vmem:[#allocation13 + $0x5d8] sm:$0xff]
    %v574 = vld [vmem:[#allocation13 + $0x5e0] sm:$0xff]
    %v575 = vld [vmem:[#allocation13 + $0x5e8] sm:$0xff]
    %v576 = vld [vmem:[#allocation13 + $0x5f0] sm:$0xff]
    %v577 = vld [vmem:[#allocation13 + $0x5f8] sm:$0xff]
    %v578 = vld [vmem:[#allocation13 + $0x600] sm:$0xff]
    %v579 = vld [vmem:[#allocation13 + $0x608] sm:$0xff]
    %v580 = vld [vmem:[#allocation13 + $0x610] sm:$0xff]
    %v581 = vld [vmem:[#allocation13 + $0x618] sm:$0xff]
    %v582 = vld [vmem:[#allocation13 + $0x620] sm:$0xff]
    %v583 = vld [vmem:[#allocation13 + $0x628] sm:$0xff]
    %v584 = vld [vmem:[#allocation13 + $0x630] sm:$0xff]
    %v585 = vld [vmem:[#allocation13 + $0x638] sm:$0xff]
    %v586 = vld [vmem:[#allocation13 + $0x640] sm:$0xff]
    %v587 = vld [vmem:[#allocation13 + $0x648] sm:$0xff]
    %v588 = vld [vmem:[#allocation13 + $0x650] sm:$0xff]
    %v589 = vld [vmem:[#allocation13 + $0x658] sm:$0xff]
    %v590 = vld [vmem:[#allocation13 + $0x660] sm:$0xff]
    %v591 = vld [vmem:[#allocation13 + $0x668] sm:$0xff]
    %v592 = vld [vmem:[#allocation13 + $0x670] sm:$0xff]
    %v593 = vld [vmem:[#allocation13 + $0x678] sm:$0xff]
    %v594 = vld [vmem:[#allocation13 + $0x680] sm:$0xff]
    %v595 = vld [vmem:[#allocation13 + $0x688] sm:$0xff]
    %v596 = vld [vmem:[#allocation13 + $0x690] sm:$0xff]
    %v597 = vld [vmem:[#allocation13 + $0x698] sm:$0xff]
    %v598 = vld [vmem:[#allocation13 + $0x6a0] sm:$0xff]
    %v599 = vld [vmem:[#allocation13 + $0x6a8] sm:$0xff]
    %v600 = vld [vmem:[#allocation13 + $0x6b0] sm:$0xff]
    %v601 = vld [vmem:[#allocation13 + $0x6b8] sm:$0xff]
    %v602 = vld [vmem:[#allocation13 + $0x6c0] sm:$0xff]
    %v603 = vld [vmem:[#allocation13 + $0x6c8] sm:$0xff]
    %v604 = vld [vmem:[#allocation13 + $0x6d0] sm:$0xff]
    %v605 = vld [vmem:[#allocation13 + $0x6d8] sm:$0xff]
    %v606 = vld [vmem:[#allocation13 + $0x6e0] sm:$0xff]
    %v607 = vld [vmem:[#allocation13 + $0x6e8] sm:$0xff]
    %v608 = vld [vmem:[#allocation13 + $0x6f0] sm:$0xff]
    %v609 = vld [vmem:[#allocation13 + $0x6f8] sm:$0xff]
    %v610 = vld [vmem:[#allocation14] sm:$0xff]
    %v612 = vlaneseq
    %v613 = vshrl.u32 %v612, 7
    %v614 = vsub.s32 0, %v613
    %v615 = vrot.slane %v610, %v614
    %v616 = vlaneseq
    %v617 = vshrl.u32 %v616, 7
    %v618 = vsub.s32 1, %v617
    %v619 = vrot.slane %v610, %v618
    %v620 = vlaneseq
    %v621 = vshrl.u32 %v620, 7
    %v622 = vsub.s32 2, %v621
    %v623 = vrot.slane %v610, %v622
    %v624 = vlaneseq
    %v625 = vshrl.u32 %v624, 7
    %v626 = vsub.s32 3, %v625
    %v627 = vrot.slane %v610, %v626
    %v628 = vlaneseq
    %v629 = vshrl.u32 %v628, 7
    %v630 = vsub.s32 4, %v629
    %v631 = vrot.slane %v610, %v630
    %v632 = vlaneseq
    %v633 = vshrl.u32 %v632, 7
    %v634 = vsub.s32 5, %v633
    %v635 = vrot.slane %v610, %v634
    %v636 = vlaneseq
    %v637 = vshrl.u32 %v636, 7
    %v638 = vsub.s32 6, %v637
    %v639 = vrot.slane %v610, %v638
    %647 = vmatprep.subr.mxu0 %v387
    %648 = vmatpush1.msra.mxu0 %v386
    %649 = vmatprep.subr.mxu0 %v394
    %650 = vmatpush1.msra.mxu0 %v393
    %651 = vmatprep.subr.mxu0 %v401
    %652 = vmatpush1.msra.mxu0 %v400
    %653 = vmatprep.subr.mxu0 %v408
    %654 = vmatpush1.msra.mxu0 %v407
    %655 = vmatprep.subr.mxu0 %v415
    %656 = vmatpush1.msra.mxu0 %v414
    %657 = vmatprep.subr.mxu0 %v422
    %658 = vmatpush1.msra.mxu0 %v421
    %659 = vmatprep.subr.mxu0 %v429
    %660 = vmatpush1.msra.mxu0 %v428
    %661 = vmatprep.subr.mxu0 %v436
    %662 = vmatpush1.msra.mxu0 %v435
    %663 = vmatprep.subr.mxu0 %v443
    %664 = vmatpush1.msra.mxu0 %v442
    %665 = vmatprep.subr.mxu0 %v450
    %666 = vmatpush1.msra.mxu0 %v449
    %667 = vmatprep.subr.mxu0 %v457
    %668 = vmatpush1.msra.mxu0 %v456
    %669 = vmatprep.subr.mxu0 %v464
    %670 = vmatpush1.msra.mxu0 %v463
    %671 = vmatprep.subr.mxu0 %v471
    %672 = vmatpush1.msra.mxu0 %v470
    %673 = vmatprep.subr.mxu0 %v478
    %674 = vmatpush1.msra.mxu0 %v477
    %675 = vmatprep.subr.mxu0 %v485
    %676 = vmatpush1.msra.mxu0 %v484
    %677 = vmatprep.subr.mxu0 %v492
    %678 = vmatpush1.msra.mxu0 %v491
    %679 = vmatprep.subr.mxu0 %v499
    %680 = vmatpush1.msra.mxu0 %v498
    %681 = vmatprep.subr.mxu0 %v506
    %682 = vmatpush1.msra.mxu0 %v505
    %683 = vmatprep.subr.mxu0 %v513
    %684 = vmatpush1.msra.mxu0 %v512
    %685 = vmatprep.subr.mxu0 %v520
    %686 = vmatpush1.msra.mxu0 %v519
    %687 = vmatprep.subr.mxu0 %v527
    %688 = vmatpush1.msra.mxu0 %v526
    %689 = vmatprep.subr.mxu0 %v534
    %690 = vmatpush1.msra.mxu0 %v533
    %691 = vmatprep.subr.mxu0 %v541
    %692 = vmatpush1.msra.mxu0 %v540
    %693 = vmatprep.subr.mxu0 %v548
    %694 = vmatpush1.msra.mxu0 %v547
    %695 = vmatprep.subr.mxu0 %v555
    %696 = vmatpush1.msra.mxu0 %v554
    %697 = vmatprep.subr.mxu0 %v562
    %698 = vmatpush1.msra.mxu0 %v561
    %699 = vmatprep.subr.mxu0 %v569
    %700 = vmatpush1.msra.mxu0 %v568
    %701 = vmatprep.subr.mxu0 %v576
    %702 = vmatpush1.msra.mxu0 %v575
    %703 = vmatprep.subr.mxu0 %v583
    %704 = vmatpush1.msra.mxu0 %v582
    %705 = vmatprep.subr.mxu0 %v590
    %706 = vmatpush1.msra.mxu0 %v589
    %707 = vmatprep.subr.mxu0 %v597
    %708 = vmatpush1.msra.mxu0 %v596
    %709 = vmatprep.subr.mxu0 %v604
    %710 = vmatpush1.msra.mxu0 %v603
    %711 = vmatprep.mubr.f32.mxu0 %v375
    %712 = vmatmul.mubr.f32.gmra.mrb[0].mxu0 %v374
    %v713 = vpop.f32.mrb[0].mxu0
    %v714 = vadd.f32 %v615, %v713
    %v715 = vpop.f32.mrb[0].mxu0
    %v716 = vadd.f32 %v619, %v715
    %717 = vmatprep.mubr.f32.mxu0 %v377
    %718 = vmatmul.mubr.f32.gmra.mrb[0].mxu0 %v376
    %v719 = vpop.f32.mrb[0].mxu0
    %v720 = vadd.f32 %v615, %v719
    %v721 = vpop.f32.mrb[0].mxu0
    %v722 = vadd.f32 %v619, %v721
    %723 = vdwg.mxu0
    %724 = vmatprep.subr.mxu0 %v389
    %725 = vmatpush1.msra.mxu0 %v388
    %726 = vmatprep.subr.mxu0 %v396
    %727 = vmatpush1.msra.mxu0 %v395
    %728 = vmatprep.subr.mxu0 %v403
    %729 = vmatpush1.msra.mxu0 %v402
    %730 = vmatprep.subr.mxu0 %v410
    %731 = vmatpush1.msra.mxu0 %v409
    %732 = vmatprep.subr.mxu0 %v417
    %733 = vmatpush1.msra.mxu0 %v416
    %734 = vmatprep.subr.mxu0 %v424
    %735 = vmatpush1.msra.mxu0 %v423
    %736 = vmatprep.subr.mxu0 %v431
    %737 = vmatpush1.msra.mxu0 %v430
    %738 = vmatprep.subr.mxu0 %v438
    %739 = vmatpush1.msra.mxu0 %v437
    %740 = vmatprep.subr.mxu0 %v445
    %741 = vmatpush1.msra.mxu0 %v444
    %742 = vmatprep.subr.mxu0 %v452
    %743 = vmatpush1.msra.mxu0 %v451
    %744 = vmatprep.subr.mxu0 %v459
    %745 = vmatpush1.msra.mxu0 %v458
    %746 = vmatprep.subr.mxu0 %v466
    %747 = vmatpush1.msra.mxu0 %v465
    %748 = vmatprep.subr.mxu0 %v473
    %749 = vmatpush1.msra.mxu0 %v472
    %750 = vmatprep.subr.mxu0 %v480
    %751 = vmatpush1.msra.mxu0 %v479
    %752 = vmatprep.subr.mxu0 %v487
    %753 = vmatpush1.msra.mxu0 %v486
    %754 = vmatprep.subr.mxu0 %v494
    %755 = vmatpush1.msra.mxu0 %v493
    %756 = vmatprep.subr.mxu0 %v501
    %757 = vmatpush1.msra.mxu0 %v500
    %758 = vmatprep.subr.mxu0 %v508
    %759 = vmatpush1.msra.mxu0 %v507
    %760 = vmatprep.subr.mxu0 %v515
    %761 = vmatpush1.msra.mxu0 %v514
    %762 = vmatprep.subr.mxu0 %v522
    %763 = vmatpush1.msra.mxu0 %v521
    %764 = vmatprep.subr.mxu0 %v529
    %765 = vmatpush1.msra.mxu0 %v528
    %766 = vmatprep.subr.mxu0 %v536
    %767 = vmatpush1.msra.mxu0 %v535
    %768 = vmatprep.subr.mxu0 %v543
    %769 = vmatpush1.msra.mxu0 %v542
    %770 = vmatprep.subr.mxu0 %v550
    %771 = vmatpush1.msra.mxu0 %v549
    %772 = vmatprep.subr.mxu0 %v557
    %773 = vmatpush1.msra.mxu0 %v556
    %774 = vmatprep.subr.mxu0 %v564
    %775 = vmatpush1.msra.mxu0 %v563
    %776 = vmatprep.subr.mxu0 %v571
    %777 = vmatpush1.msra.mxu0 %v570
    %778 = vmatprep.subr.mxu0 %v578
    %779 = vmatpush1.msra.mxu0 %v577
    %780 = vmatprep.subr.mxu0 %v585
    %781 = vmatpush1.msra.mxu0 %v584
    %782 = vmatprep.subr.mxu0 %v592
    %783 = vmatpush1.msra.mxu0 %v591
    %784 = vmatprep.subr.mxu0 %v599
    %785 = vmatpush1.msra.mxu0 %v598
    %786 = vmatprep.subr.mxu0 %v606
    %787 = vmatpush1.msra.mxu0 %v605
    %788 = vmatprep.mubr.f32.mxu0 %v375
    %789 = vmatmul.mubr.f32.gmra.mrb[0].mxu0 %v374
    %v790 = vpop.f32.mrb[0].mxu0
    %v791 = vadd.f32 %v623, %v790
    %v792 = vpop.f32.mrb[0].mxu0
    %v793 = vadd.f32 %v627, %v792
    %794 = vmatprep.mubr.f32.mxu0 %v377
    %795 = vmatmul.mubr.f32.gmra.mrb[0].mxu0 %v376
    %v796 = vpop.f32.mrb[0].mxu0
    %v797 = vadd.f32 %v623, %v796
    %v798 = vpop.f32.mrb[0].mxu0
    %v799 = vadd.f32 %v627, %v798
    %800 = vdwg.mxu0
    %801 = vmatprep.subr.mxu0 %v391
    %802 = vmatpush1.msra.mxu0 %v390
    %803 = vmatprep.subr.mxu0 %v398
    %804 = vmatpush1.msra.mxu0 %v397
    %805 = vmatprep.subr.mxu0 %v405
    %806 = vmatpush1.msra.mxu0 %v404
    %807 = vmatprep.subr.mxu0 %v412
    %808 = vmatpush1.msra.mxu0 %v411
    %809 = vmatprep.subr.mxu0 %v419
    %810 = vmatpush1.msra.mxu0 %v418
    %811 = vmatprep.subr.mxu0 %v426
    %812 = vmatpush1.msra.mxu0 %v425
    %813 = vmatprep.subr.mxu0 %v433
    %814 = vmatpush1.msra.mxu0 %v432
    %815 = vmatprep.subr.mxu0 %v440
    %816 = vmatpush1.msra.mxu0 %v439
    %817 = vmatprep.subr.mxu0 %v447
    %818 = vmatpush1.msra.mxu0 %v446
    %819 = vmatprep.subr.mxu0 %v454
    %820 = vmatpush1.msra.mxu0 %v453
    %821 = vmatprep.subr.mxu0 %v461
    %822 = vmatpush1.msra.mxu0 %v460
    %823 = vmatprep.subr.mxu0 %v468
    %824 = vmatpush1.msra.mxu0 %v467
    %825 = vmatprep.subr.mxu0 %v475
    %826 = vmatpush1.msra.mxu0 %v474
    %827 = vmatprep.subr.mxu0 %v482
    %828 = vmatpush1.msra.mxu0 %v481
    %829 = vmatprep.subr.mxu0 %v489
    %830 = vmatpush1.msra.mxu0 %v488
    %831 = vmatprep.subr.mxu0 %v496
    %832 = vmatpush1.msra.mxu0 %v495
    %833 = vmatprep.subr.mxu0 %v503
    %834 = vmatpush1.msra.mxu0 %v502
    %835 = vmatprep.subr.mxu0 %v510
    %836 = vmatpush1.msra.mxu0 %v509
    %837 = vmatprep.subr.mxu0 %v517
    %838 = vmatpush1.msra.mxu0 %v516
    %839 = vmatprep.subr.mxu0 %v524
    %840 = vmatpush1.msra.mxu0 %v523
    %841 = vmatprep.subr.mxu0 %v531
    %842 = vmatpush1.msra.mxu0 %v530
    %843 = vmatprep.subr.mxu0 %v538
    %844 = vmatpush1.msra.mxu0 %v537
    %845 = vmatprep.subr.mxu0 %v545
    %846 = vmatpush1.msra.mxu0 %v544
    %847 = vmatprep.subr.mxu0 %v552
    %848 = vmatpush1.msra.mxu0 %v551
    %849 = vmatprep.subr.mxu0 %v559
    %850 = vmatpush1.msra.mxu0 %v558
    %851 = vmatprep.subr.mxu0 %v566
    %852 = vmatpush1.msra.mxu0 %v565
    %853 = vmatprep.subr.mxu0 %v573
    %854 = vmatpush1.msra.mxu0 %v572
    %855 = vmatprep.subr.mxu0 %v580
    %856 = vmatpush1.msra.mxu0 %v579
    %857 = vmatprep.subr.mxu0 %v587
    %858 = vmatpush1.msra.mxu0 %v586
    %859 = vmatprep.subr.mxu0 %v594
    %860 = vmatpush1.msra.mxu0 %v593
    %861 = vmatprep.subr.mxu0 %v601
    %862 = vmatpush1.msra.mxu0 %v600
    %863 = vmatprep.subr.mxu0 %v608
    %864 = vmatpush1.msra.mxu0 %v607
    %865 = vmatprep.mubr.f32.mxu0 %v375
    %866 = vmatmul.mubr.f32.gmra.mrb[0].mxu0 %v374
    %v867 = vpop.f32.mrb[0].mxu0
    %v868 = vadd.f32 %v631, %v867
    %v869 = vpop.f32.mrb[0].mxu0
    %v870 = vadd.f32 %v635, %v869
    %871 = vmatprep.mubr.f32.mxu0 %v377
    %872 = vmatmul.mubr.f32.gmra.mrb[0].mxu0 %v376
    %v873 = vpop.f32.mrb[0].mxu0
    %v874 = vadd.f32 %v631, %v873
    %v875 = vpop.f32.mrb[0].mxu0
    %v876 = vadd.f32 %v635, %v875
    %877 = vdwg.mxu0
    %878 = vmatprep.subr.mxu0 0.0
    %879 = vmatpush1.msra.mxu0 %v392
    %880 = vmatprep.subr.mxu0 0.0
    %881 = vmatpush1.msra.mxu0 %v399
    %882 = vmatprep.subr.mxu0 0.0
    %883 = vmatpush1.msra.mxu0 %v406
    %884 = vmatprep.subr.mxu0 0.0
    %885 = vmatpush1.msra.mxu0 %v413
    %886 = vmatprep.subr.mxu0 0.0
    %887 = vmatpush1.msra.mxu0 %v420
    %888 = vmatprep.subr.mxu0 0.0
    %889 = vmatpush1.msra.mxu0 %v427
    %890 = vmatprep.subr.mxu0 0.0
    %891 = vmatpush1.msra.mxu0 %v434
    %892 = vmatprep.subr.mxu0 0.0
    %893 = vmatpush1.msra.mxu0 %v441
    %894 = vmatprep.subr.mxu0 0.0
    %895 = vmatpush1.msra.mxu0 %v448
    %896 = vmatprep.subr.mxu0 0.0
    %897 = vmatpush1.msra.mxu0 %v455
    %898 = vmatprep.subr.mxu0 0.0
    %899 = vmatpush1.msra.mxu0 %v462
    %900 = vmatprep.subr.mxu0 0.0
    %901 = vmatpush1.msra.mxu0 %v469
    %902 = vmatprep.subr.mxu0 0.0
    %903 = vmatpush1.msra.mxu0 %v476
    %904 = vmatprep.subr.mxu0 0.0
    %905 = vmatpush1.msra.mxu0 %v483
    %906 = vmatprep.subr.mxu0 0.0
    %907 = vmatpush1.msra.mxu0 %v490
    %908 = vmatprep.subr.mxu0 0.0
    %909 = vmatpush1.msra.mxu0 %v497
    %910 = vmatprep.subr.mxu0 0.0
    %911 = vmatpush1.msra.mxu0 %v504
    %912 = vmatprep.subr.mxu0 0.0
    %913 = vmatpush1.msra.mxu0 %v511
    %914 = vmatprep.subr.mxu0 0.0
    %915 = vmatpush1.msra.mxu0 %v518
    %916 = vmatprep.subr.mxu0 0.0
    %917 = vmatpush1.msra.mxu0 %v525
    %918 = vmatprep.subr.mxu0 0.0
    %919 = vmatpush1.msra.mxu0 %v532
    %920 = vmatprep.subr.mxu0 0.0
    %921 = vmatpush1.msra.mxu0 %v539
    %922 = vmatprep.subr.mxu0 0.0
    %923 = vmatpush1.msra.mxu0 %v546
    %924 = vmatprep.subr.mxu0 0.0
    %925 = vmatpush1.msra.mxu0 %v553
    %926 = vmatprep.subr.mxu0 0.0
    %927 = vmatpush1.msra.mxu0 %v560
    %928 = vmatprep.subr.mxu0 0.0
    %929 = vmatpush1.msra.mxu0 %v567
    %930 = vmatprep.subr.mxu0 0.0
    %931 = vmatpush1.msra.mxu0 %v574
    %932 = vmatprep.subr.mxu0 0.0
    %933 = vmatpush1.msra.mxu0 %v581
    %934 = vmatprep.subr.mxu0 0.0
    %935 = vmatpush1.msra.mxu0 %v588
    %936 = vmatprep.subr.mxu0 0.0
    %937 = vmatpush1.msra.mxu0 %v595
    %938 = vmatprep.subr.mxu0 0.0
    %939 = vmatpush1.msra.mxu0 %v602
    %940 = vmatprep.subr.mxu0 0.0
    %941 = vmatpush1.msra.mxu0 %v609
    %942 = vmatprep.mubr.f32.mxu0 %v375
    %943 = vmatmul.mubr.f32.gmra.mrb[0].mxu0 %v374
    %v944 = vpop.f32.mrb[0].mxu0
    %v945 = vadd.f32 %v639, %v944
    %v946 = vpop.f32.mrb[0].mxu0
    %947 = vmatprep.mubr.f32.mxu0 %v377
    %948 = vmatmul.mubr.f32.gmra.mrb[0].mxu0 %v376
    %v949 = vpop.f32.mrb[0].mxu0
    %v950 = vadd.f32 %v639, %v949
    %v951 = vpop.f32.mrb[0].mxu0
    %952 = vdwg.mxu0
    %v953 = vld [vmem:[#allocation16] sm:$0xff]
    %v954 = vld [vmem:[#allocation17] sm:$0xff]
    %v955 = vadd.f32 %v714, %v720
    %v956 = vadd.f32 %v716, %v722
    %v957 = vadd.f32 %v791, %v797
    %v958 = vadd.f32 %v793, %v799
    %v959 = vadd.f32 %v868, %v874
    %v960 = vadd.f32 %v870, %v876
    %v961 = vadd.f32 %v945, %v950
    %v962 = vmul.f32 %v955, 0.5
    %v963 = vmul.f32 %v956, 0.5
    %v964 = vmul.f32 %v957, 0.5
    %v965 = vmul.f32 %v958, 0.5
    %v966 = vmul.f32 %v959, 0.5
    %v967 = vmul.f32 %v960, 0.5
    %v968 = vmul.f32 %v961, 0.5
    %v969 = vsub.f32 %v714, %v962
    %v970 = vsub.f32 %v716, %v963
    %v971 = vsub.f32 %v791, %v964
    %v972 = vsub.f32 %v793, %v965
    %v973 = vsub.f32 %v868, %v966
    %v974 = vsub.f32 %v870, %v967
    %v975 = vsub.f32 %v945, %v968
    %v976 = vmul.f32 %v969, %v969
    %v977 = vmul.f32 %v970, %v970
    %v978 = vmul.f32 %v971, %v971
    %v979 = vmul.f32 %v972, %v972
    %v980 = vmul.f32 %v973, %v973
    %v981 = vmul.f32 %v974, %v974
    %v982 = vmul.f32 %v975, %v975
    %v983 = vsub.f32 %v720, %v962
    %v984 = vsub.f32 %v722, %v963
    %v985 = vsub.f32 %v797, %v964
    %v986 = vsub.f32 %v799, %v965
    %v987 = vsub.f32 %v874, %v966
    %v988 = vsub.f32 %v876, %v967
    %v989 = vsub.f32 %v950, %v968
    %v990 = vmul.f32 %v983, %v983
    %v991 = vmul.f32 %v984, %v984
    %v992 = vmul.f32 %v985, %v985
    %v993 = vmul.f32 %v986, %v986
    %v994 = vmul.f32 %v987, %v987
    %v995 = vmul.f32 %v988, %v988
    %v996 = vmul.f32 %v989, %v989
    %v997 = vadd.f32 %v976, %v990
    %v998 = vadd.f32 %v977, %v991
    %v999 = vadd.f32 %v978, %v992
    %v1000 = vadd.f32 %v979, %v993
    %v1001 = vadd.f32 %v980, %v994
    %v1002 = vadd.f32 %v981, %v995
    %v1003 = vadd.f32 %v982, %v996
    %v1004 = vmul.f32 %v997, 0.5
    %v1005 = vmul.f32 %v998, 0.5
    %v1006 = vmul.f32 %v999, 0.5
    %v1007 = vmul.f32 %v1000, 0.5
    %v1008 = vmul.f32 %v1001, 0.5
    %v1009 = vmul.f32 %v1002, 0.5
    %v1010 = vmul.f32 %v1003, 0.5
    %v1011 = vadd.f32 %v1004, 1e-05
    %v1012 = vadd.f32 %v1005, 1e-05
    %v1013 = vadd.f32 %v1006, 1e-05
    %v1014 = vadd.f32 %v1007, 1e-05
    %v1015 = vadd.f32 %v1008, 1e-05
    %v1016 = vadd.f32 %v1009, 1e-05
    %v1017 = vadd.f32 %v1010, 1e-05
    %v1018 = vrsqrt.pop %v1011
    %v1019 = vrsqrt.pop %v1012
    %v1020 = vrsqrt.pop %v1013
    %v1021 = vrsqrt.pop %v1014
    %v1022 = vrsqrt.pop %v1015
    %v1023 = vrsqrt.pop %v1016
    %v1024 = vrsqrt.pop %v1017
    %v1026 = vlaneseq
    %v1027 = vshrl.u32 %v1026, 7
    %v1028 = vsub.s32 0, %v1027
    %v1029 = vrot.slane %v953, %v1028
    %v1030 = vlaneseq
    %v1031 = vshrl.u32 %v1030, 7
    %v1032 = vsub.s32 1, %v1031
    %v1033 = vrot.slane %v953, %v1032
    %v1034 = vlaneseq
    %v1035 = vshrl.u32 %v1034, 7
    %v1036 = vsub.s32 2, %v1035
    %v1037 = vrot.slane %v953, %v1036
    %v1038 = vlaneseq
    %v1039 = vshrl.u32 %v1038, 7
    %v1040 = vsub.s32 3, %v1039
    %v1041 = vrot.slane %v953, %v1040
    %v1042 = vlaneseq
    %v1043 = vshrl.u32 %v1042, 7
    %v1044 = vsub.s32 4, %v1043
    %v1045 = vrot.slane %v953, %v1044
    %v1046 = vlaneseq
    %v1047 = vshrl.u32 %v1046, 7
    %v1048 = vsub.s32 5, %v1047
    %v1049 = vrot.slane %v953, %v1048
    %v1050 = vlaneseq
    %v1051 = vshrl.u32 %v1050, 7
    %v1052 = vsub.s32 6, %v1051
    %v1053 = vrot.slane %v953, %v1052
    %v1061 = vmul.f32 %v1018, %v1029
    %v1062 = vmul.f32 %v1019, %v1033
    %v1063 = vmul.f32 %v1020, %v1037
    %v1064 = vmul.f32 %v1021, %v1041
    %v1065 = vmul.f32 %v1022, %v1045
    %v1066 = vmul.f32 %v1023, %v1049
    %v1067 = vmul.f32 %v1024, %v1053
    %v1068 = vmul.f32 %v962, %v1061
    %v1069 = vmul.f32 %v963, %v1062
    %v1070 = vmul.f32 %v964, %v1063
    %v1071 = vmul.f32 %v965, %v1064
    %v1072 = vmul.f32 %v966, %v1065
    %v1073 = vmul.f32 %v967, %v1066
    %v1074 = vmul.f32 %v968, %v1067
    %v1076 = vlaneseq
    %v1077 = vshrl.u32 %v1076, 7
    %v1078 = vsub.s32 0, %v1077
    %v1079 = vrot.slane %v954, %v1078
    %v1080 = vlaneseq
    %v1081 = vshrl.u32 %v1080, 7
    %v1082 = vsub.s32 1, %v1081
    %v1083 = vrot.slane %v954, %v1082
    %v1084 = vlaneseq
    %v1085 = vshrl.u32 %v1084, 7
    %v1086 = vsub.s32 2, %v1085
    %v1087 = vrot.slane %v954, %v1086
    %v1088 = vlaneseq
    %v1089 = vshrl.u32 %v1088, 7
    %v1090 = vsub.s32 3, %v1089
    %v1091 = vrot.slane %v954, %v1090
    %v1092 = vlaneseq
    %v1093 = vshrl.u32 %v1092, 7
    %v1094 = vsub.s32 4, %v1093
    %v1095 = vrot.slane %v954, %v1094
    %v1096 = vlaneseq
    %v1097 = vshrl.u32 %v1096, 7
    %v1098 = vsub.s32 5, %v1097
    %v1099 = vrot.slane %v954, %v1098
    %v1100 = vlaneseq
    %v1101 = vshrl.u32 %v1100, 7
    %v1102 = vsub.s32 6, %v1101
    %v1103 = vrot.slane %v954, %v1102
    %v1111 = vsub.f32 %v1079, %v1068
    %v1112 = vsub.f32 %v1083, %v1069
    %v1113 = vsub.f32 %v1087, %v1070
    %v1114 = vsub.f32 %v1091, %v1071
    %v1115 = vsub.f32 %v1095, %v1072
    %v1116 = vsub.f32 %v1099, %v1073
    %v1117 = vsub.f32 %v1103, %v1074
    %v1118 = vmul.f32 %v714, %v1061
    %v1119 = vmul.f32 %v716, %v1062
    %v1120 = vmul.f32 %v791, %v1063
    %v1121 = vmul.f32 %v793, %v1064
    %v1122 = vmul.f32 %v868, %v1065
    %v1123 = vmul.f32 %v870, %v1066
    %v1124 = vmul.f32 %v945, %v1067
    %v1125 = vadd.f32 %v1118, %v1111
    %v1126 = vadd.f32 %v1119, %v1112
    %v1127 = vadd.f32 %v1120, %v1113
    %v1128 = vadd.f32 %v1121, %v1114
    %v1129 = vadd.f32 %v1122, %v1115
    %v1130 = vadd.f32 %v1123, %v1116
    %v1131 = vadd.f32 %v1124, %v1117
    %v1132 = vmax.f32 %v1125, 0.0
    %v1133 = vmax.f32 %v1126, 0.0
    %v1134 = vmax.f32 %v1127, 0.0
    %v1135 = vmax.f32 %v1128, 0.0
    %v1136 = vmax.f32 %v1129, 0.0
    %v1137 = vmax.f32 %v1130, 0.0
    %v1138 = vmax.f32 %v1131, 0.0
    %v1139 = vmul.f32 %v720, %v1061
    %v1140 = vmul.f32 %v722, %v1062
    %v1141 = vmul.f32 %v797, %v1063
    %v1142 = vmul.f32 %v799, %v1064
    %v1143 = vmul.f32 %v874, %v1065
    %v1144 = vmul.f32 %v876, %v1066
    %v1145 = vmul.f32 %v950, %v1067
    %v1146 = vadd.f32 %v1139, %v1111
    %v1147 = vadd.f32 %v1140, %v1112
    %v1148 = vadd.f32 %v1141, %v1113
    %v1149 = vadd.f32 %v1142, %v1114
    %v1150 = vadd.f32 %v1143, %v1115
    %v1151 = vadd.f32 %v1144, %v1116
    %v1152 = vadd.f32 %v1145, %v1117
    %v1153 = vmax.f32 %v1146, 0.0
    %v1154 = vmax.f32 %v1147, 0.0
    %v1155 = vmax.f32 %v1148, 0.0
    %v1156 = vmax.f32 %v1149, 0.0
    %v1157 = vmax.f32 %v1150, 0.0
    %v1158 = vmax.f32 %v1151, 0.0
    %v1159 = vmax.f32 %v1152, 0.0
    %v1160 = vld [vmem:[#allocation19] sm:$0xff]
    %v1161 = vld [vmem:[#allocation19 + $0x8] sm:$0xff]
    %v1162 = vld [vmem:[#allocation19 + $0x10] sm:$0xff]
    %v1163 = vld [vmem:[#allocation19 + $0x18] sm:$0xff]
    %v1164 = vld [vmem:[#allocation19 + $0x20] sm:$0xff]
    %v1165 = vld [vmem:[#allocation19 + $0x28] sm:$0xff]
    %v1166 = vld [vmem:[#allocation19 + $0x30] sm:$0xff]
    %v1167 = vld [vmem:[#allocation19 + $0x38] sm:$0xff]
    %v1168 = vld [vmem:[#allocation19 + $0x40] sm:$0xff]
    %v1169 = vld [vmem:[#allocation19 + $0x48] sm:$0xff]
    %v1170 = vld [vmem:[#allocation19 + $0x50] sm:$0xff]
    %v1171 = vld [vmem:[#allocation19 + $0x58] sm:$0xff]
    %v1172 = vld [vmem:[#allocation19 + $0x60] sm:$0xff]
    %v1173 = vld [vmem:[#allocation19 + $0x68] sm:$0xff]
    %v1174 = vld [vmem:[#allocation19 + $0x70] sm:$0xff]
    %v1175 = vld [vmem:[#allocation19 + $0x78] sm:$0xff]
    %v1176 = vld [vmem:[#allocation19 + $0x80] sm:$0xff]
    %v1177 = vld [vmem:[#allocation19 + $0x88] sm:$0xff]
    %v1178 = vld [vmem:[#allocation19 + $0x90] sm:$0xff]
    %v1179 = vld [vmem:[#allocation19 + $0x98] sm:$0xff]
    %v1180 = vld [vmem:[#allocation19 + $0xa0] sm:$0xff]
    %v1181 = vld [vmem:[#allocation19 + $0xa8] sm:$0xff]
    %v1182 = vld [vmem:[#allocation19 + $0xb0] sm:$0xff]
    %v1183 = vld [vmem:[#allocation19 + $0xb8] sm:$0xff]
    %v1184 = vld [vmem:[#allocation19 + $0xc0] sm:$0xff]
    %v1185 = vld [vmem:[#allocation19 + $0xc8] sm:$0xff]
    %v1186 = vld [vmem:[#allocation19 + $0xd0] sm:$0xff]
    %v1187 = vld [vmem:[#allocation19 + $0xd8] sm:$0xff]
    %v1188 = vld [vmem:[#allocation19 + $0xe0] sm:$0xff]
    %v1189 = vld [vmem:[#allocation19 + $0xe8] sm:$0xff]
    %v1190 = vld [vmem:[#allocation19 + $0xf0] sm:$0xff]
    %v1191 = vld [vmem:[#allocation19 + $0xf8] sm:$0xff]
    %v1192 = vld [vmem:[#allocation19 + $0x100] sm:$0xff]
    %v1193 = vld [vmem:[#allocation19 + $0x108] sm:$0xff]
    %v1194 = vld [vmem:[#allocation19 + $0x110] sm:$0xff]
    %v1195 = vld [vmem:[#allocation19 + $0x118] sm:$0xff]
    %v1196 = vld [vmem:[#allocation19 + $0x120] sm:$0xff]
    %v1197 = vld [vmem:[#allocation19 + $0x128] sm:$0xff]
    %v1198 = vld [vmem:[#allocation19 + $0x130] sm:$0xff]
    %v1199 = vld [vmem:[#allocation19 + $0x138] sm:$0xff]
    %v1200 = vld [vmem:[#allocation19 + $0x140] sm:$0xff]
    %v1201 = vld [vmem:[#allocation19 + $0x148] sm:$0xff]
    %v1202 = vld [vmem:[#allocation19 + $0x150] sm:$0xff]
    %v1203 = vld [vmem:[#allocation19 + $0x158] sm:$0xff]
    %v1204 = vld [vmem:[#allocation19 + $0x160] sm:$0xff]
    %v1205 = vld [vmem:[#allocation19 + $0x168] sm:$0xff]
    %v1206 = vld [vmem:[#allocation19 + $0x170] sm:$0xff]
    %v1207 = vld [vmem:[#allocation19 + $0x178] sm:$0xff]
    %v1208 = vld [vmem:[#allocation19 + $0x180] sm:$0xff]
    %v1209 = vld [vmem:[#allocation19 + $0x188] sm:$0xff]
    %v1210 = vld [vmem:[#allocation19 + $0x190] sm:$0xff]
    %v1211 = vld [vmem:[#allocation19 + $0x198] sm:$0xff]
    %v1212 = vld [vmem:[#allocation19 + $0x1a0] sm:$0xff]
    %v1213 = vld [vmem:[#allocation19 + $0x1a8] sm:$0xff]
    %v1214 = vld [vmem:[#allocation19 + $0x1b0] sm:$0xff]
    %v1215 = vld [vmem:[#allocation19 + $0x1b8] sm:$0xff]
    %v1216 = vld [vmem:[#allocation19 + $0x1c0] sm:$0xff]
    %v1217 = vld [vmem:[#allocation19 + $0x1c8] sm:$0xff]
    %v1218 = vld [vmem:[#allocation19 + $0x1d0] sm:$0xff]
    %v1219 = vld [vmem:[#allocation19 + $0x1d8] sm:$0xff]
    %v1220 = vld [vmem:[#allocation19 + $0x1e0] sm:$0xff]
    %v1221 = vld [vmem:[#allocation19 + $0x1e8] sm:$0xff]
    %v1222 = vld [vmem:[#allocation19 + $0x1f0] sm:$0xff]
    %v1223 = vld [vmem:[#allocation19 + $0x1f8] sm:$0xff]
    %v1224 = vld [vmem:[#allocation19 + $0x200] sm:$0xff]
    %v1225 = vld [vmem:[#allocation19 + $0x208] sm:$0xff]
    %v1226 = vld [vmem:[#allocation19 + $0x210] sm:$0xff]
    %v1227 = vld [vmem:[#allocation19 + $0x218] sm:$0xff]
    %v1228 = vld [vmem:[#allocation19 + $0x220] sm:$0xff]
    %v1229 = vld [vmem:[#allocation19 + $0x228] sm:$0xff]
    %v1230 = vld [vmem:[#allocation19 + $0x230] sm:$0xff]
    %v1231 = vld [vmem:[#allocation19 + $0x238] sm:$0xff]
    %v1232 = vld [vmem:[#allocation19 + $0x240] sm:$0xff]
    %v1233 = vld [vmem:[#allocation19 + $0x248] sm:$0xff]
    %v1234 = vld [vmem:[#allocation19 + $0x250] sm:$0xff]
    %v1235 = vld [vmem:[#allocation19 + $0x258] sm:$0xff]
    %v1236 = vld [vmem:[#allocation19 + $0x260] sm:$0xff]
    %v1237 = vld [vmem:[#allocation19 + $0x268] sm:$0xff]
    %v1238 = vld [vmem:[#allocation19 + $0x270] sm:$0xff]
    %v1239 = vld [vmem:[#allocation19 + $0x278] sm:$0xff]
    %v1240 = vld [vmem:[#allocation19 + $0x280] sm:$0xff]
    %v1241 = vld [vmem:[#allocation19 + $0x288] sm:$0xff]
    %v1242 = vld [vmem:[#allocation19 + $0x290] sm:$0xff]
    %v1243 = vld [vmem:[#allocation19 + $0x298] sm:$0xff]
    %v1244 = vld [vmem:[#allocation19 + $0x2a0] sm:$0xff]
    %v1245 = vld [vmem:[#allocation19 + $0x2a8] sm:$0xff]
    %v1246 = vld [vmem:[#allocation19 + $0x2b0] sm:$0xff]
    %v1247 = vld [vmem:[#allocation19 + $0x2b8] sm:$0xff]
    %v1248 = vld [vmem:[#allocation19 + $0x2c0] sm:$0xff]
    %v1249 = vld [vmem:[#allocation19 + $0x2c8] sm:$0xff]
    %v1250 = vld [vmem:[#allocation19 + $0x2d0] sm:$0xff]
    %v1251 = vld [vmem:[#allocation19 + $0x2d8] sm:$0xff]
    %v1252 = vld [vmem:[#allocation19 + $0x2e0] sm:$0xff]
    %v1253 = vld [vmem:[#allocation19 + $0x2e8] sm:$0xff]
    %v1254 = vld [vmem:[#allocation19 + $0x2f0] sm:$0xff]
    %v1255 = vld [vmem:[#allocation19 + $0x2f8] sm:$0xff]
    %v1256 = vld [vmem:[#allocation19 + $0x300] sm:$0xff]
    %v1257 = vld [vmem:[#allocation19 + $0x308] sm:$0xff]
    %v1258 = vld [vmem:[#allocation19 + $0x310] sm:$0xff]
    %v1259 = vld [vmem:[#allocation19 + $0x318] sm:$0xff]
    %v1260 = vld [vmem:[#allocation19 + $0x320] sm:$0xff]
    %v1261 = vld [vmem:[#allocation19 + $0x328] sm:$0xff]
    %v1262 = vld [vmem:[#allocation19 + $0x330] sm:$0xff]
    %v1263 = vld [vmem:[#allocation19 + $0x338] sm:$0xff]
    %v1264 = vld [vmem:[#allocation19 + $0x340] sm:$0xff]
    %v1265 = vld [vmem:[#allocation19 + $0x348] sm:$0xff]
    %v1266 = vld [vmem:[#allocation19 + $0x350] sm:$0xff]
    %v1267 = vld [vmem:[#allocation19 + $0x358] sm:$0xff]
    %v1268 = vld [vmem:[#allocation19 + $0x360] sm:$0xff]
    %v1269 = vld [vmem:[#allocation19 + $0x368] sm:$0xff]
    %v1270 = vld [vmem:[#allocation19 + $0x370] sm:$0xff]
    %v1271 = vld [vmem:[#allocation19 + $0x378] sm:$0xff]
    %v1272 = vld [vmem:[#allocation19 + $0x380] sm:$0xff]
    %v1273 = vld [vmem:[#allocation19 + $0x388] sm:$0xff]
    %v1274 = vld [vmem:[#allocation19 + $0x390] sm:$0xff]
    %v1275 = vld [vmem:[#allocation19 + $0x398] sm:$0xff]
    %v1276 = vld [vmem:[#allocation19 + $0x3a0] sm:$0xff]
    %v1277 = vld [vmem:[#allocation19 + $0x3a8] sm:$0xff]
    %v1278 = vld [vmem:[#allocation19 + $0x3b0] sm:$0xff]
    %v1279 = vld [vmem:[#allocation19 + $0x3b8] sm:$0xff]
    %v1280 = vld [vmem:[#allocation19 + $0x3c0] sm:$0xff]
    %v1281 = vld [vmem:[#allocation19 + $0x3c8] sm:$0xff]
    %v1282 = vld [vmem:[#allocation19 + $0x3d0] sm:$0xff]
    %v1283 = vld [vmem:[#allocation19 + $0x3d8] sm:$0xff]
    %v1284 = vld [vmem:[#allocation19 + $0x3e0] sm:$0xff]
    %v1285 = vld [vmem:[#allocation19 + $0x3e8] sm:$0xff]
    %v1286 = vld [vmem:[#allocation19 + $0x3f0] sm:$0xff]
    %v1287 = vld [vmem:[#allocation19 + $0x3f8] sm:$0xff]
    %v1288 = vld [vmem:[#allocation19 + $0x400] sm:$0xff]
    %v1289 = vld [vmem:[#allocation19 + $0x408] sm:$0xff]
    %v1290 = vld [vmem:[#allocation19 + $0x410] sm:$0xff]
    %v1291 = vld [vmem:[#allocation19 + $0x418] sm:$0xff]
    %v1292 = vld [vmem:[#allocation19 + $0x420] sm:$0xff]
    %v1293 = vld [vmem:[#allocation19 + $0x428] sm:$0xff]
    %v1294 = vld [vmem:[#allocation19 + $0x430] sm:$0xff]
    %v1295 = vld [vmem:[#allocation19 + $0x438] sm:$0xff]
    %v1296 = vld [vmem:[#allocation19 + $0x440] sm:$0xff]
    %v1297 = vld [vmem:[#allocation19 + $0x448] sm:$0xff]
    %v1298 = vld [vmem:[#allocation19 + $0x450] sm:$0xff]
    %v1299 = vld [vmem:[#allocation19 + $0x458] sm:$0xff]
    %v1300 = vld [vmem:[#allocation19 + $0x460] sm:$0xff]
    %v1301 = vld [vmem:[#allocation19 + $0x468] sm:$0xff]
    %v1302 = vld [vmem:[#allocation19 + $0x470] sm:$0xff]
    %v1303 = vld [vmem:[#allocation19 + $0x478] sm:$0xff]
    %v1304 = vld [vmem:[#allocation19 + $0x480] sm:$0xff]
    %v1305 = vld [vmem:[#allocation19 + $0x488] sm:$0xff]
    %v1306 = vld [vmem:[#allocation19 + $0x490] sm:$0xff]
    %v1307 = vld [vmem:[#allocation19 + $0x498] sm:$0xff]
    %v1308 = vld [vmem:[#allocation19 + $0x4a0] sm:$0xff]
    %v1309 = vld [vmem:[#allocation19 + $0x4a8] sm:$0xff]
    %v1310 = vld [vmem:[#allocation19 + $0x4b0] sm:$0xff]
    %v1311 = vld [vmem:[#allocation19 + $0x4b8] sm:$0xff]
    %v1312 = vld [vmem:[#allocation19 + $0x4c0] sm:$0xff]
    %v1313 = vld [vmem:[#allocation19 + $0x4c8] sm:$0xff]
    %v1314 = vld [vmem:[#allocation19 + $0x4d0] sm:$0xff]
    %v1315 = vld [vmem:[#allocation19 + $0x4d8] sm:$0xff]
    %v1316 = vld [vmem:[#allocation19 + $0x4e0] sm:$0xff]
    %v1317 = vld [vmem:[#allocation19 + $0x4e8] sm:$0xff]
    %v1318 = vld [vmem:[#allocation19 + $0x4f0] sm:$0xff]
    %v1319 = vld [vmem:[#allocation19 + $0x4f8] sm:$0xff]
    %v1320 = vld [vmem:[#allocation19 + $0x500] sm:$0xff]
    %v1321 = vld [vmem:[#allocation19 + $0x508] sm:$0xff]
    %v1322 = vld [vmem:[#allocation19 + $0x510] sm:$0xff]
    %v1323 = vld [vmem:[#allocation19 + $0x518] sm:$0xff]
    %v1324 = vld [vmem:[#allocation19 + $0x520] sm:$0xff]
    %v1325 = vld [vmem:[#allocation19 + $0x528] sm:$0xff]
    %v1326 = vld [vmem:[#allocation19 + $0x530] sm:$0xff]
    %v1327 = vld [vmem:[#allocation19 + $0x538] sm:$0xff]
    %v1328 = vld [vmem:[#allocation19 + $0x540] sm:$0xff]
    %v1329 = vld [vmem:[#allocation19 + $0x548] sm:$0xff]
    %v1330 = vld [vmem:[#allocation19 + $0x550] sm:$0xff]
    %v1331 = vld [vmem:[#allocation19 + $0x558] sm:$0xff]
    %v1332 = vld [vmem:[#allocation19 + $0x560] sm:$0xff]
    %v1333 = vld [vmem:[#allocation19 + $0x568] sm:$0xff]
    %v1334 = vld [vmem:[#allocation19 + $0x570] sm:$0xff]
    %v1335 = vld [vmem:[#allocation19 + $0x578] sm:$0xff]
    %v1336 = vld [vmem:[#allocation19 + $0x580] sm:$0xff]
    %v1337 = vld [vmem:[#allocation19 + $0x588] sm:$0xff]
    %v1338 = vld [vmem:[#allocation19 + $0x590] sm:$0xff]
    %v1339 = vld [vmem:[#allocation19 + $0x598] sm:$0xff]
    %v1340 = vld [vmem:[#allocation19 + $0x5a0] sm:$0xff]
    %v1341 = vld [vmem:[#allocation19 + $0x5a8] sm:$0xff]
    %v1342 = vld [vmem:[#allocation19 + $0x5b0] sm:$0xff]
    %v1343 = vld [vmem:[#allocation19 + $0x5b8] sm:$0xff]
    %v1344 = vld [vmem:[#allocation19 + $0x5c0] sm:$0xff]
    %v1345 = vld [vmem:[#allocation19 + $0x5c8] sm:$0xff]
    %v1346 = vld [vmem:[#allocation19 + $0x5d0] sm:$0xff]
    %v1347 = vld [vmem:[#allocation19 + $0x5d8] sm:$0xff]
    %v1348 = vld [vmem:[#allocation19 + $0x5e0] sm:$0xff]
    %v1349 = vld [vmem:[#allocation19 + $0x5e8] sm:$0xff]
    %v1350 = vld [vmem:[#allocation19 + $0x5f0] sm:$0xff]
    %v1351 = vld [vmem:[#allocation19 + $0x5f8] sm:$0xff]
    %v1352 = vld [vmem:[#allocation19 + $0x600] sm:$0xff]
    %v1353 = vld [vmem:[#allocation19 + $0x608] sm:$0xff]
    %v1354 = vld [vmem:[#allocation19 + $0x610] sm:$0xff]
    %v1355 = vld [vmem:[#allocation19 + $0x618] sm:$0xff]
    %v1356 = vld [vmem:[#allocation19 + $0x620] sm:$0xff]
    %v1357 = vld [vmem:[#allocation19 + $0x628] sm:$0xff]
    %v1358 = vld [vmem:[#allocation19 + $0x630] sm:$0xff]
    %v1359 = vld [vmem:[#allocation19 + $0x638] sm:$0xff]
    %v1360 = vld [vmem:[#allocation19 + $0x640] sm:$0xff]
    %v1361 = vld [vmem:[#allocation19 + $0x648] sm:$0xff]
    %v1362 = vld [vmem:[#allocation19 + $0x650] sm:$0xff]
    %v1363 = vld [vmem:[#allocation19 + $0x658] sm:$0xff]
    %v1364 = vld [vmem:[#allocation19 + $0x660] sm:$0xff]
    %v1365 = vld [vmem:[#allocation19 + $0x668] sm:$0xff]
    %v1366 = vld [vmem:[#allocation19 + $0x670] sm:$0xff]
    %v1367 = vld [vmem:[#allocation19 + $0x678] sm:$0xff]
    %v1368 = vld [vmem:[#allocation19 + $0x680] sm:$0xff]
    %v1369 = vld [vmem:[#allocation19 + $0x688] sm:$0xff]
    %v1370 = vld [vmem:[#allocation19 + $0x690] sm:$0xff]
    %v1371 = vld [vmem:[#allocation19 + $0x698] sm:$0xff]
    %v1372 = vld [vmem:[#allocation19 + $0x6a0] sm:$0xff]
    %v1373 = vld [vmem:[#allocation19 + $0x6a8] sm:$0xff]
    %v1374 = vld [vmem:[#allocation19 + $0x6b0] sm:$0xff]
    %v1375 = vld [vmem:[#allocation19 + $0x6b8] sm:$0xff]
    %v1376 = vld [vmem:[#allocation19 + $0x6c0] sm:$0xff]
    %v1377 = vld [vmem:[#allocation19 + $0x6c8] sm:$0xff]
    %v1378 = vld [vmem:[#allocation19 + $0x6d0] sm:$0xff]
    %v1379 = vld [vmem:[#allocation19 + $0x6d8] sm:$0xff]
    %v1380 = vld [vmem:[#allocation19 + $0x6e0] sm:$0xff]
    %v1381 = vld [vmem:[#allocation19 + $0x6e8] sm:$0xff]
    %v1382 = vld [vmem:[#allocation19 + $0x6f0] sm:$0xff]
    %v1383 = vld [vmem:[#allocation19 + $0x6f8] sm:$0xff]
    %v1384 = vld [vmem:[#allocation19 + $0x700] sm:$0xff]
    %v1385 = vld [vmem:[#allocation19 + $0x708] sm:$0xff]
    %v1386 = vld [vmem:[#allocation19 + $0x710] sm:$0xff]
    %v1387 = vld [vmem:[#allocation19 + $0x718] sm:$0xff]
    %v1388 = vld [vmem:[#allocation19 + $0x720] sm:$0xff]
    %v1389 = vld [vmem:[#allocation19 + $0x728] sm:$0xff]
    %v1390 = vld [vmem:[#allocation19 + $0x730] sm:$0xff]
    %v1391 = vld [vmem:[#allocation19 + $0x738] sm:$0xff]
    %v1392 = vld [vmem:[#allocation19 + $0x740] sm:$0xff]
    %v1393 = vld [vmem:[#allocation19 + $0x748] sm:$0xff]
    %v1394 = vld [vmem:[#allocation19 + $0x750] sm:$0xff]
    %v1395 = vld [vmem:[#allocation19 + $0x758] sm:$0xff]
    %v1396 = vld [vmem:[#allocation19 + $0x760] sm:$0xff]
    %v1397 = vld [vmem:[#allocation19 + $0x768] sm:$0xff]
    %v1398 = vld [vmem:[#allocation19 + $0x770] sm:$0xff]
    %v1399 = vld [vmem:[#allocation19 + $0x778] sm:$0xff]
    %v1400 = vld [vmem:[#allocation19 + $0x780] sm:$0xff]
    %v1401 = vld [vmem:[#allocation19 + $0x788] sm:$0xff]
    %v1402 = vld [vmem:[#allocation19 + $0x790] sm:$0xff]
    %v1403 = vld [vmem:[#allocation19 + $0x798] sm:$0xff]
    %v1404 = vld [vmem:[#allocation19 + $0x7a0] sm:$0xff]
    %v1405 = vld [vmem:[#allocation19 + $0x7a8] sm:$0xff]
    %v1406 = vld [vmem:[#allocation19 + $0x7b0] sm:$0xff]
    %v1407 = vld [vmem:[#allocation19 + $0x7b8] sm:$0xff]
    %v1408 = vld [vmem:[#allocation19 + $0x7c0] sm:$0xff]
    %v1409 = vld [vmem:[#allocation19 + $0x7c8] sm:$0xff]
    %v1410 = vld [vmem:[#allocation19 + $0x7d0] sm:$0xff]
    %v1411 = vld [vmem:[#allocation19 + $0x7d8] sm:$0xff]
    %v1412 = vld [vmem:[#allocation19 + $0x7e0] sm:$0xff]
    %v1413 = vld [vmem:[#allocation19 + $0x7e8] sm:$0xff]
    %v1414 = vld [vmem:[#allocation19 + $0x7f0] sm:$0xff]
    %v1415 = vld [vmem:[#allocation19 + $0x7f8] sm:$0xff]
    %v1416 = vld [vmem:[#allocation19 + $0x800] sm:$0xff]
    %v1417 = vld [vmem:[#allocation19 + $0x808] sm:$0xff]
    %v1418 = vld [vmem:[#allocation19 + $0x810] sm:$0xff]
    %v1419 = vld [vmem:[#allocation19 + $0x818] sm:$0xff]
    %v1420 = vld [vmem:[#allocation19 + $0x820] sm:$0xff]
    %v1421 = vld [vmem:[#allocation19 + $0x828] sm:$0xff]
    %v1422 = vld [vmem:[#allocation19 + $0x830] sm:$0xff]
    %v1423 = vld [vmem:[#allocation19 + $0x838] sm:$0xff]
    %v1424 = vld [vmem:[#allocation19 + $0x840] sm:$0xff]
    %v1425 = vld [vmem:[#allocation19 + $0x848] sm:$0xff]
    %v1426 = vld [vmem:[#allocation19 + $0x850] sm:$0xff]
    %v1427 = vld [vmem:[#allocation19 + $0x858] sm:$0xff]
    %v1428 = vld [vmem:[#allocation19 + $0x860] sm:$0xff]
    %v1429 = vld [vmem:[#allocation19 + $0x868] sm:$0xff]
    %v1430 = vld [vmem:[#allocation19 + $0x870] sm:$0xff]
    %v1431 = vld [vmem:[#allocation19 + $0x878] sm:$0xff]
    %v1432 = vld [vmem:[#allocation19 + $0x880] sm:$0xff]
    %v1433 = vld [vmem:[#allocation19 + $0x888] sm:$0xff]
    %v1434 = vld [vmem:[#allocation19 + $0x890] sm:$0xff]
    %v1435 = vld [vmem:[#allocation19 + $0x898] sm:$0xff]
    %v1436 = vld [vmem:[#allocation19 + $0x8a0] sm:$0xff]
    %v1437 = vld [vmem:[#allocation19 + $0x8a8] sm:$0xff]
    %v1438 = vld [vmem:[#allocation19 + $0x8b0] sm:$0xff]
    %v1439 = vld [vmem:[#allocation19 + $0x8b8] sm:$0xff]
    %v1440 = vld [vmem:[#allocation19 + $0x8c0] sm:$0xff]
    %v1441 = vld [vmem:[#allocation19 + $0x8c8] sm:$0xff]
    %v1442 = vld [vmem:[#allocation19 + $0x8d0] sm:$0xff]
    %v1443 = vld [vmem:[#allocation19 + $0x8d8] sm:$0xff]
    %v1444 = vld [vmem:[#allocation19 + $0x8e0] sm:$0xff]
    %v1445 = vld [vmem:[#allocation19 + $0x8e8] sm:$0xff]
    %v1446 = vld [vmem:[#allocation19 + $0x8f0] sm:$0xff]
    %v1447 = vld [vmem:[#allocation19 + $0x8f8] sm:$0xff]
    %v1448 = vld [vmem:[#allocation19 + $0x900] sm:$0xff]
    %v1449 = vld [vmem:[#allocation19 + $0x908] sm:$0xff]
    %v1450 = vld [vmem:[#allocation19 + $0x910] sm:$0xff]
    %v1451 = vld [vmem:[#allocation19 + $0x918] sm:$0xff]
    %v1452 = vld [vmem:[#allocation19 + $0x920] sm:$0xff]
    %v1453 = vld [vmem:[#allocation19 + $0x928] sm:$0xff]
    %v1454 = vld [vmem:[#allocation19 + $0x930] sm:$0xff]
    %v1455 = vld [vmem:[#allocation19 + $0x938] sm:$0xff]
    %v1456 = vld [vmem:[#allocation19 + $0x940] sm:$0xff]
    %v1457 = vld [vmem:[#allocation19 + $0x948] sm:$0xff]
    %v1458 = vld [vmem:[#allocation19 + $0x950] sm:$0xff]
    %v1459 = vld [vmem:[#allocation19 + $0x958] sm:$0xff]
    %v1460 = vld [vmem:[#allocation19 + $0x960] sm:$0xff]
    %v1461 = vld [vmem:[#allocation19 + $0x968] sm:$0xff]
    %v1462 = vld [vmem:[#allocation19 + $0x970] sm:$0xff]
    %v1463 = vld [vmem:[#allocation19 + $0x978] sm:$0xff]
    %v1464 = vld [vmem:[#allocation19 + $0x980] sm:$0xff]
    %v1465 = vld [vmem:[#allocation19 + $0x988] sm:$0xff]
    %v1466 = vld [vmem:[#allocation19 + $0x990] sm:$0xff]
    %v1467 = vld [vmem:[#allocation19 + $0x998] sm:$0xff]
    %v1468 = vld [vmem:[#allocation19 + $0x9a0] sm:$0xff]
    %v1469 = vld [vmem:[#allocation19 + $0x9a8] sm:$0xff]
    %v1470 = vld [vmem:[#allocation19 + $0x9b0] sm:$0xff]
    %v1471 = vld [vmem:[#allocation19 + $0x9b8] sm:$0xff]
    %v1472 = vld [vmem:[#allocation19 + $0x9c0] sm:$0xff]
    %v1473 = vld [vmem:[#allocation19 + $0x9c8] sm:$0xff]
    %v1474 = vld [vmem:[#allocation19 + $0x9d0] sm:$0xff]
    %v1475 = vld [vmem:[#allocation19 + $0x9d8] sm:$0xff]
    %v1476 = vld [vmem:[#allocation19 + $0x9e0] sm:$0xff]
    %v1477 = vld [vmem:[#allocation19 + $0x9e8] sm:$0xff]
    %v1478 = vld [vmem:[#allocation19 + $0x9f0] sm:$0xff]
    %v1479 = vld [vmem:[#allocation19 + $0x9f8] sm:$0xff]
    %v1480 = vld [vmem:[#allocation19 + $0xa00] sm:$0xff]
    %v1481 = vld [vmem:[#allocation19 + $0xa08] sm:$0xff]
    %v1482 = vld [vmem:[#allocation19 + $0xa10] sm:$0xff]
    %v1483 = vld [vmem:[#allocation19 + $0xa18] sm:$0xff]
    %v1484 = vld [vmem:[#allocation19 + $0xa20] sm:$0xff]
    %v1485 = vld [vmem:[#allocation19 + $0xa28] sm:$0xff]
    %v1486 = vld [vmem:[#allocation19 + $0xa30] sm:$0xff]
    %v1487 = vld [vmem:[#allocation19 + $0xa38] sm:$0xff]
    %v1488 = vld [vmem:[#allocation19 + $0xa40] sm:$0xff]
    %v1489 = vld [vmem:[#allocation19 + $0xa48] sm:$0xff]
    %v1490 = vld [vmem:[#allocation19 + $0xa50] sm:$0xff]
    %v1491 = vld [vmem:[#allocation19 + $0xa58] sm:$0xff]
    %v1492 = vld [vmem:[#allocation19 + $0xa60] sm:$0xff]
    %v1493 = vld [vmem:[#allocation19 + $0xa68] sm:$0xff]
    %v1494 = vld [vmem:[#allocation19 + $0xa70] sm:$0xff]
    %v1495 = vld [vmem:[#allocation19 + $0xa78] sm:$0xff]
    %v1496 = vld [vmem:[#allocation19 + $0xa80] sm:$0xff]
    %v1497 = vld [vmem:[#allocation19 + $0xa88] sm:$0xff]
    %v1498 = vld [vmem:[#allocation19 + $0xa90] sm:$0xff]
    %v1499 = vld [vmem:[#allocation19 + $0xa98] sm:$0xff]
    %v1500 = vld [vmem:[#allocation19 + $0xaa0] sm:$0xff]
    %v1501 = vld [vmem:[#allocation19 + $0xaa8] sm:$0xff]
    %v1502 = vld [vmem:[#allocation19 + $0xab0] sm:$0xff]
    %v1503 = vld [vmem:[#allocation19 + $0xab8] sm:$0xff]
    %v1504 = vld [vmem:[#allocation19 + $0xac0] sm:$0xff]
    %v1505 = vld [vmem:[#allocation19 + $0xac8] sm:$0xff]
    %v1506 = vld [vmem:[#allocation19 + $0xad0] sm:$0xff]
    %v1507 = vld [vmem:[#allocation19 + $0xad8] sm:$0xff]
    %v1508 = vld [vmem:[#allocation19 + $0xae0] sm:$0xff]
    %v1509 = vld [vmem:[#allocation19 + $0xae8] sm:$0xff]
    %v1510 = vld [vmem:[#allocation19 + $0xaf0] sm:$0xff]
    %v1511 = vld [vmem:[#allocation19 + $0xaf8] sm:$0xff]
    %v1512 = vld [vmem:[#allocation19 + $0xb00] sm:$0xff]
    %v1513 = vld [vmem:[#allocation19 + $0xb08] sm:$0xff]
    %v1514 = vld [vmem:[#allocation19 + $0xb10] sm:$0xff]
    %v1515 = vld [vmem:[#allocation19 + $0xb18] sm:$0xff]
    %v1516 = vld [vmem:[#allocation19 + $0xb20] sm:$0xff]
    %v1517 = vld [vmem:[#allocation19 + $0xb28] sm:$0xff]
    %v1518 = vld [vmem:[#allocation19 + $0xb30] sm:$0xff]
    %v1519 = vld [vmem:[#allocation19 + $0xb38] sm:$0xff]
    %v1520 = vld [vmem:[#allocation19 + $0xb40] sm:$0xff]
    %v1521 = vld [vmem:[#allocation19 + $0xb48] sm:$0xff]
    %v1522 = vld [vmem:[#allocation19 + $0xb50] sm:$0xff]
    %v1523 = vld [vmem:[#allocation19 + $0xb58] sm:$0xff]
    %v1524 = vld [vmem:[#allocation19 + $0xb60] sm:$0xff]
    %v1525 = vld [vmem:[#allocation19 + $0xb68] sm:$0xff]
    %v1526 = vld [vmem:[#allocation19 + $0xb70] sm:$0xff]
    %v1527 = vld [vmem:[#allocation19 + $0xb78] sm:$0xff]
    %v1528 = vld [vmem:[#allocation19 + $0xb80] sm:$0xff]
    %v1529 = vld [vmem:[#allocation19 + $0xb88] sm:$0xff]
    %v1530 = vld [vmem:[#allocation19 + $0xb90] sm:$0xff]
    %v1531 = vld [vmem:[#allocation19 + $0xb98] sm:$0xff]
    %v1532 = vld [vmem:[#allocation19 + $0xba0] sm:$0xff]
    %v1533 = vld [vmem:[#allocation19 + $0xba8] sm:$0xff]
    %v1534 = vld [vmem:[#allocation19 + $0xbb0] sm:$0xff]
    %v1535 = vld [vmem:[#allocation19 + $0xbb8] sm:$0xff]
    %v1536 = vld [vmem:[#allocation19 + $0xbc0] sm:$0xff]
    %v1537 = vld [vmem:[#allocation19 + $0xbc8] sm:$0xff]
    %v1538 = vld [vmem:[#allocation19 + $0xbd0] sm:$0xff]
    %v1539 = vld [vmem:[#allocation19 + $0xbd8] sm:$0xff]
    %v1540 = vld [vmem:[#allocation19 + $0xbe0] sm:$0xff]
    %v1541 = vld [vmem:[#allocation19 + $0xbe8] sm:$0xff]
    %v1542 = vld [vmem:[#allocation19 + $0xbf0] sm:$0xff]
    %v1543 = vld [vmem:[#allocation19 + $0xbf8] sm:$0xff]
    %v1544 = vld [vmem:[#allocation19 + $0xc00] sm:$0xff]
    %v1545 = vld [vmem:[#allocation19 + $0xc08] sm:$0xff]
    %v1546 = vld [vmem:[#allocation19 + $0xc10] sm:$0xff]
    %v1547 = vld [vmem:[#allocation19 + $0xc18] sm:$0xff]
    %v1548 = vld [vmem:[#allocation19 + $0xc20] sm:$0xff]
    %v1549 = vld [vmem:[#allocation19 + $0xc28] sm:$0xff]
    %v1550 = vld [vmem:[#allocation19 + $0xc30] sm:$0xff]
    %v1551 = vld [vmem:[#allocation19 + $0xc38] sm:$0xff]
    %v1552 = vld [vmem:[#allocation19 + $0xc40] sm:$0xff]
    %v1553 = vld [vmem:[#allocation19 + $0xc48] sm:$0xff]
    %v1554 = vld [vmem:[#allocation19 + $0xc50] sm:$0xff]
    %v1555 = vld [vmem:[#allocation19 + $0xc58] sm:$0xff]
    %v1556 = vld [vmem:[#allocation19 + $0xc60] sm:$0xff]
    %v1557 = vld [vmem:[#allocation19 + $0xc68] sm:$0xff]
    %v1558 = vld [vmem:[#allocation19 + $0xc70] sm:$0xff]
    %v1559 = vld [vmem:[#allocation19 + $0xc78] sm:$0xff]
    %v1560 = vld [vmem:[#allocation19 + $0xc80] sm:$0xff]
    %v1561 = vld [vmem:[#allocation19 + $0xc88] sm:$0xff]
    %v1562 = vld [vmem:[#allocation19 + $0xc90] sm:$0xff]
    %v1563 = vld [vmem:[#allocation19 + $0xc98] sm:$0xff]
    %v1564 = vld [vmem:[#allocation19 + $0xca0] sm:$0xff]
    %v1565 = vld [vmem:[#allocation19 + $0xca8] sm:$0xff]
    %v1566 = vld [vmem:[#allocation19 + $0xcb0] sm:$0xff]
    %v1567 = vld [vmem:[#allocation19 + $0xcb8] sm:$0xff]
    %v1568 = vld [vmem:[#allocation19 + $0xcc0] sm:$0xff]
    %v1569 = vld [vmem:[#allocation19 + $0xcc8] sm:$0xff]
    %v1570 = vld [vmem:[#allocation19 + $0xcd0] sm:$0xff]
    %v1571 = vld [vmem:[#allocation19 + $0xcd8] sm:$0xff]
    %v1572 = vld [vmem:[#allocation19 + $0xce0] sm:$0xff]
    %v1573 = vld [vmem:[#allocation19 + $0xce8] sm:$0xff]
    %v1574 = vld [vmem:[#allocation19 + $0xcf0] sm:$0xff]
    %v1575 = vld [vmem:[#allocation19 + $0xcf8] sm:$0xff]
    %v1576 = vld [vmem:[#allocation19 + $0xd00] sm:$0xff]
    %v1577 = vld [vmem:[#allocation19 + $0xd08] sm:$0xff]
    %v1578 = vld [vmem:[#allocation19 + $0xd10] sm:$0xff]
    %v1579 = vld [vmem:[#allocation19 + $0xd18] sm:$0xff]
    %v1580 = vld [vmem:[#allocation19 + $0xd20] sm:$0xff]
    %v1581 = vld [vmem:[#allocation19 + $0xd28] sm:$0xff]
    %v1582 = vld [vmem:[#allocation19 + $0xd30] sm:$0xff]
    %v1583 = vld [vmem:[#allocation19 + $0xd38] sm:$0xff]
    %v1584 = vld [vmem:[#allocation19 + $0xd40] sm:$0xff]
    %v1585 = vld [vmem:[#allocation19 + $0xd48] sm:$0xff]
    %v1586 = vld [vmem:[#allocation19 + $0xd50] sm:$0xff]
    %v1587 = vld [vmem:[#allocation19 + $0xd58] sm:$0xff]
    %v1588 = vld [vmem:[#allocation19 + $0xd60] sm:$0xff]
    %v1589 = vld [vmem:[#allocation19 + $0xd68] sm:$0xff]
    %v1590 = vld [vmem:[#allocation19 + $0xd70] sm:$0xff]
    %v1591 = vld [vmem:[#allocation19 + $0xd78] sm:$0xff]
    %v1592 = vld [vmem:[#allocation19 + $0xd80] sm:$0xff]
    %v1593 = vld [vmem:[#allocation19 + $0xd88] sm:$0xff]
    %v1594 = vld [vmem:[#allocation19 + $0xd90] sm:$0xff]
    %v1595 = vld [vmem:[#allocation19 + $0xd98] sm:$0xff]
    %v1596 = vld [vmem:[#allocation19 + $0xda0] sm:$0xff]
    %v1597 = vld [vmem:[#allocation19 + $0xda8] sm:$0xff]
    %v1598 = vld [vmem:[#allocation19 + $0xdb0] sm:$0xff]
    %v1599 = vld [vmem:[#allocation19 + $0xdb8] sm:$0xff]
    %v1600 = vld [vmem:[#allocation19 + $0xdc0] sm:$0xff]
    %v1601 = vld [vmem:[#allocation19 + $0xdc8] sm:$0xff]
    %v1602 = vld [vmem:[#allocation19 + $0xdd0] sm:$0xff]
    %v1603 = vld [vmem:[#allocation19 + $0xdd8] sm:$0xff]
    %v1604 = vld [vmem:[#allocation19 + $0xde0] sm:$0xff]
    %v1605 = vld [vmem:[#allocation19 + $0xde8] sm:$0xff]
    %v1606 = vld [vmem:[#allocation19 + $0xdf0] sm:$0xff]
    %v1607 = vld [vmem:[#allocation19 + $0xdf8] sm:$0xff]
    %v1608 = vld [vmem:[#allocation19 + $0xe00] sm:$0xff]
    %v1609 = vld [vmem:[#allocation19 + $0xe08] sm:$0xff]
    %v1610 = vld [vmem:[#allocation19 + $0xe10] sm:$0xff]
    %v1611 = vld [vmem:[#allocation19 + $0xe18] sm:$0xff]
    %v1612 = vld [vmem:[#allocation19 + $0xe20] sm:$0xff]
    %v1613 = vld [vmem:[#allocation19 + $0xe28] sm:$0xff]
    %v1614 = vld [vmem:[#allocation19 + $0xe30] sm:$0xff]
    %v1615 = vld [vmem:[#allocation19 + $0xe38] sm:$0xff]
    %v1616 = vld [vmem:[#allocation19 + $0xe40] sm:$0xff]
    %v1617 = vld [vmem:[#allocation19 + $0xe48] sm:$0xff]
    %v1618 = vld [vmem:[#allocation19 + $0xe50] sm:$0xff]
    %v1619 = vld [vmem:[#allocation19 + $0xe58] sm:$0xff]
    %v1620 = vld [vmem:[#allocation19 + $0xe60] sm:$0xff]
    %v1621 = vld [vmem:[#allocation19 + $0xe68] sm:$0xff]
    %v1622 = vld [vmem:[#allocation19 + $0xe70] sm:$0xff]
    %v1623 = vld [vmem:[#allocation19 + $0xe78] sm:$0xff]
    %v1624 = vld [vmem:[#allocation19 + $0xe80] sm:$0xff]
    %v1625 = vld [vmem:[#allocation19 + $0xe88] sm:$0xff]
    %v1626 = vld [vmem:[#allocation19 + $0xe90] sm:$0xff]
    %v1627 = vld [vmem:[#allocation19 + $0xe98] sm:$0xff]
    %v1628 = vld [vmem:[#allocation19 + $0xea0] sm:$0xff]
    %v1629 = vld [vmem:[#allocation19 + $0xea8] sm:$0xff]
    %v1630 = vld [vmem:[#allocation19 + $0xeb0] sm:$0xff]
    %v1631 = vld [vmem:[#allocation19 + $0xeb8] sm:$0xff]
    %v1632 = vld [vmem:[#allocation19 + $0xec0] sm:$0xff]
    %v1633 = vld [vmem:[#allocation19 + $0xec8] sm:$0xff]
    %v1634 = vld [vmem:[#allocation19 + $0xed0] sm:$0xff]
    %v1635 = vld [vmem:[#allocation19 + $0xed8] sm:$0xff]
    %v1636 = vld [vmem:[#allocation19 + $0xee0] sm:$0xff]
    %v1637 = vld [vmem:[#allocation19 + $0xee8] sm:$0xff]
    %v1638 = vld [vmem:[#allocation19 + $0xef0] sm:$0xff]
    %v1639 = vld [vmem:[#allocation19 + $0xef8] sm:$0xff]
    %v1640 = vld [vmem:[#allocation19 + $0xf00] sm:$0xff]
    %v1641 = vld [vmem:[#allocation19 + $0xf08] sm:$0xff]
    %v1642 = vld [vmem:[#allocation19 + $0xf10] sm:$0xff]
    %v1643 = vld [vmem:[#allocation19 + $0xf18] sm:$0xff]
    %v1644 = vld [vmem:[#allocation19 + $0xf20] sm:$0xff]
    %v1645 = vld [vmem:[#allocation19 + $0xf28] sm:$0xff]
    %v1646 = vld [vmem:[#allocation19 + $0xf30] sm:$0xff]
    %v1647 = vld [vmem:[#allocation19 + $0xf38] sm:$0xff]
    %v1648 = vld [vmem:[#allocation19 + $0xf40] sm:$0xff]
    %v1649 = vld [vmem:[#allocation19 + $0xf48] sm:$0xff]
    %v1650 = vld [vmem:[#allocation19 + $0xf50] sm:$0xff]
    %v1651 = vld [vmem:[#allocation19 + $0xf58] sm:$0xff]
    %v1652 = vld [vmem:[#allocation19 + $0xf60] sm:$0xff]
    %v1653 = vld [vmem:[#allocation19 + $0xf68] sm:$0xff]
    %v1654 = vld [vmem:[#allocation19 + $0xf70] sm:$0xff]
    %v1655 = vld [vmem:[#allocation19 + $0xf78] sm:$0xff]
    %v1656 = vld [vmem:[#allocation19 + $0xf80] sm:$0xff]
    %v1657 = vld [vmem:[#allocation19 + $0xf88] sm:$0xff]
    %v1658 = vld [vmem:[#allocation19 + $0xf90] sm:$0xff]
    %v1659 = vld [vmem:[#allocation19 + $0xf98] sm:$0xff]
    %v1660 = vld [vmem:[#allocation19 + $0xfa0] sm:$0xff]
    %v1661 = vld [vmem:[#allocation19 + $0xfa8] sm:$0xff]
    %v1662 = vld [vmem:[#allocation19 + $0xfb0] sm:$0xff]
    %v1663 = vld [vmem:[#allocation19 + $0xfb8] sm:$0xff]
    %v1664 = vld [vmem:[#allocation19 + $0xfc0] sm:$0xff]
    %v1665 = vld [vmem:[#allocation19 + $0xfc8] sm:$0xff]
    %v1666 = vld [vmem:[#allocation19 + $0xfd0] sm:$0xff]
    %v1667 = vld [vmem:[#allocation19 + $0xfd8] sm:$0xff]
    %v1668 = vld [vmem:[#allocation19 + $0xfe0] sm:$0xff]
    %v1669 = vld [vmem:[#allocation19 + $0xfe8] sm:$0xff]
    %v1670 = vld [vmem:[#allocation19 + $0xff0] sm:$0xff]
    %v1671 = vld [vmem:[#allocation19 + $0xff8] sm:$0xff]
    %v1672 = vld [vmem:[#allocation19 + $0x1000] sm:$0xff]
    %v1673 = vld [vmem:[#allocation19 + $0x1008] sm:$0xff]
    %v1674 = vld [vmem:[#allocation19 + $0x1010] sm:$0xff]
    %v1675 = vld [vmem:[#allocation19 + $0x1018] sm:$0xff]
    %v1676 = vld [vmem:[#allocation19 + $0x1020] sm:$0xff]
    %v1677 = vld [vmem:[#allocation19 + $0x1028] sm:$0xff]
    %v1678 = vld [vmem:[#allocation19 + $0x1030] sm:$0xff]
    %v1679 = vld [vmem:[#allocation19 + $0x1038] sm:$0xff]
    %v1680 = vld [vmem:[#allocation19 + $0x1040] sm:$0xff]
    %v1681 = vld [vmem:[#allocation19 + $0x1048] sm:$0xff]
    %v1682 = vld [vmem:[#allocation19 + $0x1050] sm:$0xff]
    %v1683 = vld [vmem:[#allocation19 + $0x1058] sm:$0xff]
    %v1684 = vld [vmem:[#allocation19 + $0x1060] sm:$0xff]
    %v1685 = vld [vmem:[#allocation19 + $0x1068] sm:$0xff]
    %v1686 = vld [vmem:[#allocation19 + $0x1070] sm:$0xff]
    %v1687 = vld [vmem:[#allocation19 + $0x1078] sm:$0xff]
    %v1688 = vld [vmem:[#allocation19 + $0x1080] sm:$0xff]
    %v1689 = vld [vmem:[#allocation19 + $0x1088] sm:$0xff]
    %v1690 = vld [vmem:[#allocation19 + $0x1090] sm:$0xff]
    %v1691 = vld [vmem:[#allocation19 + $0x1098] sm:$0xff]
    %v1692 = vld [vmem:[#allocation19 + $0x10a0] sm:$0xff]
    %v1693 = vld [vmem:[#allocation19 + $0x10a8] sm:$0xff]
    %v1694 = vld [vmem:[#allocation19 + $0x10b0] sm:$0xff]
    %v1695 = vld [vmem:[#allocation19 + $0x10b8] sm:$0xff]
    %v1696 = vld [vmem:[#allocation19 + $0x10c0] sm:$0xff]
    %v1697 = vld [vmem:[#allocation19 + $0x10c8] sm:$0xff]
    %v1698 = vld [vmem:[#allocation19 + $0x10d0] sm:$0xff]
    %v1699 = vld [vmem:[#allocation19 + $0x10d8] sm:$0xff]
    %v1700 = vld [vmem:[#allocation19 + $0x10e0] sm:$0xff]
    %v1701 = vld [vmem:[#allocation19 + $0x10e8] sm:$0xff]
    %v1702 = vld [vmem:[#allocation19 + $0x10f0] sm:$0xff]
    %v1703 = vld [vmem:[#allocation19 + $0x10f8] sm:$0xff]
    %v1704 = vld [vmem:[#allocation19 + $0x1100] sm:$0xff]
    %v1705 = vld [vmem:[#allocation19 + $0x1108] sm:$0xff]
    %v1706 = vld [vmem:[#allocation19 + $0x1110] sm:$0xff]
    %v1707 = vld [vmem:[#allocation19 + $0x1118] sm:$0xff]
    %v1708 = vld [vmem:[#allocation19 + $0x1120] sm:$0xff]
    %v1709 = vld [vmem:[#allocation19 + $0x1128] sm:$0xff]
    %v1710 = vld [vmem:[#allocation19 + $0x1130] sm:$0xff]
    %v1711 = vld [vmem:[#allocation19 + $0x1138] sm:$0xff]
    %v1712 = vld [vmem:[#allocation19 + $0x1140] sm:$0xff]
    %v1713 = vld [vmem:[#allocation19 + $0x1148] sm:$0xff]
    %v1714 = vld [vmem:[#allocation19 + $0x1150] sm:$0xff]
    %v1715 = vld [vmem:[#allocation19 + $0x1158] sm:$0xff]
    %v1716 = vld [vmem:[#allocation19 + $0x1160] sm:$0xff]
    %v1717 = vld [vmem:[#allocation19 + $0x1168] sm:$0xff]
    %v1718 = vld [vmem:[#allocation19 + $0x1170] sm:$0xff]
    %v1719 = vld [vmem:[#allocation19 + $0x1178] sm:$0xff]
    %v1720 = vld [vmem:[#allocation19 + $0x1180] sm:$0xff]
    %v1721 = vld [vmem:[#allocation19 + $0x1188] sm:$0xff]
    %v1722 = vld [vmem:[#allocation19 + $0x1190] sm:$0xff]
    %v1723 = vld [vmem:[#allocation19 + $0x1198] sm:$0xff]
    %v1724 = vld [vmem:[#allocation19 + $0x11a0] sm:$0xff]
    %v1725 = vld [vmem:[#allocation19 + $0x11a8] sm:$0xff]
    %v1726 = vld [vmem:[#allocation19 + $0x11b0] sm:$0xff]
    %v1727 = vld [vmem:[#allocation19 + $0x11b8] sm:$0xff]
    %v1728 = vld [vmem:[#allocation19 + $0x11c0] sm:$0xff]
    %v1729 = vld [vmem:[#allocation19 + $0x11c8] sm:$0xff]
    %v1730 = vld [vmem:[#allocation19 + $0x11d0] sm:$0xff]
    %v1731 = vld [vmem:[#allocation19 + $0x11d8] sm:$0xff]
    %v1732 = vld [vmem:[#allocation19 + $0x11e0] sm:$0xff]
    %v1733 = vld [vmem:[#allocation19 + $0x11e8] sm:$0xff]
    %v1734 = vld [vmem:[#allocation19 + $0x11f0] sm:$0xff]
    %v1735 = vld [vmem:[#allocation19 + $0x11f8] sm:$0xff]
    %v1736 = vld [vmem:[#allocation19 + $0x1200] sm:$0xff]
    %v1737 = vld [vmem:[#allocation19 + $0x1208] sm:$0xff]
    %v1738 = vld [vmem:[#allocation19 + $0x1210] sm:$0xff]
    %v1739 = vld [vmem:[#allocation19 + $0x1218] sm:$0xff]
    %v1740 = vld [vmem:[#allocation19 + $0x1220] sm:$0xff]
    %v1741 = vld [vmem:[#allocation19 + $0x1228] sm:$0xff]
    %v1742 = vld [vmem:[#allocation19 + $0x1230] sm:$0xff]
    %v1743 = vld [vmem:[#allocation19 + $0x1238] sm:$0xff]
    %v1744 = vld [vmem:[#allocation19 + $0x1240] sm:$0xff]
    %v1745 = vld [vmem:[#allocation19 + $0x1248] sm:$0xff]
    %v1746 = vld [vmem:[#allocation19 + $0x1250] sm:$0xff]
    %v1747 = vld [vmem:[#allocation19 + $0x1258] sm:$0xff]
    %v1748 = vld [vmem:[#allocation19 + $0x1260] sm:$0xff]
    %v1749 = vld [vmem:[#allocation19 + $0x1268] sm:$0xff]
    %v1750 = vld [vmem:[#allocation19 + $0x1270] sm:$0xff]
    %v1751 = vld [vmem:[#allocation19 + $0x1278] sm:$0xff]
    %v1752 = vld [vmem:[#allocation19 + $0x1280] sm:$0xff]
    %v1753 = vld [vmem:[#allocation19 + $0x1288] sm:$0xff]
    %v1754 = vld [vmem:[#allocation19 + $0x1290] sm:$0xff]
    %v1755 = vld [vmem:[#allocation19 + $0x1298] sm:$0xff]
    %v1756 = vld [vmem:[#allocation19 + $0x12a0] sm:$0xff]
    %v1757 = vld [vmem:[#allocation19 + $0x12a8] sm:$0xff]
    %v1758 = vld [vmem:[#allocation19 + $0x12b0] sm:$0xff]
    %v1759 = vld [vmem:[#allocation19 + $0x12b8] sm:$0xff]
    %v1760 = vld [vmem:[#allocation19 + $0x12c0] sm:$0xff]
    %v1761 = vld [vmem:[#allocation19 + $0x12c8] sm:$0xff]
    %v1762 = vld [vmem:[#allocation19 + $0x12d0] sm:$0xff]
    %v1763 = vld [vmem:[#allocation19 + $0x12d8] sm:$0xff]
    %v1764 = vld [vmem:[#allocation19 + $0x12e0] sm:$0xff]
    %v1765 = vld [vmem:[#allocation19 + $0x12e8] sm:$0xff]
    %v1766 = vld [vmem:[#allocation19 + $0x12f0] sm:$0xff]
    %v1767 = vld [vmem:[#allocation19 + $0x12f8] sm:$0xff]
    %v1768 = vld [vmem:[#allocation19 + $0x1300] sm:$0xff]
    %v1769 = vld [vmem:[#allocation19 + $0x1308] sm:$0xff]
    %v1770 = vld [vmem:[#allocation19 + $0x1310] sm:$0xff]
    %v1771 = vld [vmem:[#allocation19 + $0x1318] sm:$0xff]
    %v1772 = vld [vmem:[#allocation19 + $0x1320] sm:$0xff]
    %v1773 = vld [vmem:[#allocation19 + $0x1328] sm:$0xff]
    %v1774 = vld [vmem:[#allocation19 + $0x1330] sm:$0xff]
    %v1775 = vld [vmem:[#allocation19 + $0x1338] sm:$0xff]
    %v1776 = vld [vmem:[#allocation19 + $0x1340] sm:$0xff]
    %v1777 = vld [vmem:[#allocation19 + $0x1348] sm:$0xff]
    %v1778 = vld [vmem:[#allocation19 + $0x1350] sm:$0xff]
    %v1779 = vld [vmem:[#allocation19 + $0x1358] sm:$0xff]
    %v1780 = vld [vmem:[#allocation19 + $0x1360] sm:$0xff]
    %v1781 = vld [vmem:[#allocation19 + $0x1368] sm:$0xff]
    %v1782 = vld [vmem:[#allocation19 + $0x1370] sm:$0xff]
    %v1783 = vld [vmem:[#allocation19 + $0x1378] sm:$0xff]
    %v1784 = vld [vmem:[#allocation19 + $0x1380] sm:$0xff]
    %v1785 = vld [vmem:[#allocation19 + $0x1388] sm:$0xff]
    %v1786 = vld [vmem:[#allocation19 + $0x1390] sm:$0xff]
    %v1787 = vld [vmem:[#allocation19 + $0x1398] sm:$0xff]
    %v1788 = vld [vmem:[#allocation19 + $0x13a0] sm:$0xff]
    %v1789 = vld [vmem:[#allocation19 + $0x13a8] sm:$0xff]
    %v1790 = vld [vmem:[#allocation19 + $0x13b0] sm:$0xff]
    %v1791 = vld [vmem:[#allocation19 + $0x13b8] sm:$0xff]
    %v1792 = vld [vmem:[#allocation19 + $0x13c0] sm:$0xff]
    %v1793 = vld [vmem:[#allocation19 + $0x13c8] sm:$0xff]
    %v1794 = vld [vmem:[#allocation19 + $0x13d0] sm:$0xff]
    %v1795 = vld [vmem:[#allocation19 + $0x13d8] sm:$0xff]
    %v1796 = vld [vmem:[#allocation19 + $0x13e0] sm:$0xff]
    %v1797 = vld [vmem:[#allocation19 + $0x13e8] sm:$0xff]
    %v1798 = vld [vmem:[#allocation19 + $0x13f0] sm:$0xff]
    %v1799 = vld [vmem:[#allocation19 + $0x13f8] sm:$0xff]
    %v1800 = vld [vmem:[#allocation19 + $0x1400] sm:$0xff]
    %v1801 = vld [vmem:[#allocation19 + $0x1408] sm:$0xff]
    %v1802 = vld [vmem:[#allocation19 + $0x1410] sm:$0xff]
    %v1803 = vld [vmem:[#allocation19 + $0x1418] sm:$0xff]
    %v1804 = vld [vmem:[#allocation19 + $0x1420] sm:$0xff]
    %v1805 = vld [vmem:[#allocation19 + $0x1428] sm:$0xff]
    %v1806 = vld [vmem:[#allocation19 + $0x1430] sm:$0xff]
    %v1807 = vld [vmem:[#allocation19 + $0x1438] sm:$0xff]
    %v1808 = vld [vmem:[#allocation19 + $0x1440] sm:$0xff]
    %v1809 = vld [vmem:[#allocation19 + $0x1448] sm:$0xff]
    %v1810 = vld [vmem:[#allocation19 + $0x1450] sm:$0xff]
    %v1811 = vld [vmem:[#allocation19 + $0x1458] sm:$0xff]
    %v1812 = vld [vmem:[#allocation19 + $0x1460] sm:$0xff]
    %v1813 = vld [vmem:[#allocation19 + $0x1468] sm:$0xff]
    %v1814 = vld [vmem:[#allocation19 + $0x1470] sm:$0xff]
    %v1815 = vld [vmem:[#allocation19 + $0x1478] sm:$0xff]
    %v1816 = vld [vmem:[#allocation19 + $0x1480] sm:$0xff]
    %v1817 = vld [vmem:[#allocation19 + $0x1488] sm:$0xff]
    %v1818 = vld [vmem:[#allocation19 + $0x1490] sm:$0xff]
    %v1819 = vld [vmem:[#allocation19 + $0x1498] sm:$0xff]
    %v1820 = vld [vmem:[#allocation19 + $0x14a0] sm:$0xff]
    %v1821 = vld [vmem:[#allocation19 + $0x14a8] sm:$0xff]
    %v1822 = vld [vmem:[#allocation19 + $0x14b0] sm:$0xff]
    %v1823 = vld [vmem:[#allocation19 + $0x14b8] sm:$0xff]
    %v1824 = vld [vmem:[#allocation19 + $0x14c0] sm:$0xff]
    %v1825 = vld [vmem:[#allocation19 + $0x14c8] sm:$0xff]
    %v1826 = vld [vmem:[#allocation19 + $0x14d0] sm:$0xff]
    %v1827 = vld [vmem:[#allocation19 + $0x14d8] sm:$0xff]
    %v1828 = vld [vmem:[#allocation19 + $0x14e0] sm:$0xff]
    %v1829 = vld [vmem:[#allocation19 + $0x14e8] sm:$0xff]
    %v1830 = vld [vmem:[#allocation19 + $0x14f0] sm:$0xff]
    %v1831 = vld [vmem:[#allocation19 + $0x14f8] sm:$0xff]
    %v1832 = vld [vmem:[#allocation19 + $0x1500] sm:$0xff]
    %v1833 = vld [vmem:[#allocation19 + $0x1508] sm:$0xff]
    %v1834 = vld [vmem:[#allocation19 + $0x1510] sm:$0xff]
    %v1835 = vld [vmem:[#allocation19 + $0x1518] sm:$0xff]
    %v1836 = vld [vmem:[#allocation19 + $0x1520] sm:$0xff]
    %v1837 = vld [vmem:[#allocation19 + $0x1528] sm:$0xff]
    %v1838 = vld [vmem:[#allocation19 + $0x1530] sm:$0xff]
    %v1839 = vld [vmem:[#allocation19 + $0x1538] sm:$0xff]
    %v1840 = vld [vmem:[#allocation19 + $0x1540] sm:$0xff]
    %v1841 = vld [vmem:[#allocation19 + $0x1548] sm:$0xff]
    %v1842 = vld [vmem:[#allocation19 + $0x1550] sm:$0xff]
    %v1843 = vld [vmem:[#allocation19 + $0x1558] sm:$0xff]
    %v1844 = vld [vmem:[#allocation19 + $0x1560] sm:$0xff]
    %v1845 = vld [vmem:[#allocation19 + $0x1568] sm:$0xff]
    %v1846 = vld [vmem:[#allocation19 + $0x1570] sm:$0xff]
    %v1847 = vld [vmem:[#allocation19 + $0x1578] sm:$0xff]
    %v1848 = vld [vmem:[#allocation19 + $0x1580] sm:$0xff]
    %v1849 = vld [vmem:[#allocation19 + $0x1588] sm:$0xff]
    %v1850 = vld [vmem:[#allocation19 + $0x1590] sm:$0xff]
    %v1851 = vld [vmem:[#allocation19 + $0x1598] sm:$0xff]
    %v1852 = vld [vmem:[#allocation19 + $0x15a0] sm:$0xff]
    %v1853 = vld [vmem:[#allocation19 + $0x15a8] sm:$0xff]
    %v1854 = vld [vmem:[#allocation19 + $0x15b0] sm:$0xff]
    %v1855 = vld [vmem:[#allocation19 + $0x15b8] sm:$0xff]
    %v1856 = vld [vmem:[#allocation19 + $0x15c0] sm:$0xff]
    %v1857 = vld [vmem:[#allocation19 + $0x15c8] sm:$0xff]
    %v1858 = vld [vmem:[#allocation19 + $0x15d0] sm:$0xff]
    %v1859 = vld [vmem:[#allocation19 + $0x15d8] sm:$0xff]
    %v1860 = vld [vmem:[#allocation19 + $0x15e0] sm:$0xff]
    %v1861 = vld [vmem:[#allocation19 + $0x15e8] sm:$0xff]
    %v1862 = vld [vmem:[#allocation19 + $0x15f0] sm:$0xff]
    %v1863 = vld [vmem:[#allocation19 + $0x15f8] sm:$0xff]
    %v1864 = vld [vmem:[#allocation19 + $0x1600] sm:$0xff]
    %v1865 = vld [vmem:[#allocation19 + $0x1608] sm:$0xff]
    %v1866 = vld [vmem:[#allocation19 + $0x1610] sm:$0xff]
    %v1867 = vld [vmem:[#allocation19 + $0x1618] sm:$0xff]
    %v1868 = vld [vmem:[#allocation19 + $0x1620] sm:$0xff]
    %v1869 = vld [vmem:[#allocation19 + $0x1628] sm:$0xff]
    %v1870 = vld [vmem:[#allocation19 + $0x1630] sm:$0xff]
    %v1871 = vld [vmem:[#allocation19 + $0x1638] sm:$0xff]
    %v1872 = vld [vmem:[#allocation19 + $0x1640] sm:$0xff]
    %v1873 = vld [vmem:[#allocation19 + $0x1648] sm:$0xff]
    %v1874 = vld [vmem:[#allocation19 + $0x1650] sm:$0xff]
    %v1875 = vld [vmem:[#allocation19 + $0x1658] sm:$0xff]
    %v1876 = vld [vmem:[#allocation19 + $0x1660] sm:$0xff]
    %v1877 = vld [vmem:[#allocation19 + $0x1668] sm:$0xff]
    %v1878 = vld [vmem:[#allocation19 + $0x1670] sm:$0xff]
    %v1879 = vld [vmem:[#allocation19 + $0x1678] sm:$0xff]
    %v1880 = vld [vmem:[#allocation19 + $0x1680] sm:$0xff]
    %v1881 = vld [vmem:[#allocation19 + $0x1688] sm:$0xff]
    %v1882 = vld [vmem:[#allocation19 + $0x1690] sm:$0xff]
    %v1883 = vld [vmem:[#allocation19 + $0x1698] sm:$0xff]
    %v1884 = vld [vmem:[#allocation19 + $0x16a0] sm:$0xff]
    %v1885 = vld [vmem:[#allocation19 + $0x16a8] sm:$0xff]
    %v1886 = vld [vmem:[#allocation19 + $0x16b0] sm:$0xff]
    %v1887 = vld [vmem:[#allocation19 + $0x16b8] sm:$0xff]
    %v1888 = vld [vmem:[#allocation19 + $0x16c0] sm:$0xff]
    %v1889 = vld [vmem:[#allocation19 + $0x16c8] sm:$0xff]
    %v1890 = vld [vmem:[#allocation19 + $0x16d0] sm:$0xff]
    %v1891 = vld [vmem:[#allocation19 + $0x16d8] sm:$0xff]
    %v1892 = vld [vmem:[#allocation19 + $0x16e0] sm:$0xff]
    %v1893 = vld [vmem:[#allocation19 + $0x16e8] sm:$0xff]
    %v1894 = vld [vmem:[#allocation19 + $0x16f0] sm:$0xff]
    %v1895 = vld [vmem:[#allocation19 + $0x16f8] sm:$0xff]
    %v1896 = vld [vmem:[#allocation19 + $0x1700] sm:$0xff]
    %v1897 = vld [vmem:[#allocation19 + $0x1708] sm:$0xff]
    %v1898 = vld [vmem:[#allocation19 + $0x1710] sm:$0xff]
    %v1899 = vld [vmem:[#allocation19 + $0x1718] sm:$0xff]
    %v1900 = vld [vmem:[#allocation19 + $0x1720] sm:$0xff]
    %v1901 = vld [vmem:[#allocation19 + $0x1728] sm:$0xff]
    %v1902 = vld [vmem:[#allocation19 + $0x1730] sm:$0xff]
    %v1903 = vld [vmem:[#allocation19 + $0x1738] sm:$0xff]
    %v1904 = vld [vmem:[#allocation19 + $0x1740] sm:$0xff]
    %v1905 = vld [vmem:[#allocation19 + $0x1748] sm:$0xff]
    %v1906 = vld [vmem:[#allocation19 + $0x1750] sm:$0xff]
    %v1907 = vld [vmem:[#allocation19 + $0x1758] sm:$0xff]
    %v1908 = vld [vmem:[#allocation19 + $0x1760] sm:$0xff]
    %v1909 = vld [vmem:[#allocation19 + $0x1768] sm:$0xff]
    %v1910 = vld [vmem:[#allocation19 + $0x1770] sm:$0xff]
    %v1911 = vld [vmem:[#allocation19 + $0x1778] sm:$0xff]
    %v1912 = vld [vmem:[#allocation19 + $0x1780] sm:$0xff]
    %v1913 = vld [vmem:[#allocation19 + $0x1788] sm:$0xff]
    %v1914 = vld [vmem:[#allocation19 + $0x1790] sm:$0xff]
    %v1915 = vld [vmem:[#allocation19 + $0x1798] sm:$0xff]
    %v1916 = vld [vmem:[#allocation19 + $0x17a0] sm:$0xff]
    %v1917 = vld [vmem:[#allocation19 + $0x17a8] sm:$0xff]
    %v1918 = vld [vmem:[#allocation19 + $0x17b0] sm:$0xff]
    %v1919 = vld [vmem:[#allocation19 + $0x17b8] sm:$0xff]
    %v1920 = vld [vmem:[#allocation19 + $0x17c0] sm:$0xff]
    %v1921 = vld [vmem:[#allocation19 + $0x17c8] sm:$0xff]
    %v1922 = vld [vmem:[#allocation19 + $0x17d0] sm:$0xff]
    %v1923 = vld [vmem:[#allocation19 + $0x17d8] sm:$0xff]
    %v1924 = vld [vmem:[#allocation19 + $0x17e0] sm:$0xff]
    %v1925 = vld [vmem:[#allocation19 + $0x17e8] sm:$0xff]
    %v1926 = vld [vmem:[#allocation19 + $0x17f0] sm:$0xff]
    %v1927 = vld [vmem:[#allocation19 + $0x17f8] sm:$0xff]
    %v1928 = vld [vmem:[#allocation19 + $0x1800] sm:$0xff]
    %v1929 = vld [vmem:[#allocation19 + $0x1808] sm:$0xff]
    %v1930 = vld [vmem:[#allocation19 + $0x1810] sm:$0xff]
    %v1931 = vld [vmem:[#allocation19 + $0x1818] sm:$0xff]
    %v1932 = vld [vmem:[#allocation19 + $0x1820] sm:$0xff]
    %v1933 = vld [vmem:[#allocation19 + $0x1828] sm:$0xff]
    %v1934 = vld [vmem:[#allocation19 + $0x1830] sm:$0xff]
    %v1935 = vld [vmem:[#allocation19 + $0x1838] sm:$0xff]
    %v1936 = vld [vmem:[#allocation19 + $0x1840] sm:$0xff]
    %v1937 = vld [vmem:[#allocation19 + $0x1848] sm:$0xff]
    %v1938 = vld [vmem:[#allocation19 + $0x1850] sm:$0xff]
    %v1939 = vld [vmem:[#allocation19 + $0x1858] sm:$0xff]
    %v1940 = vld [vmem:[#allocation19 + $0x1860] sm:$0xff]
    %v1941 = vld [vmem:[#allocation19 + $0x1868] sm:$0xff]
    %v1942 = vld [vmem:[#allocation19 + $0x1870] sm:$0xff]
    %v1943 = vld [vmem:[#allocation19 + $0x1878] sm:$0xff]
    %v1944 = vld [vmem:[#allocation20] sm:$0xff]
    %v1946 = vlaneseq
    %v1947 = vshrl.u32 %v1946, 7
    %v1948 = vsub.s32 0, %v1947
    %v1949 = vrot.slane %v1944, %v1948
    %v1950 = vlaneseq
    %v1951 = vshrl.u32 %v1950, 7
    %v1952 = vsub.s32 1, %v1951
    %v1953 = vrot.slane %v1944, %v1952
    %v1954 = vlaneseq
    %v1955 = vshrl.u32 %v1954, 7
    %v1956 = vsub.s32 2, %v1955
    %v1957 = vrot.slane %v1944, %v1956
    %v1958 = vlaneseq
    %v1959 = vshrl.u32 %v1958, 7
    %v1960 = vsub.s32 3, %v1959
    %v1961 = vrot.slane %v1944, %v1960
    %v1962 = vlaneseq
    %v1963 = vshrl.u32 %v1962, 7
    %v1964 = vsub.s32 4, %v1963
    %v1965 = vrot.slane %v1944, %v1964
    %v1966 = vlaneseq
    %v1967 = vshrl.u32 %v1966, 7
    %v1968 = vsub.s32 5, %v1967
    %v1969 = vrot.slane %v1944, %v1968
    %v1970 = vlaneseq
    %v1971 = vshrl.u32 %v1970, 7
    %v1972 = vsub.s32 6, %v1971
    %v1973 = vrot.slane %v1944, %v1972
    %1981 = vmatprep.subr.mxu0 %v1161
    %1982 = vmatpush1.msra.mxu0 %v1160
    %1983 = vmatprep.subr.mxu0 %v1168
    %1984 = vmatpush1.msra.mxu0 %v1167
    %1985 = vmatprep.subr.mxu0 %v1175
    %1986 = vmatpush1.msra.mxu0 %v1174
    %1987 = vmatprep.subr.mxu0 %v1182
    %1988 = vmatpush1.msra.mxu0 %v1181
    %1989 = vmatprep.subr.mxu0 %v1189
    %1990 = vmatpush1.msra.mxu0 %v1188
    %1991 = vmatprep.subr.mxu0 %v1196
    %1992 = vmatpush1.msra.mxu0 %v1195
    %1993 = vmatprep.subr.mxu0 %v1203
    %1994 = vmatpush1.msra.mxu0 %v1202
    %1995 = vmatprep.subr.mxu0 %v1210
    %1996 = vmatpush1.msra.mxu0 %v1209
    %1997 = vmatprep.subr.mxu0 %v1217
    %1998 = vmatpush1.msra.mxu0 %v1216
    %1999 = vmatprep.subr.mxu0 %v1224
    %2000 = vmatpush1.msra.mxu0 %v1223
    %2001 = vmatprep.subr.mxu0 %v1231
    %2002 = vmatpush1.msra.mxu0 %v1230
    %2003 = vmatprep.subr.mxu0 %v1238
    %2004 = vmatpush1.msra.mxu0 %v1237
    %2005 = vmatprep.subr.mxu0 %v1245
    %2006 = vmatpush1.msra.mxu0 %v1244
    %2007 = vmatprep.subr.mxu0 %v1252
    %2008 = vmatpush1.msra.mxu0 %v1251
    %2009 = vmatprep.subr.mxu0 %v1259
    %2010 = vmatpush1.msra.mxu0 %v1258
    %2011 = vmatprep.subr.mxu0 %v1266
    %2012 = vmatpush1.msra.mxu0 %v1265
    %2013 = vmatprep.subr.mxu0 %v1273
    %2014 = vmatpush1.msra.mxu0 %v1272
    %2015 = vmatprep.subr.mxu0 %v1280
    %2016 = vmatpush1.msra.mxu0 %v1279
    %2017 = vmatprep.subr.mxu0 %v1287
    %2018 = vmatpush1.msra.mxu0 %v1286
    %2019 = vmatprep.subr.mxu0 %v1294
    %2020 = vmatpush1.msra.mxu0 %v1293
    %2021 = vmatprep.subr.mxu0 %v1301
    %2022 = vmatpush1.msra.mxu0 %v1300
    %2023 = vmatprep.subr.mxu0 %v1308
    %2024 = vmatpush1.msra.mxu0 %v1307
    %2025 = vmatprep.subr.mxu0 %v1315
    %2026 = vmatpush1.msra.mxu0 %v1314
    %2027 = vmatprep.subr.mxu0 %v1322
    %2028 = vmatpush1.msra.mxu0 %v1321
    %2029 = vmatprep.subr.mxu0 %v1329
    %2030 = vmatpush1.msra.mxu0 %v1328
    %2031 = vmatprep.subr.mxu0 %v1336
    %2032 = vmatpush1.msra.mxu0 %v1335
    %2033 = vmatprep.subr.mxu0 %v1343
    %2034 = vmatpush1.msra.mxu0 %v1342
    %2035 = vmatprep.subr.mxu0 %v1350
    %2036 = vmatpush1.msra.mxu0 %v1349
    %2037 = vmatprep.subr.mxu0 %v1357
    %2038 = vmatpush1.msra.mxu0 %v1356
    %2039 = vmatprep.subr.mxu0 %v1364
    %2040 = vmatpush1.msra.mxu0 %v1363
    %2041 = vmatprep.subr.mxu0 %v1371
    %2042 = vmatpush1.msra.mxu0 %v1370
    %2043 = vmatprep.subr.mxu0 %v1378
    %2044 = vmatpush1.msra.mxu0 %v1377
    %2045 = vmatprep.mubr.f32.mxu0 %v1133
    %2046 = vmatmul.mubr.f32.gmra.mrb[0].mxu0 %v1132
    %v2047 = vpop.f32.mrb[0].mxu0
    %v2048 = vadd.f32 %v1949, %v2047
    %v2049 = vpop.f32.mrb[0].mxu0
    %v2050 = vadd.f32 %v1953, %v2049
    %2051 = vmatprep.mubr.f32.mxu0 %v1154
    %2052 = vmatmul.mubr.f32.gmra.mrb[0].mxu0 %v1153
    %v2053 = vpop.f32.mrb[0].mxu0
    %v2054 = vadd.f32 %v1949, %v2053
    %v2055 = vpop.f32.mrb[0].mxu0
    %v2056 = vadd.f32 %v1953, %v2055
    %2057 = vdwg.mxu0
    %2058 = vmatprep.subr.mxu0 %v1385
    %2059 = vmatpush1.msra.mxu0 %v1384
    %2060 = vmatprep.subr.mxu0 %v1392
    %2061 = vmatpush1.msra.mxu0 %v1391
    %2062 = vmatprep.subr.mxu0 %v1399
    %2063 = vmatpush1.msra.mxu0 %v1398
    %2064 = vmatprep.subr.mxu0 %v1406
    %2065 = vmatpush1.msra.mxu0 %v1405
    %2066 = vmatprep.subr.mxu0 %v1413
    %2067 = vmatpush1.msra.mxu0 %v1412
    %2068 = vmatprep.subr.mxu0 %v1420
    %2069 = vmatpush1.msra.mxu0 %v1419
    %2070 = vmatprep.subr.mxu0 %v1427
    %2071 = vmatpush1.msra.mxu0 %v1426
    %2072 = vmatprep.subr.mxu0 %v1434
    %2073 = vmatpush1.msra.mxu0 %v1433
    %2074 = vmatprep.subr.mxu0 %v1441
    %2075 = vmatpush1.msra.mxu0 %v1440
    %2076 = vmatprep.subr.mxu0 %v1448
    %2077 = vmatpush1.msra.mxu0 %v1447
    %2078 = vmatprep.subr.mxu0 %v1455
    %2079 = vmatpush1.msra.mxu0 %v1454
    %2080 = vmatprep.subr.mxu0 %v1462
    %2081 = vmatpush1.msra.mxu0 %v1461
    %2082 = vmatprep.subr.mxu0 %v1469
    %2083 = vmatpush1.msra.mxu0 %v1468
    %2084 = vmatprep.subr.mxu0 %v1476
    %2085 = vmatpush1.msra.mxu0 %v1475
    %2086 = vmatprep.subr.mxu0 %v1483
    %2087 = vmatpush1.msra.mxu0 %v1482
    %2088 = vmatprep.subr.mxu0 %v1490
    %2089 = vmatpush1.msra.mxu0 %v1489
    %2090 = vmatprep.subr.mxu0 %v1497
    %2091 = vmatpush1.msra.mxu0 %v1496
    %2092 = vmatprep.subr.mxu0 %v1504
    %2093 = vmatpush1.msra.mxu0 %v1503
    %2094 = vmatprep.subr.mxu0 %v1511
    %2095 = vmatpush1.msra.mxu0 %v1510
    %2096 = vmatprep.subr.mxu0 %v1518
    %2097 = vmatpush1.msra.mxu0 %v1517
    %2098 = vmatprep.subr.mxu0 %v1525
    %2099 = vmatpush1.msra.mxu0 %v1524
    %2100 = vmatprep.subr.mxu0 %v1532
    %2101 = vmatpush1.msra.mxu0 %v1531
    %2102 = vmatprep.subr.mxu0 %v1539
    %2103 = vmatpush1.msra.mxu0 %v1538
    %2104 = vmatprep.subr.mxu0 %v1546
    %2105 = vmatpush1.msra.mxu0 %v1545
    %2106 = vmatprep.subr.mxu0 %v1553
    %2107 = vmatpush1.msra.mxu0 %v1552
    %2108 = vmatprep.subr.mxu0 %v1560
    %2109 = vmatpush1.msra.mxu0 %v1559
    %2110 = vmatprep.subr.mxu0 %v1567
    %2111 = vmatpush1.msra.mxu0 %v1566
    %2112 = vmatprep.subr.mxu0 %v1574
    %2113 = vmatpush1.msra.mxu0 %v1573
    %2114 = vmatprep.subr.mxu0 %v1581
    %2115 = vmatpush1.msra.mxu0 %v1580
    %2116 = vmatprep.subr.mxu0 %v1588
    %2117 = vmatpush1.msra.mxu0 %v1587
    %2118 = vmatprep.subr.mxu0 %v1595
    %2119 = vmatpush1.msra.mxu0 %v1594
    %2120 = vmatprep.subr.mxu0 %v1602
    %2121 = vmatpush1.msra.mxu0 %v1601
    %2122 = vmatprep.mubr.f32.mxu0 %v1135
    %2123 = vmatmul.mubr.f32.gmra.mrb[0].mxu0 %v1134
    %v2124 = vpop.f32.mrb[0].mxu0
    %v2125 = vadd.f32 %v2048, %v2124
    %v2126 = vpop.f32.mrb[0].mxu0
    %v2127 = vadd.f32 %v2050, %v2126
    %2128 = vmatprep.mubr.f32.mxu0 %v1156
    %2129 = vmatmul.mubr.f32.gmra.mrb[0].mxu0 %v1155
    %v2130 = vpop.f32.mrb[0].mxu0
    %v2131 = vadd.f32 %v2054, %v2130
    %v2132 = vpop.f32.mrb[0].mxu0
    %v2133 = vadd.f32 %v2056, %v2132
    %2134 = vdwg.mxu0
    %2135 = vmatprep.subr.mxu0 %v1609
    %2136 = vmatpush1.msra.mxu0 %v1608
    %2137 = vmatprep.subr.mxu0 %v1616
    %2138 = vmatpush1.msra.mxu0 %v1615
    %2139 = vmatprep.subr.mxu0 %v1623
    %2140 = vmatpush1.msra.mxu0 %v1622
    %2141 = vmatprep.subr.mxu0 %v1630
    %2142 = vmatpush1.msra.mxu0 %v1629
    %2143 = vmatprep.subr.mxu0 %v1637
    %2144 = vmatpush1.msra.mxu0 %v1636
    %2145 = vmatprep.subr.mxu0 %v1644
    %2146 = vmatpush1.msra.mxu0 %v1643
    %2147 = vmatprep.subr.mxu0 %v1651
    %2148 = vmatpush1.msra.mxu0 %v1650
    %2149 = vmatprep.subr.mxu0 %v1658
    %2150 = vmatpush1.msra.mxu0 %v1657
    %2151 = vmatprep.subr.mxu0 %v1665
    %2152 = vmatpush1.msra.mxu0 %v1664
    %2153 = vmatprep.subr.mxu0 %v1672
    %2154 = vmatpush1.msra.mxu0 %v1671
    %2155 = vmatprep.subr.mxu0 %v1679
    %2156 = vmatpush1.msra.mxu0 %v1678
    %2157 = vmatprep.subr.mxu0 %v1686
    %2158 = vmatpush1.msra.mxu0 %v1685
    %2159 = vmatprep.subr.mxu0 %v1693
    %2160 = vmatpush1.msra.mxu0 %v1692
    %2161 = vmatprep.subr.mxu0 %v1700
    %2162 = vmatpush1.msra.mxu0 %v1699
    %2163 = vmatprep.subr.mxu0 %v1707
    %2164 = vmatpush1.msra.mxu0 %v1706
    %2165 = vmatprep.subr.mxu0 %v1714
    %2166 = vmatpush1.msra.mxu0 %v1713
    %2167 = vmatprep.subr.mxu0 %v1721
    %2168 = vmatpush1.msra.mxu0 %v1720
    %2169 = vmatprep.subr.mxu0 %v1728
    %2170 = vmatpush1.msra.mxu0 %v1727
    %2171 = vmatprep.subr.mxu0 %v1735
    %2172 = vmatpush1.msra.mxu0 %v1734
    %2173 = vmatprep.subr.mxu0 %v1742
    %2174 = vmatpush1.msra.mxu0 %v1741
    %2175 = vmatprep.subr.mxu0 %v1749
    %2176 = vmatpush1.msra.mxu0 %v1748
    %2177 = vmatprep.subr.mxu0 %v1756
    %2178 = vmatpush1.msra.mxu0 %v1755
    %2179 = vmatprep.subr.mxu0 %v1763
    %2180 = vmatpush1.msra.mxu0 %v1762
    %2181 = vmatprep.subr.mxu0 %v1770
    %2182 = vmatpush1.msra.mxu0 %v1769
    %2183 = vmatprep.subr.mxu0 %v1777
    %2184 = vmatpush1.msra.mxu0 %v1776
    %2185 = vmatprep.subr.mxu0 %v1784
    %2186 = vmatpush1.msra.mxu0 %v1783
    %2187 = vmatprep.subr.mxu0 %v1791
    %2188 = vmatpush1.msra.mxu0 %v1790
    %2189 = vmatprep.subr.mxu0 %v1798
    %2190 = vmatpush1.msra.mxu0 %v1797
    %2191 = vmatprep.subr.mxu0 %v1805
    %2192 = vmatpush1.msra.mxu0 %v1804
    %2193 = vmatprep.subr.mxu0 %v1812
    %2194 = vmatpush1.msra.mxu0 %v1811
    %2195 = vmatprep.subr.mxu0 %v1819
    %2196 = vmatpush1.msra.mxu0 %v1818
    %2197 = vmatprep.subr.mxu0 %v1826
    %2198 = vmatpush1.msra.mxu0 %v1825
    %2199 = vmatprep.mubr.f32.mxu0 %v1137
    %2200 = vmatmul.mubr.f32.gmra.mrb[0].mxu0 %v1136
    %v2201 = vpop.f32.mrb[0].mxu0
    %v2202 = vadd.f32 %v2125, %v2201
    %v2203 = vpop.f32.mrb[0].mxu0
    %v2204 = vadd.f32 %v2127, %v2203
    %2205 = vmatprep.mubr.f32.mxu0 %v1158
    %2206 = vmatmul.mubr.f32.gmra.mrb[0].mxu0 %v1157
    %v2207 = vpop.f32.mrb[0].mxu0
    %v2208 = vadd.f32 %v2131, %v2207
    %v2209 = vpop.f32.mrb[0].mxu0
    %v2210 = vadd.f32 %v2133, %v2209
    %2211 = vdwg.mxu0
    %2212 = vmatprep.subr.mxu0 %v1833
    %2213 = vmatpush1.msra.mxu0 %v1832
    %2214 = vmatprep.subr.mxu0 %v1840
    %2215 = vmatpush1.msra.mxu0 %v1839
    %2216 = vmatprep.subr.mxu0 %v1847
    %2217 = vmatpush1.msra.mxu0 %v1846
    %2218 = vmatprep.subr.mxu0 %v1854
    %2219 = vmatpush1.msra.mxu0 %v1853
    %2220 = vmatprep.subr.mxu0 %v1861
    %2221 = vmatpush1.msra.mxu0 %v1860
    %2222 = vmatprep.subr.mxu0 %v1868
    %2223 = vmatpush1.msra.mxu0 %v1867
    %2224 = vmatprep.subr.mxu0 %v1875
    %2225 = vmatpush1.msra.mxu0 %v1874
    %2226 = vmatprep.subr.mxu0 %v1882
    %2227 = vmatpush1.msra.mxu0 %v1881
    %2228 = vmatprep.subr.mxu0 %v1889
    %2229 = vmatpush1.msra.mxu0 %v1888
    %2230 = vmatprep.subr.mxu0 %v1896
    %2231 = vmatpush1.msra.mxu0 %v1895
    %2232 = vmatprep.subr.mxu0 %v1903
    %2233 = vmatpush1.msra.mxu0 %v1902
    %2234 = vmatprep.subr.mxu0 %v1910
    %2235 = vmatpush1.msra.mxu0 %v1909
    %2236 = vmatprep.subr.mxu0 %v1917
    %2237 = vmatpush1.msra.mxu0 %v1916
    %2238 = vmatprep.subr.mxu0 %v1924
    %2239 = vmatpush1.msra.mxu0 %v1923
    %2240 = vmatprep.subr.mxu0 %v1931
    %2241 = vmatpush1.msra.mxu0 %v1930
    %2242 = vmatprep.subr.mxu0 %v1938
    %2243 = vmatpush1.msra.mxu0 %v1937
    %2244 = vmatprep.subr.mxu0 0.0
    %2245 = vmatpush1.msra.mxu0 0.0
    %2246 = vmatprep.subr.mxu0 0.0
    %2247 = vmatpush1.msra.mxu0 0.0
    %2248 = vmatprep.subr.mxu0 0.0
    %2249 = vmatpush1.msra.mxu0 0.0
    %2250 = vmatprep.subr.mxu0 0.0
    %2251 = vmatpush1.msra.mxu0 0.0
    %2252 = vmatprep.subr.mxu0 0.0
    %2253 = vmatpush1.msra.mxu0 0.0
    %2254 = vmatprep.subr.mxu0 0.0
    %2255 = vmatpush1.msra.mxu0 0.0
    %2256 = vmatprep.subr.mxu0 0.0
    %2257 = vmatpush1.msra.mxu0 0.0
    %2258 = vmatprep.subr.mxu0 0.0
    %2259 = vmatpush1.msra.mxu0 0.0
    %2260 = vmatprep.subr.mxu0 0.0
    %2261 = vmatpush1.msra.mxu0 0.0
    %2262 = vmatprep.subr.mxu0 0.0
    %2263 = vmatpush1.msra.mxu0 0.0
    %2264 = vmatprep.subr.mxu0 0.0
    %2265 = vmatpush1.msra.mxu0 0.0
    %2266 = vmatprep.subr.mxu0 0.0
    %2267 = vmatpush1.msra.mxu0 0.0
    %2268 = vmatprep.subr.mxu0 0.0
    %2269 = vmatpush1.msra.mxu0 0.0
    %2270 = vmatprep.subr.mxu0 0.0
    %2271 = vmatpush1.msra.mxu0 0.0
    %2272 = vmatprep.subr.mxu0 0.0
    %2273 = vmatpush1.msra.mxu0 0.0
    %2274 = vmatprep.subr.mxu0 0.0
    %2275 = vmatpush1.msra.mxu0 0.0
    %2276 = vmatprep.mubr.f32.mxu0 0.0
    %2277 = vmatmul.mubr.f32.gmra.mrb[0].mxu0 %v1138
    %v2278 = vpop.f32.mrb[0].mxu0
    %v2279 = vadd.f32 %v2202, %v2278
    %v2280 = vpop.f32.mrb[0].mxu0
    %v2281 = vadd.f32 %v2204, %v2280
    %2282 = vmatprep.mubr.f32.mxu0 0.0
    %2283 = vmatmul.mubr.f32.gmra.mrb[0].mxu0 %v1159
    %v2284 = vpop.f32.mrb[0].mxu0
    %v2285 = vadd.f32 %v2208, %v2284
    %v2286 = vpop.f32.mrb[0].mxu0
    %v2287 = vadd.f32 %v2210, %v2286
    %2288 = vdwg.mxu0
    %2289 = vmatprep.subr.mxu0 %v1163
    %2290 = vmatpush1.msra.mxu0 %v1162
    %2291 = vmatprep.subr.mxu0 %v1170
    %2292 = vmatpush1.msra.mxu0 %v1169
    %2293 = vmatprep.subr.mxu0 %v1177
    %2294 = vmatpush1.msra.mxu0 %v1176
    %2295 = vmatprep.subr.mxu0 %v1184
    %2296 = vmatpush1.msra.mxu0 %v1183
    %2297 = vmatprep.subr.mxu0 %v1191
    %2298 = vmatpush1.msra.mxu0 %v1190
    %2299 = vmatprep.subr.mxu0 %v1198
    %2300 = vmatpush1.msra.mxu0 %v1197
    %2301 = vmatprep.subr.mxu0 %v1205
    %2302 = vmatpush1.msra.mxu0 %v1204
    %2303 = vmatprep.subr.mxu0 %v1212
    %2304 = vmatpush1.msra.mxu0 %v1211
    %2305 = vmatprep.subr.mxu0 %v1219
    %2306 = vmatpush1.msra.mxu0 %v1218
    %2307 = vmatprep.subr.mxu0 %v1226
    %2308 = vmatpush1.msra.mxu0 %v1225
    %2309 = vmatprep.subr.mxu0 %v1233
    %2310 = vmatpush1.msra.mxu0 %v1232
    %2311 = vmatprep.subr.mxu0 %v1240
    %2312 = vmatpush1.msra.mxu0 %v1239
    %2313 = vmatprep.subr.mxu0 %v1247
    %2314 = vmatpush1.msra.mxu0 %v1246
    %2315 = vmatprep.subr.mxu0 %v1254
    %2316 = vmatpush1.msra.mxu0 %v1253
    %2317 = vmatprep.subr.mxu0 %v1261
    %2318 = vmatpush1.msra.mxu0 %v1260
    %2319 = vmatprep.subr.mxu0 %v1268
    %2320 = vmatpush1.msra.mxu0 %v1267
    %2321 = vmatprep.subr.mxu0 %v1275
    %2322 = vmatpush1.msra.mxu0 %v1274
    %2323 = vmatprep.subr.mxu0 %v1282
    %2324 = vmatpush1.msra.mxu0 %v1281
    %2325 = vmatprep.subr.mxu0 %v1289
    %2326 = vmatpush1.msra.mxu0 %v1288
    %2327 = vmatprep.subr.mxu0 %v1296
    %2328 = vmatpush1.msra.mxu0 %v1295
    %2329 = vmatprep.subr.mxu0 %v1303
    %2330 = vmatpush1.msra.mxu0 %v1302
    %2331 = vmatprep.subr.mxu0 %v1310
    %2332 = vmatpush1.msra.mxu0 %v1309
    %2333 = vmatprep.subr.mxu0 %v1317
    %2334 = vmatpush1.msra.mxu0 %v1316
    %2335 = vmatprep.subr.mxu0 %v1324
    %2336 = vmatpush1.msra.mxu0 %v1323
    %2337 = vmatprep.subr.mxu0 %v1331
    %2338 = vmatpush1.msra.mxu0 %v1330
    %2339 = vmatprep.subr.mxu0 %v1338
    %2340 = vmatpush1.msra.mxu0 %v1337
    %2341 = vmatprep.subr.mxu0 %v1345
    %2342 = vmatpush1.msra.mxu0 %v1344
    %2343 = vmatprep.subr.mxu0 %v1352
    %2344 = vmatpush1.msra.mxu0 %v1351
    %2345 = vmatprep.subr.mxu0 %v1359
    %2346 = vmatpush1.msra.mxu0 %v1358
    %2347 = vmatprep.subr.mxu0 %v1366
    %2348 = vmatpush1.msra.mxu0 %v1365
    %2349 = vmatprep.subr.mxu0 %v1373
    %2350 = vmatpush1.msra.mxu0 %v1372
    %2351 = vmatprep.subr.mxu0 %v1380
    %2352 = vmatpush1.msra.mxu0 %v1379
    %2353 = vmatprep.mubr.f32.mxu0 %v1133
    %2354 = vmatmul.mubr.f32.gmra.mrb[0].mxu0 %v1132
    %v2355 = vpop.f32.mrb[0].mxu0
    %v2356 = vadd.f32 %v1957, %v2355
    %v2357 = vpop.f32.mrb[0].mxu0
    %v2358 = vadd.f32 %v1961, %v2357
    %2359 = vmatprep.mubr.f32.mxu0 %v1154
    %2360 = vmatmul.mubr.f32.gmra.mrb[0].mxu0 %v1153
    %v2361 = vpop.f32.mrb[0].mxu0
    %v2362 = vadd.f32 %v1957, %v2361
    %v2363 = vpop.f32.mrb[0].mxu0
    %v2364 = vadd.f32 %v1961, %v2363
    %2365 = vdwg.mxu0
    %2366 = vmatprep.subr.mxu0 %v1387
    %2367 = vmatpush1.msra.mxu0 %v1386
    %2368 = vmatprep.subr.mxu0 %v1394
    %2369 = vmatpush1.msra.mxu0 %v1393
    %2370 = vmatprep.subr.mxu0 %v1401
    %2371 = vmatpush1.msra.mxu0 %v1400
    %2372 = vmatprep.subr.mxu0 %v1408
    %2373 = vmatpush1.msra.mxu0 %v1407
    %2374 = vmatprep.subr.mxu0 %v1415
    %2375 = vmatpush1.msra.mxu0 %v1414
    %2376 = vmatprep.subr.mxu0 %v1422
    %2377 = vmatpush1.msra.mxu0 %v1421
    %2378 = vmatprep.subr.mxu0 %v1429
    %2379 = vmatpush1.msra.mxu0 %v1428
    %2380 = vmatprep.subr.mxu0 %v1436
    %2381 = vmatpush1.msra.mxu0 %v1435
    %2382 = vmatprep.subr.mxu0 %v1443
    %2383 = vmatpush1.msra.mxu0 %v1442
    %2384 = vmatprep.subr.mxu0 %v1450
    %2385 = vmatpush1.msra.mxu0 %v1449
    %2386 = vmatprep.subr.mxu0 %v1457
    %2387 = vmatpush1.msra.mxu0 %v1456
    %2388 = vmatprep.subr.mxu0 %v1464
    %2389 = vmatpush1.msra.mxu0 %v1463
    %2390 = vmatprep.subr.mxu0 %v1471
    %2391 = vmatpush1.msra.mxu0 %v1470
    %2392 = vmatprep.subr.mxu0 %v1478
    %2393 = vmatpush1.msra.mxu0 %v1477
    %2394 = vmatprep.subr.mxu0 %v1485
    %2395 = vmatpush1.msra.mxu0 %v1484
    %2396 = vmatprep.subr.mxu0 %v1492
    %2397 = vmatpush1.msra.mxu0 %v1491
    %2398 = vmatprep.subr.mxu0 %v1499
    %2399 = vmatpush1.msra.mxu0 %v1498
    %2400 = vmatprep.subr.mxu0 %v1506
    %2401 = vmatpush1.msra.mxu0 %v1505
    %2402 = vmatprep.subr.mxu0 %v1513
    %2403 = vmatpush1.msra.mxu0 %v1512
    %2404 = vmatprep.subr.mxu0 %v1520
    %2405 = vmatpush1.msra.mxu0 %v1519
    %2406 = vmatprep.subr.mxu0 %v1527
    %2407 = vmatpush1.msra.mxu0 %v1526
    %2408 = vmatprep.subr.mxu0 %v1534
    %2409 = vmatpush1.msra.mxu0 %v1533
    %2410 = vmatprep.subr.mxu0 %v1541
    %2411 = vmatpush1.msra.mxu0 %v1540
    %2412 = vmatprep.subr.mxu0 %v1548
    %2413 = vmatpush1.msra.mxu0 %v1547
    %2414 = vmatprep.subr.mxu0 %v1555
    %2415 = vmatpush1.msra.mxu0 %v1554
    %2416 = vmatprep.subr.mxu0 %v1562
    %2417 = vmatpush1.msra.mxu0 %v1561
    %2418 = vmatprep.subr.mxu0 %v1569
    %2419 = vmatpush1.msra.mxu0 %v1568
    %2420 = vmatprep.subr.mxu0 %v1576
    %2421 = vmatpush1.msra.mxu0 %v1575
    %2422 = vmatprep.subr.mxu0 %v1583
    %2423 = vmatpush1.msra.mxu0 %v1582
    %2424 = vmatprep.subr.mxu0 %v1590
    %2425 = vmatpush1.msra.mxu0 %v1589
    %2426 = vmatprep.subr.mxu0 %v1597
    %2427 = vmatpush1.msra.mxu0 %v1596
    %2428 = vmatprep.subr.mxu0 %v1604
    %2429 = vmatpush1.msra.mxu0 %v1603
    %2430 = vmatprep.mubr.f32.mxu0 %v1135
    %2431 = vmatmul.mubr.f32.gmra.mrb[0].mxu0 %v1134
    %v2432 = vpop.f32.mrb[0].mxu0
    %v2433 = vadd.f32 %v2356, %v2432
    %v2434 = vpop.f32.mrb[0].mxu0
    %v2435 = vadd.f32 %v2358, %v2434
    %2436 = vmatprep.mubr.f32.mxu0 %v1156
    %2437 = vmatmul.mubr.f32.gmra.mrb[0].mxu0 %v1155
    %v2438 = vpop.f32.mrb[0].mxu0
    %v2439 = vadd.f32 %v2362, %v2438
    %v2440 = vpop.f32.mrb[0].mxu0
    %v2441 = vadd.f32 %v2364, %v2440
    %2442 = vdwg.mxu0
    %2443 = vmatprep.subr.mxu0 %v1611
    %2444 = vmatpush1.msra.mxu0 %v1610
    %2445 = vmatprep.subr.mxu0 %v1618
    %2446 = vmatpush1.msra.mxu0 %v1617
    %2447 = vmatprep.subr.mxu0 %v1625
    %2448 = vmatpush1.msra.mxu0 %v1624
    %2449 = vmatprep.subr.mxu0 %v1632
    %2450 = vmatpush1.msra.mxu0 %v1631
    %2451 = vmatprep.subr.mxu0 %v1639
    %2452 = vmatpush1.msra.mxu0 %v1638
    %2453 = vmatprep.subr.mxu0 %v1646
    %2454 = vmatpush1.msra.mxu0 %v1645
    %2455 = vmatprep.subr.mxu0 %v1653
    %2456 = vmatpush1.msra.mxu0 %v1652
    %2457 = vmatprep.subr.mxu0 %v1660
    %2458 = vmatpush1.msra.mxu0 %v1659
    %2459 = vmatprep.subr.mxu0 %v1667
    %2460 = vmatpush1.msra.mxu0 %v1666
    %2461 = vmatprep.subr.mxu0 %v1674
    %2462 = vmatpush1.msra.mxu0 %v1673
    %2463 = vmatprep.subr.mxu0 %v1681
    %2464 = vmatpush1.msra.mxu0 %v1680
    %2465 = vmatprep.subr.mxu0 %v1688
    %2466 = vmatpush1.msra.mxu0 %v1687
    %2467 = vmatprep.subr.mxu0 %v1695
    %2468 = vmatpush1.msra.mxu0 %v1694
    %2469 = vmatprep.subr.mxu0 %v1702
    %2470 = vmatpush1.msra.mxu0 %v1701
    %2471 = vmatprep.subr.mxu0 %v1709
    %2472 = vmatpush1.msra.mxu0 %v1708
    %2473 = vmatprep.subr.mxu0 %v1716
    %2474 = vmatpush1.msra.mxu0 %v1715
    %2475 = vmatprep.subr.mxu0 %v1723
    %2476 = vmatpush1.msra.mxu0 %v1722
    %2477 = vmatprep.subr.mxu0 %v1730
    %2478 = vmatpush1.msra.mxu0 %v1729
    %2479 = vmatprep.subr.mxu0 %v1737
    %2480 = vmatpush1.msra.mxu0 %v1736
    %2481 = vmatprep.subr.mxu0 %v1744
    %2482 = vmatpush1.msra.mxu0 %v1743
    %2483 = vmatprep.subr.mxu0 %v1751
    %2484 = vmatpush1.msra.mxu0 %v1750
    %2485 = vmatprep.subr.mxu0 %v1758
    %2486 = vmatpush1.msra.mxu0 %v1757
    %2487 = vmatprep.subr.mxu0 %v1765
    %2488 = vmatpush1.msra.mxu0 %v1764
    %2489 = vmatprep.subr.mxu0 %v1772
    %2490 = vmatpush1.msra.mxu0 %v1771
    %2491 = vmatprep.subr.mxu0 %v1779
    %2492 = vmatpush1.msra.mxu0 %v1778
    %2493 = vmatprep.subr.mxu0 %v1786
    %2494 = vmatpush1.msra.mxu0 %v1785
    %2495 = vmatprep.subr.mxu0 %v1793
    %2496 = vmatpush1.msra.mxu0 %v1792
    %2497 = vmatprep.subr.mxu0 %v1800
    %2498 = vmatpush1.msra.mxu0 %v1799
    %2499 = vmatprep.subr.mxu0 %v1807
    %2500 = vmatpush1.msra.mxu0 %v1806
    %2501 = vmatprep.subr.mxu0 %v1814
    %2502 = vmatpush1.msra.mxu0 %v1813
    %2503 = vmatprep.subr.mxu0 %v1821
    %2504 = vmatpush1.msra.mxu0 %v1820
    %2505 = vmatprep.subr.mxu0 %v1828
    %2506 = vmatpush1.msra.mxu0 %v1827
    %2507 = vmatprep.mubr.f32.mxu0 %v1137
    %2508 = vmatmul.mubr.f32.gmra.mrb[0].mxu0 %v1136
    %v2509 = vpop.f32.mrb[0].mxu0
    %v2510 = vadd.f32 %v2433, %v2509
    %v2511 = vpop.f32.mrb[0].mxu0
    %v2512 = vadd.f32 %v2435, %v2511
    %2513 = vmatprep.mubr.f32.mxu0 %v1158
    %2514 = vmatmul.mubr.f32.gmra.mrb[0].mxu0 %v1157
    %v2515 = vpop.f32.mrb[0].mxu0
    %v2516 = vadd.f32 %v2439, %v2515
    %v2517 = vpop.f32.mrb[0].mxu0
    %v2518 = vadd.f32 %v2441, %v2517
    %2519 = vdwg.mxu0
    %2520 = vmatprep.subr.mxu0 %v1835
    %2521 = vmatpush1.msra.mxu0 %v1834
    %2522 = vmatprep.subr.mxu0 %v1842
    %2523 = vmatpush1.msra.mxu0 %v1841
    %2524 = vmatprep.subr.mxu0 %v1849
    %2525 = vmatpush1.msra.mxu0 %v1848
    %2526 = vmatprep.subr.mxu0 %v1856
    %2527 = vmatpush1.msra.mxu0 %v1855
    %2528 = vmatprep.subr.mxu0 %v1863
    %2529 = vmatpush1.msra.mxu0 %v1862
    %2530 = vmatprep.subr.mxu0 %v1870
    %2531 = vmatpush1.msra.mxu0 %v1869
    %2532 = vmatprep.subr.mxu0 %v1877
    %2533 = vmatpush1.msra.mxu0 %v1876
    %2534 = vmatprep.subr.mxu0 %v1884
    %2535 = vmatpush1.msra.mxu0 %v1883
    %2536 = vmatprep.subr.mxu0 %v1891
    %2537 = vmatpush1.msra.mxu0 %v1890
    %2538 = vmatprep.subr.mxu0 %v1898
    %2539 = vmatpush1.msra.mxu0 %v1897
    %2540 = vmatprep.subr.mxu0 %v1905
    %2541 = vmatpush1.msra.mxu0 %v1904
    %2542 = vmatprep.subr.mxu0 %v1912
    %2543 = vmatpush1.msra.mxu0 %v1911
    %2544 = vmatprep.subr.mxu0 %v1919
    %2545 = vmatpush1.msra.mxu0 %v1918
    %2546 = vmatprep.subr.mxu0 %v1926
    %2547 = vmatpush1.msra.mxu0 %v1925
    %2548 = vmatprep.subr.mxu0 %v1933
    %2549 = vmatpush1.msra.mxu0 %v1932
    %2550 = vmatprep.subr.mxu0 %v1940
    %2551 = vmatpush1.msra.mxu0 %v1939
    %2552 = vmatprep.subr.mxu0 0.0
    %2553 = vmatpush1.msra.mxu0 0.0
    %2554 = vmatprep.subr.mxu0 0.0
    %2555 = vmatpush1.msra.mxu0 0.0
    %2556 = vmatprep.subr.mxu0 0.0
    %2557 = vmatpush1.msra.mxu0 0.0
    %2558 = vmatprep.subr.mxu0 0.0
    %2559 = vmatpush1.msra.mxu0 0.0
    %2560 = vmatprep.subr.mxu0 0.0
    %2561 = vmatpush1.msra.mxu0 0.0
    %2562 = vmatprep.subr.mxu0 0.0
    %2563 = vmatpush1.msra.mxu0 0.0
    %2564 = vmatprep.subr.mxu0 0.0
    %2565 = vmatpush1.msra.mxu0 0.0
    %2566 = vmatprep.subr.mxu0 0.0
    %2567 = vmatpush1.msra.mxu0 0.0
    %2568 = vmatprep.subr.mxu0 0.0
    %2569 = vmatpush1.msra.mxu0 0.0
    %2570 = vmatprep.subr.mxu0 0.0
    %2571 = vmatpush1.msra.mxu0 0.0
    %2572 = vmatprep.subr.mxu0 0.0
    %2573 = vmatpush1.msra.mxu0 0.0
    %2574 = vmatprep.subr.mxu0 0.0
    %2575 = vmatpush1.msra.mxu0 0.0
    %2576 = vmatprep.subr.mxu0 0.0
    %2577 = vmatpush1.msra.mxu0 0.0
    %2578 = vmatprep.subr.mxu0 0.0
    %2579 = vmatpush1.msra.mxu0 0.0
    %2580 = vmatprep.subr.mxu0 0.0
    %2581 = vmatpush1.msra.mxu0 0.0
    %2582 = vmatprep.subr.mxu0 0.0
    %2583 = vmatpush1.msra.mxu0 0.0
    %2584 = vmatprep.mubr.f32.mxu0 0.0
    %2585 = vmatmul.mubr.f32.gmra.mrb[0].mxu0 %v1138
    %v2586 = vpop.f32.mrb[0].mxu0
    %v2587 = vadd.f32 %v2510, %v2586
    %v2588 = vpop.f32.mrb[0].mxu0
    %v2589 = vadd.f32 %v2512, %v2588
    %2590 = vmatprep.mubr.f32.mxu0 0.0
    %2591 = vmatmul.mubr.f32.gmra.mrb[0].mxu0 %v1159
    %v2592 = vpop.f32.mrb[0].mxu0
    %v2593 = vadd.f32 %v2516, %v2592
    %v2594 = vpop.f32.mrb[0].mxu0
    %v2595 = vadd.f32 %v2518, %v2594
    %2596 = vdwg.mxu0
    %2597 = vmatprep.subr.mxu0 %v1165
    %2598 = vmatpush1.msra.mxu0 %v1164
    %2599 = vmatprep.subr.mxu0 %v1172
    %2600 = vmatpush1.msra.mxu0 %v1171
    %2601 = vmatprep.subr.mxu0 %v1179
    %2602 = vmatpush1.msra.mxu0 %v1178
    %2603 = vmatprep.subr.mxu0 %v1186
    %2604 = vmatpush1.msra.mxu0 %v1185
    %2605 = vmatprep.subr.mxu0 %v1193
    %2606 = vmatpush1.msra.mxu0 %v1192
    %2607 = vmatprep.subr.mxu0 %v1200
    %2608 = vmatpush1.msra.mxu0 %v1199
    %2609 = vmatprep.subr.mxu0 %v1207
    %2610 = vmatpush1.msra.mxu0 %v1206
    %2611 = vmatprep.subr.mxu0 %v1214
    %2612 = vmatpush1.msra.mxu0 %v1213
    %2613 = vmatprep.subr.mxu0 %v1221
    %2614 = vmatpush1.msra.mxu0 %v1220
    %2615 = vmatprep.subr.mxu0 %v1228
    %2616 = vmatpush1.msra.mxu0 %v1227
    %2617 = vmatprep.subr.mxu0 %v1235
    %2618 = vmatpush1.msra.mxu0 %v1234
    %2619 = vmatprep.subr.mxu0 %v1242
    %2620 = vmatpush1.msra.mxu0 %v1241
    %2621 = vmatprep.subr.mxu0 %v1249
    %2622 = vmatpush1.msra.mxu0 %v1248
    %2623 = vmatprep.subr.mxu0 %v1256
    %2624 = vmatpush1.msra.mxu0 %v1255
    %2625 = vmatprep.subr.mxu0 %v1263
    %2626 = vmatpush1.msra.mxu0 %v1262
    %2627 = vmatprep.subr.mxu0 %v1270
    %2628 = vmatpush1.msra.mxu0 %v1269
    %2629 = vmatprep.subr.mxu0 %v1277
    %2630 = vmatpush1.msra.mxu0 %v1276
    %2631 = vmatprep.subr.mxu0 %v1284
    %2632 = vmatpush1.msra.mxu0 %v1283
    %2633 = vmatprep.subr.mxu0 %v1291
    %2634 = vmatpush1.msra.mxu0 %v1290
    %2635 = vmatprep.subr.mxu0 %v1298
    %2636 = vmatpush1.msra.mxu0 %v1297
    %2637 = vmatprep.subr.mxu0 %v1305
    %2638 = vmatpush1.msra.mxu0 %v1304
    %2639 = vmatprep.subr.mxu0 %v1312
    %2640 = vmatpush1.msra.mxu0 %v1311
    %2641 = vmatprep.subr.mxu0 %v1319
    %2642 = vmatpush1.msra.mxu0 %v1318
    %2643 = vmatprep.subr.mxu0 %v1326
    %2644 = vmatpush1.msra.mxu0 %v1325
    %2645 = vmatprep.subr.mxu0 %v1333
    %2646 = vmatpush1.msra.mxu0 %v1332
    %2647 = vmatprep.subr.mxu0 %v1340
    %2648 = vmatpush1.msra.mxu0 %v1339
    %2649 = vmatprep.subr.mxu0 %v1347
    %2650 = vmatpush1.msra.mxu0 %v1346
    %2651 = vmatprep.subr.mxu0 %v1354
    %2652 = vmatpush1.msra.mxu0 %v1353
    %2653 = vmatprep.subr.mxu0 %v1361
    %2654 = vmatpush1.msra.mxu0 %v1360
    %2655 = vmatprep.subr.mxu0 %v1368
    %2656 = vmatpush1.msra.mxu0 %v1367
    %2657 = vmatprep.subr.mxu0 %v1375
    %2658 = vmatpush1.msra.mxu0 %v1374
    %2659 = vmatprep.subr.mxu0 %v1382
    %2660 = vmatpush1.msra.mxu0 %v1381
    %2661 = vmatprep.mubr.f32.mxu0 %v1133
    %2662 = vmatmul.mubr.f32.gmra.mrb[0].mxu0 %v1132
    %v2663 = vpop.f32.mrb[0].mxu0
    %v2664 = vadd.f32 %v1965, %v2663
    %v2665 = vpop.f32.mrb[0].mxu0
    %v2666 = vadd.f32 %v1969, %v2665
    %2667 = vmatprep.mubr.f32.mxu0 %v1154
    %2668 = vmatmul.mubr.f32.gmra.mrb[0].mxu0 %v1153
    %v2669 = vpop.f32.mrb[0].mxu0
    %v2670 = vadd.f32 %v1965, %v2669
    %v2671 = vpop.f32.mrb[0].mxu0
    %v2672 = vadd.f32 %v1969, %v2671
    %2673 = vdwg.mxu0
    %2674 = vmatprep.subr.mxu0 %v1389
    %2675 = vmatpush1.msra.mxu0 %v1388
    %2676 = vmatprep.subr.mxu0 %v1396
    %2677 = vmatpush1.msra.mxu0 %v1395
    %2678 = vmatprep.subr.mxu0 %v1403
    %2679 = vmatpush1.msra.mxu0 %v1402
    %2680 = vmatprep.subr.mxu0 %v1410
    %2681 = vmatpush1.msra.mxu0 %v1409
    %2682 = vmatprep.subr.mxu0 %v1417
    %2683 = vmatpush1.msra.mxu0 %v1416
    %2684 = vmatprep.subr.mxu0 %v1424
    %2685 = vmatpush1.msra.mxu0 %v1423
    %2686 = vmatprep.subr.mxu0 %v1431
    %2687 = vmatpush1.msra.mxu0 %v1430
    %2688 = vmatprep.subr.mxu0 %v1438
    %2689 = vmatpush1.msra.mxu0 %v1437
    %2690 = vmatprep.subr.mxu0 %v1445
    %2691 = vmatpush1.msra.mxu0 %v1444
    %2692 = vmatprep.subr.mxu0 %v1452
    %2693 = vmatpush1.msra.mxu0 %v1451
    %2694 = vmatprep.subr.mxu0 %v1459
    %2695 = vmatpush1.msra.mxu0 %v1458
    %2696 = vmatprep.subr.mxu0 %v1466
    %2697 = vmatpush1.msra.mxu0 %v1465
    %2698 = vmatprep.subr.mxu0 %v1473
    %2699 = vmatpush1.msra.mxu0 %v1472
    %2700 = vmatprep.subr.mxu0 %v1480
    %2701 = vmatpush1.msra.mxu0 %v1479
    %2702 = vmatprep.subr.mxu0 %v1487
    %2703 = vmatpush1.msra.mxu0 %v1486
    %2704 = vmatprep.subr.mxu0 %v1494
    %2705 = vmatpush1.msra.mxu0 %v1493
    %2706 = vmatprep.subr.mxu0 %v1501
    %2707 = vmatpush1.msra.mxu0 %v1500
    %2708 = vmatprep.subr.mxu0 %v1508
    %2709 = vmatpush1.msra.mxu0 %v1507
    %2710 = vmatprep.subr.mxu0 %v1515
    %2711 = vmatpush1.msra.mxu0 %v1514
    %2712 = vmatprep.subr.mxu0 %v1522
    %2713 = vmatpush1.msra.mxu0 %v1521
    %2714 = vmatprep.subr.mxu0 %v1529
    %2715 = vmatpush1.msra.mxu0 %v1528
    %2716 = vmatprep.subr.mxu0 %v1536
    %2717 = vmatpush1.msra.mxu0 %v1535
    %2718 = vmatprep.subr.mxu0 %v1543
    %2719 = vmatpush1.msra.mxu0 %v1542
    %2720 = vmatprep.subr.mxu0 %v1550
    %2721 = vmatpush1.msra.mxu0 %v1549
    %2722 = vmatprep.subr.mxu0 %v1557
    %2723 = vmatpush1.msra.mxu0 %v1556
    %2724 = vmatprep.subr.mxu0 %v1564
    %2725 = vmatpush1.msra.mxu0 %v1563
    %2726 = vmatprep.subr.mxu0 %v1571
    %2727 = vmatpush1.msra.mxu0 %v1570
    %2728 = vmatprep.subr.mxu0 %v1578
    %2729 = vmatpush1.msra.mxu0 %v1577
    %2730 = vmatprep.subr.mxu0 %v1585
    %2731 = vmatpush1.msra.mxu0 %v1584
    %2732 = vmatprep.subr.mxu0 %v1592
    %2733 = vmatpush1.msra.mxu0 %v1591
    %2734 = vmatprep.subr.mxu0 %v1599
    %2735 = vmatpush1.msra.mxu0 %v1598
    %2736 = vmatprep.subr.mxu0 %v1606
    %2737 = vmatpush1.msra.mxu0 %v1605
    %2738 = vmatprep.mubr.f32.mxu0 %v1135
    %2739 = vmatmul.mubr.f32.gmra.mrb[0].mxu0 %v1134
    %v2740 = vpop.f32.mrb[0].mxu0
    %v2741 = vadd.f32 %v2664, %v2740
    %v2742 = vpop.f32.mrb[0].mxu0
    %v2743 = vadd.f32 %v2666, %v2742
    %2744 = vmatprep.mubr.f32.mxu0 %v1156
    %2745 = vmatmul.mubr.f32.gmra.mrb[0].mxu0 %v1155
    %v2746 = vpop.f32.mrb[0].mxu0
    %v2747 = vadd.f32 %v2670, %v2746
    %v2748 = vpop.f32.mrb[0].mxu0
    %v2749 = vadd.f32 %v2672, %v2748
    %2750 = vdwg.mxu0
    %2751 = vmatprep.subr.mxu0 %v1613
    %2752 = vmatpush1.msra.mxu0 %v1612
    %2753 = vmatprep.subr.mxu0 %v1620
    %2754 = vmatpush1.msra.mxu0 %v1619
    %2755 = vmatprep.subr.mxu0 %v1627
    %2756 = vmatpush1.msra.mxu0 %v1626
    %2757 = vmatprep.subr.mxu0 %v1634
    %2758 = vmatpush1.msra.mxu0 %v1633
    %2759 = vmatprep.subr.mxu0 %v1641
    %2760 = vmatpush1.msra.mxu0 %v1640
    %2761 = vmatprep.subr.mxu0 %v1648
    %2762 = vmatpush1.msra.mxu0 %v1647
    %2763 = vmatprep.subr.mxu0 %v1655
    %2764 = vmatpush1.msra.mxu0 %v1654
    %2765 = vmatprep.subr.mxu0 %v1662
    %2766 = vmatpush1.msra.mxu0 %v1661
    %2767 = vmatprep.subr.mxu0 %v1669
    %2768 = vmatpush1.msra.mxu0 %v1668
    %2769 = vmatprep.subr.mxu0 %v1676
    %2770 = vmatpush1.msra.mxu0 %v1675
    %2771 = vmatprep.subr.mxu0 %v1683
    %2772 = vmatpush1.msra.mxu0 %v1682
    %2773 = vmatprep.subr.mxu0 %v1690
    %2774 = vmatpush1.msra.mxu0 %v1689
    %2775 = vmatprep.subr.mxu0 %v1697
    %2776 = vmatpush1.msra.mxu0 %v1696
    %2777 = vmatprep.subr.mxu0 %v1704
    %2778 = vmatpush1.msra.mxu0 %v1703
    %2779 = vmatprep.subr.mxu0 %v1711
    %2780 = vmatpush1.msra.mxu0 %v1710
    %2781 = vmatprep.subr.mxu0 %v1718
    %2782 = vmatpush1.msra.mxu0 %v1717
    %2783 = vmatprep.subr.mxu0 %v1725
    %2784 = vmatpush1.msra.mxu0 %v1724
    %2785 = vmatprep.subr.mxu0 %v1732
    %2786 = vmatpush1.msra.mxu0 %v1731
    %2787 = vmatprep.subr.mxu0 %v1739
    %2788 = vmatpush1.msra.mxu0 %v1738
    %2789 = vmatprep.subr.mxu0 %v1746
    %2790 = vmatpush1.msra.mxu0 %v1745
    %2791 = vmatprep.subr.mxu0 %v1753
    %2792 = vmatpush1.msra.mxu0 %v1752
    %2793 = vmatprep.subr.mxu0 %v1760
    %2794 = vmatpush1.msra.mxu0 %v1759
    %2795 = vmatprep.subr.mxu0 %v1767
    %2796 = vmatpush1.msra.mxu0 %v1766
    %2797 = vmatprep.subr.mxu0 %v1774
    %2798 = vmatpush1.msra.mxu0 %v1773
    %2799 = vmatprep.subr.mxu0 %v1781
    %2800 = vmatpush1.msra.mxu0 %v1780
    %2801 = vmatprep.subr.mxu0 %v1788
    %2802 = vmatpush1.msra.mxu0 %v1787
    %2803 = vmatprep.subr.mxu0 %v1795
    %2804 = vmatpush1.msra.mxu0 %v1794
    %2805 = vmatprep.subr.mxu0 %v1802
    %2806 = vmatpush1.msra.mxu0 %v1801
    %2807 = vmatprep.subr.mxu0 %v1809
    %2808 = vmatpush1.msra.mxu0 %v1808
    %2809 = vmatprep.subr.mxu0 %v1816
    %2810 = vmatpush1.msra.mxu0 %v1815
    %2811 = vmatprep.subr.mxu0 %v1823
    %2812 = vmatpush1.msra.mxu0 %v1822
    %2813 = vmatprep.subr.mxu0 %v1830
    %2814 = vmatpush1.msra.mxu0 %v1829
    %2815 = vmatprep.mubr.f32.mxu0 %v1137
    %2816 = vmatmul.mubr.f32.gmra.mrb[0].mxu0 %v1136
    %v2817 = vpop.f32.mrb[0].mxu0
    %v2818 = vadd.f32 %v2741, %v2817
    %v2819 = vpop.f32.mrb[0].mxu0
    %v2820 = vadd.f32 %v2743, %v2819
    %2821 = vmatprep.mubr.f32.mxu0 %v1158
    %2822 = vmatmul.mubr.f32.gmra.mrb[0].mxu0 %v1157
    %v2823 = vpop.f32.mrb[0].mxu0
    %v2824 = vadd.f32 %v2747, %v2823
    %v2825 = vpop.f32.mrb[0].mxu0
    %v2826 = vadd.f32 %v2749, %v2825
    %2827 = vdwg.mxu0
    %2828 = vmatprep.subr.mxu0 %v1837
    %2829 = vmatpush1.msra.mxu0 %v1836
    %2830 = vmatprep.subr.mxu0 %v1844
    %2831 = vmatpush1.msra.mxu0 %v1843
    %2832 = vmatprep.subr.mxu0 %v1851
    %2833 = vmatpush1.msra.mxu0 %v1850
    %2834 = vmatprep.subr.mxu0 %v1858
    %2835 = vmatpush1.msra.mxu0 %v1857
    %2836 = vmatprep.subr.mxu0 %v1865
    %2837 = vmatpush1.msra.mxu0 %v1864
    %2838 = vmatprep.subr.mxu0 %v1872
    %2839 = vmatpush1.msra.mxu0 %v1871
    %2840 = vmatprep.subr.mxu0 %v1879
    %2841 = vmatpush1.msra.mxu0 %v1878
    %2842 = vmatprep.subr.mxu0 %v1886
    %2843 = vmatpush1.msra.mxu0 %v1885
    %2844 = vmatprep.subr.mxu0 %v1893
    %2845 = vmatpush1.msra.mxu0 %v1892
    %2846 = vmatprep.subr.mxu0 %v1900
    %2847 = vmatpush1.msra.mxu0 %v1899
    %2848 = vmatprep.subr.mxu0 %v1907
    %2849 = vmatpush1.msra.mxu0 %v1906
    %2850 = vmatprep.subr.mxu0 %v1914
    %2851 = vmatpush1.msra.mxu0 %v1913
    %2852 = vmatprep.subr.mxu0 %v1921
    %2853 = vmatpush1.msra.mxu0 %v1920
    %2854 = vmatprep.subr.mxu0 %v1928
    %2855 = vmatpush1.msra.mxu0 %v1927
    %2856 = vmatprep.subr.mxu0 %v1935
    %2857 = vmatpush1.msra.mxu0 %v1934
    %2858 = vmatprep.subr.mxu0 %v1942
    %2859 = vmatpush1.msra.mxu0 %v1941
    %2860 = vmatprep.subr.mxu0 0.0
    %2861 = vmatpush1.msra.mxu0 0.0
    %2862 = vmatprep.subr.mxu0 0.0
    %2863 = vmatpush1.msra.mxu0 0.0
    %2864 = vmatprep.subr.mxu0 0.0
    %2865 = vmatpush1.msra.mxu0 0.0
    %2866 = vmatprep.subr.mxu0 0.0
    %2867 = vmatpush1.msra.mxu0 0.0
    %2868 = vmatprep.subr.mxu0 0.0
    %2869 = vmatpush1.msra.mxu0 0.0
    %2870 = vmatprep.subr.mxu0 0.0
    %2871 = vmatpush1.msra.mxu0 0.0
    %2872 = vmatprep.subr.mxu0 0.0
    %2873 = vmatpush1.msra.mxu0 0.0
    %2874 = vmatprep.subr.mxu0 0.0
    %2875 = vmatpush1.msra.mxu0 0.0
    %2876 = vmatprep.subr.mxu0 0.0
    %2877 = vmatpush1.msra.mxu0 0.0
    %2878 = vmatprep.subr.mxu0 0.0
    %2879 = vmatpush1.msra.mxu0 0.0
    %2880 = vmatprep.subr.mxu0 0.0
    %2881 = vmatpush1.msra.mxu0 0.0
    %2882 = vmatprep.subr.mxu0 0.0
    %2883 = vmatpush1.msra.mxu0 0.0
    %2884 = vmatprep.subr.mxu0 0.0
    %2885 = vmatpush1.msra.mxu0 0.0
    %2886 = vmatprep.subr.mxu0 0.0
    %2887 = vmatpush1.msra.mxu0 0.0
    %2888 = vmatprep.subr.mxu0 0.0
    %2889 = vmatpush1.msra.mxu0 0.0
    %2890 = vmatprep.subr.mxu0 0.0
    %2891 = vmatpush1.msra.mxu0 0.0
    %2892 = vmatprep.mubr.f32.mxu0 0.0
    %2893 = vmatmul.mubr.f32.gmra.mrb[0].mxu0 %v1138
    %v2894 = vpop.f32.mrb[0].mxu0
    %v2895 = vadd.f32 %v2818, %v2894
    %v2896 = vpop.f32.mrb[0].mxu0
    %v2897 = vadd.f32 %v2820, %v2896
    %2898 = vmatprep.mubr.f32.mxu0 0.0
    %2899 = vmatmul.mubr.f32.gmra.mrb[0].mxu0 %v1159
    %v2900 = vpop.f32.mrb[0].mxu0
    %v2901 = vadd.f32 %v2824, %v2900
    %v2902 = vpop.f32.mrb[0].mxu0
    %v2903 = vadd.f32 %v2826, %v2902
    %2904 = vdwg.mxu0
    %2905 = vmatprep.subr.mxu0 0.0
    %2906 = vmatpush1.msra.mxu0 %v1166
    %2907 = vmatprep.subr.mxu0 0.0
    %2908 = vmatpush1.msra.mxu0 %v1173
    %2909 = vmatprep.subr.mxu0 0.0
    %2910 = vmatpush1.msra.mxu0 %v1180
    %2911 = vmatprep.subr.mxu0 0.0
    %2912 = vmatpush1.msra.mxu0 %v1187
    %2913 = vmatprep.subr.mxu0 0.0
    %2914 = vmatpush1.msra.mxu0 %v1194
    %2915 = vmatprep.subr.mxu0 0.0
    %2916 = vmatpush1.msra.mxu0 %v1201
    %2917 = vmatprep.subr.mxu0 0.0
    %2918 = vmatpush1.msra.mxu0 %v1208
    %2919 = vmatprep.subr.mxu0 0.0
    %2920 = vmatpush1.msra.mxu0 %v1215
    %2921 = vmatprep.subr.mxu0 0.0
    %2922 = vmatpush1.msra.mxu0 %v1222
    %2923 = vmatprep.subr.mxu0 0.0
    %2924 = vmatpush1.msra.mxu0 %v1229
    %2925 = vmatprep.subr.mxu0 0.0
    %2926 = vmatpush1.msra.mxu0 %v1236
    %2927 = vmatprep.subr.mxu0 0.0
    %2928 = vmatpush1.msra.mxu0 %v1243
    %2929 = vmatprep.subr.mxu0 0.0
    %2930 = vmatpush1.msra.mxu0 %v1250
    %2931 = vmatprep.subr.mxu0 0.0
    %2932 = vmatpush1.msra.mxu0 %v1257
    %2933 = vmatprep.subr.mxu0 0.0
    %2934 = vmatpush1.msra.mxu0 %v1264
    %2935 = vmatprep.subr.mxu0 0.0
    %2936 = vmatpush1.msra.mxu0 %v1271
    %2937 = vmatprep.subr.mxu0 0.0
    %2938 = vmatpush1.msra.mxu0 %v1278
    %2939 = vmatprep.subr.mxu0 0.0
    %2940 = vmatpush1.msra.mxu0 %v1285
    %2941 = vmatprep.subr.mxu0 0.0
    %2942 = vmatpush1.msra.mxu0 %v1292
    %2943 = vmatprep.subr.mxu0 0.0
    %2944 = vmatpush1.msra.mxu0 %v1299
    %2945 = vmatprep.subr.mxu0 0.0
    %2946 = vmatpush1.msra.mxu0 %v1306
    %2947 = vmatprep.subr.mxu0 0.0
    %2948 = vmatpush1.msra.mxu0 %v1313
    %2949 = vmatprep.subr.mxu0 0.0
    %2950 = vmatpush1.msra.mxu0 %v1320
    %2951 = vmatprep.subr.mxu0 0.0
    %2952 = vmatpush1.msra.mxu0 %v1327
    %2953 = vmatprep.subr.mxu0 0.0
    %2954 = vmatpush1.msra.mxu0 %v1334
    %2955 = vmatprep.subr.mxu0 0.0
    %2956 = vmatpush1.msra.mxu0 %v1341
    %2957 = vmatprep.subr.mxu0 0.0
    %2958 = vmatpush1.msra.mxu0 %v1348
    %2959 = vmatprep.subr.mxu0 0.0
    %2960 = vmatpush1.msra.mxu0 %v1355
    %2961 = vmatprep.subr.mxu0 0.0
    %2962 = vmatpush1.msra.mxu0 %v1362
    %2963 = vmatprep.subr.mxu0 0.0
    %2964 = vmatpush1.msra.mxu0 %v1369
    %2965 = vmatprep.subr.mxu0 0.0
    %2966 = vmatpush1.msra.mxu0 %v1376
    %2967 = vmatprep.subr.mxu0 0.0
    %2968 = vmatpush1.msra.mxu0 %v1383
    %2969 = vmatprep.mubr.f32.mxu0 %v1133
    %2970 = vmatmul.mubr.f32.gmra.mrb[0].mxu0 %v1132
    %v2971 = vpop.f32.mrb[0].mxu0
    %v2972 = vadd.f32 %v1973, %v2971
    %v2973 = vpop.f32.mrb[0].mxu0
    %2974 = vmatprep.mubr.f32.mxu0 %v1154
    %2975 = vmatmul.mubr.f32.gmra.mrb[0].mxu0 %v1153
    %v2976 = vpop.f32.mrb[0].mxu0
    %v2977 = vadd.f32 %v1973, %v2976
    %v2978 = vpop.f32.mrb[0].mxu0
    %2979 = vdwg.mxu0
    %2980 = vmatprep.subr.mxu0 0.0
    %2981 = vmatpush1.msra.mxu0 %v1390
    %2982 = vmatprep.subr.mxu0 0.0
    %2983 = vmatpush1.msra.mxu0 %v1397
    %2984 = vmatprep.subr.mxu0 0.0
    %2985 = vmatpush1.msra.mxu0 %v1404
    %2986 = vmatprep.subr.mxu0 0.0
    %2987 = vmatpush1.msra.mxu0 %v1411
    %2988 = vmatprep.subr.mxu0 0.0
    %2989 = vmatpush1.msra.mxu0 %v1418
    %2990 = vmatprep.subr.mxu0 0.0
    %2991 = vmatpush1.msra.mxu0 %v1425
    %2992 = vmatprep.subr.mxu0 0.0
    %2993 = vmatpush1.msra.mxu0 %v1432
    %2994 = vmatprep.subr.mxu0 0.0
    %2995 = vmatpush1.msra.mxu0 %v1439
    %2996 = vmatprep.subr.mxu0 0.0
    %2997 = vmatpush1.msra.mxu0 %v1446
    %2998 = vmatprep.subr.mxu0 0.0
    %2999 = vmatpush1.msra.mxu0 %v1453
    %3000 = vmatprep.subr.mxu0 0.0
    %3001 = vmatpush1.msra.mxu0 %v1460
    %3002 = vmatprep.subr.mxu0 0.0
    %3003 = vmatpush1.msra.mxu0 %v1467
    %3004 = vmatprep.subr.mxu0 0.0
    %3005 = vmatpush1.msra.mxu0 %v1474
    %3006 = vmatprep.subr.mxu0 0.0
    %3007 = vmatpush1.msra.mxu0 %v1481
    %3008 = vmatprep.subr.mxu0 0.0
    %3009 = vmatpush1.msra.mxu0 %v1488
    %3010 = vmatprep.subr.mxu0 0.0
    %3011 = vmatpush1.msra.mxu0 %v1495
    %3012 = vmatprep.subr.mxu0 0.0
    %3013 = vmatpush1.msra.mxu0 %v1502
    %3014 = vmatprep.subr.mxu0 0.0
    %3015 = vmatpush1.msra.mxu0 %v1509
    %3016 = vmatprep.subr.mxu0 0.0
    %3017 = vmatpush1.msra.mxu0 %v1516
    %3018 = vmatprep.subr.mxu0 0.0
    %3019 = vmatpush1.msra.mxu0 %v1523
    %3020 = vmatprep.subr.mxu0 0.0
    %3021 = vmatpush1.msra.mxu0 %v1530
    %3022 = vmatprep.subr.mxu0 0.0
    %3023 = vmatpush1.msra.mxu0 %v1537
    %3024 = vmatprep.subr.mxu0 0.0
    %3025 = vmatpush1.msra.mxu0 %v1544
    %3026 = vmatprep.subr.mxu0 0.0
    %3027 = vmatpush1.msra.mxu0 %v1551
    %3028 = vmatprep.subr.mxu0 0.0
    %3029 = vmatpush1.msra.mxu0 %v1558
    %3030 = vmatprep.subr.mxu0 0.0
    %3031 = vmatpush1.msra.mxu0 %v1565
    %3032 = vmatprep.subr.mxu0 0.0
    %3033 = vmatpush1.msra.mxu0 %v1572
    %3034 = vmatprep.subr.mxu0 0.0
    %3035 = vmatpush1.msra.mxu0 %v1579
    %3036 = vmatprep.subr.mxu0 0.0
    %3037 = vmatpush1.msra.mxu0 %v1586
    %3038 = vmatprep.subr.mxu0 0.0
    %3039 = vmatpush1.msra.mxu0 %v1593
    %3040 = vmatprep.subr.mxu0 0.0
    %3041 = vmatpush1.msra.mxu0 %v1600
    %3042 = vmatprep.subr.mxu0 0.0
    %3043 = vmatpush1.msra.mxu0 %v1607
    %3044 = vmatprep.mubr.f32.mxu0 %v1135
    %3045 = vmatmul.mubr.f32.gmra.mrb[0].mxu0 %v1134
    %v3046 = vpop.f32.mrb[0].mxu0
    %v3047 = vadd.f32 %v2972, %v3046
    %v3048 = vpop.f32.mrb[0].mxu0
    %3049 = vmatprep.mubr.f32.mxu0 %v1156
    %3050 = vmatmul.mubr.f32.gmra.mrb[0].mxu0 %v1155
    %v3051 = vpop.f32.mrb[0].mxu0
    %v3052 = vadd.f32 %v2977, %v3051
    %v3053 = vpop.f32.mrb[0].mxu0
    %3054 = vdwg.mxu0
    %3055 = vmatprep.subr.mxu0 0.0
    %3056 = vmatpush1.msra.mxu0 %v1614
    %3057 = vmatprep.subr.mxu0 0.0
    %3058 = vmatpush1.msra.mxu0 %v1621
    %3059 = vmatprep.subr.mxu0 0.0
    %3060 = vmatpush1.msra.mxu0 %v1628
    %3061 = vmatprep.subr.mxu0 0.0
    %3062 = vmatpush1.msra.mxu0 %v1635
    %3063 = vmatprep.subr.mxu0 0.0
    %3064 = vmatpush1.msra.mxu0 %v1642
    %3065 = vmatprep.subr.mxu0 0.0
    %3066 = vmatpush1.msra.mxu0 %v1649
    %3067 = vmatprep.subr.mxu0 0.0
    %3068 = vmatpush1.msra.mxu0 %v1656
    %3069 = vmatprep.subr.mxu0 0.0
    %3070 = vmatpush1.msra.mxu0 %v1663
    %3071 = vmatprep.subr.mxu0 0.0
    %3072 = vmatpush1.msra.mxu0 %v1670
    %3073 = vmatprep.subr.mxu0 0.0
    %3074 = vmatpush1.msra.mxu0 %v1677
    %3075 = vmatprep.subr.mxu0 0.0
    %3076 = vmatpush1.msra.mxu0 %v1684
    %3077 = vmatprep.subr.mxu0 0.0
    %3078 = vmatpush1.msra.mxu0 %v1691
    %3079 = vmatprep.subr.mxu0 0.0
    %3080 = vmatpush1.msra.mxu0 %v1698
    %3081 = vmatprep.subr.mxu0 0.0
    %3082 = vmatpush1.msra.mxu0 %v1705
    %3083 = vmatprep.subr.mxu0 0.0
    %3084 = vmatpush1.msra.mxu0 %v1712
    %3085 = vmatprep.subr.mxu0 0.0
    %3086 = vmatpush1.msra.mxu0 %v1719
    %3087 = vmatprep.subr.mxu0 0.0
    %3088 = vmatpush1.msra.mxu0 %v1726
    %3089 = vmatprep.subr.mxu0 0.0
    %3090 = vmatpush1.msra.mxu0 %v1733
    %3091 = vmatprep.subr.mxu0 0.0
    %3092 = vmatpush1.msra.mxu0 %v1740
    %3093 = vmatprep.subr.mxu0 0.0
    %3094 = vmatpush1.msra.mxu0 %v1747
    %3095 = vmatprep.subr.mxu0 0.0
    %3096 = vmatpush1.msra.mxu0 %v1754
    %3097 = vmatprep.subr.mxu0 0.0
    %3098 = vmatpush1.msra.mxu0 %v1761
    %3099 = vmatprep.subr.mxu0 0.0
    %3100 = vmatpush1.msra.mxu0 %v1768
    %3101 = vmatprep.subr.mxu0 0.0
    %3102 = vmatpush1.msra.mxu0 %v1775
    %3103 = vmatprep.subr.mxu0 0.0
    %3104 = vmatpush1.msra.mxu0 %v1782
    %3105 = vmatprep.subr.mxu0 0.0
    %3106 = vmatpush1.msra.mxu0 %v1789
    %3107 = vmatprep.subr.mxu0 0.0
    %3108 = vmatpush1.msra.mxu0 %v1796
    %3109 = vmatprep.subr.mxu0 0.0
    %3110 = vmatpush1.msra.mxu0 %v1803
    %3111 = vmatprep.subr.mxu0 0.0
    %3112 = vmatpush1.msra.mxu0 %v1810
    %3113 = vmatprep.subr.mxu0 0.0
    %3114 = vmatpush1.msra.mxu0 %v1817
    %3115 = vmatprep.subr.mxu0 0.0
    %3116 = vmatpush1.msra.mxu0 %v1824
    %3117 = vmatprep.subr.mxu0 0.0
    %3118 = vmatpush1.msra.mxu0 %v1831
    %3119 = vmatprep.mubr.f32.mxu0 %v1137
    %3120 = vmatmul.mubr.f32.gmra.mrb[0].mxu0 %v1136
    %v3121 = vpop.f32.mrb[0].mxu0
    %v3122 = vadd.f32 %v3047, %v3121
    %v3123 = vpop.f32.mrb[0].mxu0
    %3124 = vmatprep.mubr.f32.mxu0 %v1158
    %3125 = vmatmul.mubr.f32.gmra.mrb[0].mxu0 %v1157
    %v3126 = vpop.f32.mrb[0].mxu0
    %v3127 = vadd.f32 %v3052, %v3126
    %v3128 = vpop.f32.mrb[0].mxu0
    %3129 = vdwg.mxu0
    %3130 = vmatprep.subr.mxu0 0.0
    %3131 = vmatpush1.msra.mxu0 %v1838
    %3132 = vmatprep.subr.mxu0 0.0
    %3133 = vmatpush1.msra.mxu0 %v1845
    %3134 = vmatprep.subr.mxu0 0.0
    %3135 = vmatpush1.msra.mxu0 %v1852
    %3136 = vmatprep.subr.mxu0 0.0
    %3137 = vmatpush1.msra.mxu0 %v1859
    %3138 = vmatprep.subr.mxu0 0.0
    %3139 = vmatpush1.msra.mxu0 %v1866
    %3140 = vmatprep.subr.mxu0 0.0
    %3141 = vmatpush1.msra.mxu0 %v1873
    %3142 = vmatprep.subr.mxu0 0.0
    %3143 = vmatpush1.msra.mxu0 %v1880
    %3144 = vmatprep.subr.mxu0 0.0
    %3145 = vmatpush1.msra.mxu0 %v1887
    %3146 = vmatprep.subr.mxu0 0.0
    %3147 = vmatpush1.msra.mxu0 %v1894
    %3148 = vmatprep.subr.mxu0 0.0
    %3149 = vmatpush1.msra.mxu0 %v1901
    %3150 = vmatprep.subr.mxu0 0.0
    %3151 = vmatpush1.msra.mxu0 %v1908
    %3152 = vmatprep.subr.mxu0 0.0
    %3153 = vmatpush1.msra.mxu0 %v1915
    %3154 = vmatprep.subr.mxu0 0.0
    %3155 = vmatpush1.msra.mxu0 %v1922
    %3156 = vmatprep.subr.mxu0 0.0
    %3157 = vmatpush1.msra.mxu0 %v1929
    %3158 = vmatprep.subr.mxu0 0.0
    %3159 = vmatpush1.msra.mxu0 %v1936
    %3160 = vmatprep.subr.mxu0 0.0
    %3161 = vmatpush1.msra.mxu0 %v1943
    %3162 = vmatprep.subr.mxu0 0.0
    %3163 = vmatpush1.msra.mxu0 0.0
    %3164 = vmatprep.subr.mxu0 0.0
    %3165 = vmatpush1.msra.mxu0 0.0
    %3166 = vmatprep.subr.mxu0 0.0
    %3167 = vmatpush1.msra.mxu0 0.0
    %3168 = vmatprep.subr.mxu0 0.0
    %3169 = vmatpush1.msra.mxu0 0.0
    %3170 = vmatprep.subr.mxu0 0.0
    %3171 = vmatpush1.msra.mxu0 0.0
    %3172 = vmatprep.subr.mxu0 0.0
    %3173 = vmatpush1.msra.mxu0 0.0
    %3174 = vmatprep.subr.mxu0 0.0
    %3175 = vmatpush1.msra.mxu0 0.0
    %3176 = vmatprep.subr.mxu0 0.0
    %3177 = vmatpush1.msra.mxu0 0.0
    %3178 = vmatprep.subr.mxu0 0.0
    %3179 = vmatpush1.msra.mxu0 0.0
    %3180 = vmatprep.subr.mxu0 0.0
    %3181 = vmatpush1.msra.mxu0 0.0
    %3182 = vmatprep.subr.mxu0 0.0
    %3183 = vmatpush1.msra.mxu0 0.0
    %3184 = vmatprep.subr.mxu0 0.0
    %3185 = vmatpush1.msra.mxu0 0.0
    %3186 = vmatprep.subr.mxu0 0.0
    %3187 = vmatpush1.msra.mxu0 0.0
    %3188 = vmatprep.subr.mxu0 0.0
    %3189 = vmatpush1.msra.mxu0 0.0
    %3190 = vmatprep.subr.mxu0 0.0
    %3191 = vmatpush1.msra.mxu0 0.0
    %3192 = vmatprep.subr.mxu0 0.0
    %3193 = vmatpush1.msra.mxu0 0.0
    %3194 = vmatprep.mubr.f32.mxu0 0.0
    %3195 = vmatmul.mubr.f32.gmra.mrb[0].mxu0 %v1138
    %v3196 = vpop.f32.mrb[0].mxu0
    %v3197 = vadd.f32 %v3122, %v3196
    %v3198 = vpop.f32.mrb[0].mxu0
    %3199 = vmatprep.mubr.f32.mxu0 0.0
    %3200 = vmatmul.mubr.f32.gmra.mrb[0].mxu0 %v1159
    %v3201 = vpop.f32.mrb[0].mxu0
    %v3202 = vadd.f32 %v3127, %v3201
    %v3203 = vpop.f32.mrb[0].mxu0
    %3204 = vdwg.mxu0
    %v3205 = vld [vmem:[#allocation22] sm:$0xff]
    %v3206 = vld [vmem:[#allocation23] sm:$0xff]
    %v3207 = vadd.f32 %v2279, %v2285
    %v3208 = vadd.f32 %v2281, %v2287
    %v3209 = vadd.f32 %v2587, %v2593
    %v3210 = vadd.f32 %v2589, %v2595
    %v3211 = vadd.f32 %v2895, %v2901
    %v3212 = vadd.f32 %v2897, %v2903
    %v3213 = vadd.f32 %v3197, %v3202
    %v3214 = vmul.f32 %v3207, 0.5
    %v3215 = vmul.f32 %v3208, 0.5
    %v3216 = vmul.f32 %v3209, 0.5
    %v3217 = vmul.f32 %v3210, 0.5
    %v3218 = vmul.f32 %v3211, 0.5
    %v3219 = vmul.f32 %v3212, 0.5
    %v3220 = vmul.f32 %v3213, 0.5
    %v3221 = vsub.f32 %v2279, %v3214
    %v3222 = vsub.f32 %v2281, %v3215
    %v3223 = vsub.f32 %v2587, %v3216
    %v3224 = vsub.f32 %v2589, %v3217
    %v3225 = vsub.f32 %v2895, %v3218
    %v3226 = vsub.f32 %v2897, %v3219
    %v3227 = vsub.f32 %v3197, %v3220
    %v3228 = vmul.f32 %v3221, %v3221
    %v3229 = vmul.f32 %v3222, %v3222
    %v3230 = vmul.f32 %v3223, %v3223
    %v3231 = vmul.f32 %v3224, %v3224
    %v3232 = vmul.f32 %v3225, %v3225
    %v3233 = vmul.f32 %v3226, %v3226
    %v3234 = vmul.f32 %v3227, %v3227
    %v3235 = vsub.f32 %v2285, %v3214
    %v3236 = vsub.f32 %v2287, %v3215
    %v3237 = vsub.f32 %v2593, %v3216
    %v3238 = vsub.f32 %v2595, %v3217
    %v3239 = vsub.f32 %v2901, %v3218
    %v3240 = vsub.f32 %v2903, %v3219
    %v3241 = vsub.f32 %v3202, %v3220
    %v3242 = vmul.f32 %v3235, %v3235
    %v3243 = vmul.f32 %v3236, %v3236
    %v3244 = vmul.f32 %v3237, %v3237
    %v3245 = vmul.f32 %v3238, %v3238
    %v3246 = vmul.f32 %v3239, %v3239
    %v3247 = vmul.f32 %v3240, %v3240
    %v3248 = vmul.f32 %v3241, %v3241
    %v3249 = vadd.f32 %v3228, %v3242
    %v3250 = vadd.f32 %v3229, %v3243
    %v3251 = vadd.f32 %v3230, %v3244
    %v3252 = vadd.f32 %v3231, %v3245
    %v3253 = vadd.f32 %v3232, %v3246
    %v3254 = vadd.f32 %v3233, %v3247
    %v3255 = vadd.f32 %v3234, %v3248
    %v3256 = vmul.f32 %v3249, 0.5
    %v3257 = vmul.f32 %v3250, 0.5
    %v3258 = vmul.f32 %v3251, 0.5
    %v3259 = vmul.f32 %v3252, 0.5
    %v3260 = vmul.f32 %v3253, 0.5
    %v3261 = vmul.f32 %v3254, 0.5
    %v3262 = vmul.f32 %v3255, 0.5
    %v3263 = vadd.f32 %v3256, 1e-05
    %v3264 = vadd.f32 %v3257, 1e-05
    %v3265 = vadd.f32 %v3258, 1e-05
    %v3266 = vadd.f32 %v3259, 1e-05
    %v3267 = vadd.f32 %v3260, 1e-05
    %v3268 = vadd.f32 %v3261, 1e-05
    %v3269 = vadd.f32 %v3262, 1e-05
    %v3270 = vrsqrt.pop %v3263
    %v3271 = vrsqrt.pop %v3264
    %v3272 = vrsqrt.pop %v3265
    %v3273 = vrsqrt.pop %v3266
    %v3274 = vrsqrt.pop %v3267
    %v3275 = vrsqrt.pop %v3268
    %v3276 = vrsqrt.pop %v3269
    %v3278 = vlaneseq
    %v3279 = vshrl.u32 %v3278, 7
    %v3280 = vsub.s32 0, %v3279
    %v3281 = vrot.slane %v3205, %v3280
    %v3282 = vlaneseq
    %v3283 = vshrl.u32 %v3282, 7
    %v3284 = vsub.s32 1, %v3283
    %v3285 = vrot.slane %v3205, %v3284
    %v3286 = vlaneseq
    %v3287 = vshrl.u32 %v3286, 7
    %v3288 = vsub.s32 2, %v3287
    %v3289 = vrot.slane %v3205, %v3288
    %v3290 = vlaneseq
    %v3291 = vshrl.u32 %v3290, 7
    %v3292 = vsub.s32 3, %v3291
    %v3293 = vrot.slane %v3205, %v3292
    %v3294 = vlaneseq
    %v3295 = vshrl.u32 %v3294, 7
    %v3296 = vsub.s32 4, %v3295
    %v3297 = vrot.slane %v3205, %v3296
    %v3298 = vlaneseq
    %v3299 = vshrl.u32 %v3298, 7
    %v3300 = vsub.s32 5, %v3299
    %v3301 = vrot.slane %v3205, %v3300
    %v3302 = vlaneseq
    %v3303 = vshrl.u32 %v3302, 7
    %v3304 = vsub.s32 6, %v3303
    %v3305 = vrot.slane %v3205, %v3304
    %v3313 = vmul.f32 %v3270, %v3281
    %v3314 = vmul.f32 %v3271, %v3285
    %v3315 = vmul.f32 %v3272, %v3289
    %v3316 = vmul.f32 %v3273, %v3293
    %v3317 = vmul.f32 %v3274, %v3297
    %v3318 = vmul.f32 %v3275, %v3301
    %v3319 = vmul.f32 %v3276, %v3305
    %v3320 = vmul.f32 %v3214, %v3313
    %v3321 = vmul.f32 %v3215, %v3314
    %v3322 = vmul.f32 %v3216, %v3315
    %v3323 = vmul.f32 %v3217, %v3316
    %v3324 = vmul.f32 %v3218, %v3317
    %v3325 = vmul.f32 %v3219, %v3318
    %v3326 = vmul.f32 %v3220, %v3319
    %v3328 = vlaneseq
    %v3329 = vshrl.u32 %v3328, 7
    %v3330 = vsub.s32 0, %v3329
    %v3331 = vrot.slane %v3206, %v3330
    %v3332 = vlaneseq
    %v3333 = vshrl.u32 %v3332, 7
    %v3334 = vsub.s32 1, %v3333
    %v3335 = vrot.slane %v3206, %v3334
    %v3336 = vlaneseq
    %v3337 = vshrl.u32 %v3336, 7
    %v3338 = vsub.s32 2, %v3337
    %v3339 = vrot.slane %v3206, %v3338
    %v3340 = vlaneseq
    %v3341 = vshrl.u32 %v3340, 7
    %v3342 = vsub.s32 3, %v3341
    %v3343 = vrot.slane %v3206, %v3342
    %v3344 = vlaneseq
    %v3345 = vshrl.u32 %v3344, 7
    %v3346 = vsub.s32 4, %v3345
    %v3347 = vrot.slane %v3206, %v3346
    %v3348 = vlaneseq
    %v3349 = vshrl.u32 %v3348, 7
    %v3350 = vsub.s32 5, %v3349
    %v3351 = vrot.slane %v3206, %v3350
    %v3352 = vlaneseq
    %v3353 = vshrl.u32 %v3352, 7
    %v3354 = vsub.s32 6, %v3353
    %v3355 = vrot.slane %v3206, %v3354
    %v3363 = vsub.f32 %v3331, %v3320
    %v3364 = vsub.f32 %v3335, %v3321
    %v3365 = vsub.f32 %v3339, %v3322
    %v3366 = vsub.f32 %v3343, %v3323
    %v3367 = vsub.f32 %v3347, %v3324
    %v3368 = vsub.f32 %v3351, %v3325
    %v3369 = vsub.f32 %v3355, %v3326
    %v3370 = vmul.f32 %v2279, %v3313
    %v3371 = vmul.f32 %v2281, %v3314
    %v3372 = vmul.f32 %v2587, %v3315
    %v3373 = vmul.f32 %v2589, %v3316
    %v3374 = vmul.f32 %v2895, %v3317
    %v3375 = vmul.f32 %v2897, %v3318
    %v3376 = vmul.f32 %v3197, %v3319
    %v3377 = vadd.f32 %v3370, %v3363
    %v3378 = vadd.f32 %v3371, %v3364
    %v3379 = vadd.f32 %v3372, %v3365
    %v3380 = vadd.f32 %v3373, %v3366
    %v3381 = vadd.f32 %v3374, %v3367
    %v3382 = vadd.f32 %v3375, %v3368
    %v3383 = vadd.f32 %v3376, %v3369
    %v3384 = vmax.f32 %v3377, 0.0
    %v3385 = vmax.f32 %v3378, 0.0
    %v3386 = vmax.f32 %v3379, 0.0
    %v3387 = vmax.f32 %v3380, 0.0
    %v3388 = vmax.f32 %v3381, 0.0
    %v3389 = vmax.f32 %v3382, 0.0
    %v3390 = vmax.f32 %v3383, 0.0
    %v3391 = vmul.f32 %v2285, %v3313
    %v3392 = vmul.f32 %v2287, %v3314
    %v3393 = vmul.f32 %v2593, %v3315
    %v3394 = vmul.f32 %v2595, %v3316
    %v3395 = vmul.f32 %v2901, %v3317
    %v3396 = vmul.f32 %v2903, %v3318
    %v3397 = vmul.f32 %v3202, %v3319
    %v3398 = vadd.f32 %v3391, %v3363
    %v3399 = vadd.f32 %v3392, %v3364
    %v3400 = vadd.f32 %v3393, %v3365
    %v3401 = vadd.f32 %v3394, %v3366
    %v3402 = vadd.f32 %v3395, %v3367
    %v3403 = vadd.f32 %v3396, %v3368
    %v3404 = vadd.f32 %v3397, %v3369
    %v3405 = vmax.f32 %v3398, 0.0
    %v3406 = vmax.f32 %v3399, 0.0
    %v3407 = vmax.f32 %v3400, 0.0
    %v3408 = vmax.f32 %v3401, 0.0
    %v3409 = vmax.f32 %v3402, 0.0
    %v3410 = vmax.f32 %v3403, 0.0
    %v3411 = vmax.f32 %v3404, 0.0
    %v3412 = vld [vmem:[#allocation25] sm:$0xff]
    %v3413 = vld [vmem:[#allocation25 + $0x8] sm:$0xff]
    %v3414 = vld [vmem:[#allocation25 + $0x10] sm:$0xff]
    %v3415 = vld [vmem:[#allocation25 + $0x18] sm:$0xff]
    %v3416 = vld [vmem:[#allocation25 + $0x20] sm:$0xff]
    %v3417 = vld [vmem:[#allocation25 + $0x28] sm:$0xff]
    %v3418 = vld [vmem:[#allocation25 + $0x30] sm:$0xff]
    %v3419 = vld [vmem:[#allocation25 + $0x38] sm:$0xff]
    %v3420 = vld [vmem:[#allocation25 + $0x40] sm:$0xff]
    %v3421 = vld [vmem:[#allocation25 + $0x48] sm:$0xff]
    %v3422 = vld [vmem:[#allocation25 + $0x50] sm:$0xff]
    %v3423 = vld [vmem:[#allocation25 + $0x58] sm:$0xff]
    %v3424 = vld [vmem:[#allocation25 + $0x60] sm:$0xff]
    %v3425 = vld [vmem:[#allocation25 + $0x68] sm:$0xff]
    %v3426 = vld [vmem:[#allocation25 + $0x70] sm:$0xff]
    %v3427 = vld [vmem:[#allocation25 + $0x78] sm:$0xff]
    %v3428 = vld [vmem:[#allocation25 + $0x80] sm:$0xff]
    %v3429 = vld [vmem:[#allocation25 + $0x88] sm:$0xff]
    %v3430 = vld [vmem:[#allocation25 + $0x90] sm:$0xff]
    %v3431 = vld [vmem:[#allocation25 + $0x98] sm:$0xff]
    %v3432 = vld [vmem:[#allocation25 + $0xa0] sm:$0xff]
    %v3433 = vld [vmem:[#allocation25 + $0xa8] sm:$0xff]
    %v3434 = vld [vmem:[#allocation25 + $0xb0] sm:$0xff]
    %v3435 = vld [vmem:[#allocation25 + $0xb8] sm:$0xff]
    %v3436 = vld [vmem:[#allocation25 + $0xc0] sm:$0xff]
    %v3437 = vld [vmem:[#allocation25 + $0xc8] sm:$0xff]
    %v3438 = vld [vmem:[#allocation25 + $0xd0] sm:$0xff]
    %v3439 = vld [vmem:[#allocation25 + $0xd8] sm:$0xff]
    %v3440 = vld [vmem:[#allocation25 + $0xe0] sm:$0xff]
    %v3441 = vld [vmem:[#allocation25 + $0xe8] sm:$0xff]
    %v3442 = vld [vmem:[#allocation25 + $0xf0] sm:$0xff]
    %v3443 = vld [vmem:[#allocation25 + $0xf8] sm:$0xff]
    %v3444 = vld [vmem:[#allocation25 + $0x100] sm:$0xff]
    %v3445 = vld [vmem:[#allocation25 + $0x108] sm:$0xff]
    %v3446 = vld [vmem:[#allocation25 + $0x110] sm:$0xff]
    %v3447 = vld [vmem:[#allocation25 + $0x118] sm:$0xff]
    %v3448 = vld [vmem:[#allocation25 + $0x120] sm:$0xff]
    %v3449 = vld [vmem:[#allocation25 + $0x128] sm:$0xff]
    %v3450 = vld [vmem:[#allocation25 + $0x130] sm:$0xff]
    %v3451 = vld [vmem:[#allocation25 + $0x138] sm:$0xff]
    %v3452 = vld [vmem:[#allocation25 + $0x140] sm:$0xff]
    %v3453 = vld [vmem:[#allocation25 + $0x148] sm:$0xff]
    %v3454 = vld [vmem:[#allocation25 + $0x150] sm:$0xff]
    %v3455 = vld [vmem:[#allocation25 + $0x158] sm:$0xff]
    %v3456 = vld [vmem:[#allocation25 + $0x160] sm:$0xff]
    %v3457 = vld [vmem:[#allocation25 + $0x168] sm:$0xff]
    %v3458 = vld [vmem:[#allocation25 + $0x170] sm:$0xff]
    %v3459 = vld [vmem:[#allocation25 + $0x178] sm:$0xff]
    %v3460 = vld [vmem:[#allocation25 + $0x180] sm:$0xff]
    %v3461 = vld [vmem:[#allocation25 + $0x188] sm:$0xff]
    %v3462 = vld [vmem:[#allocation25 + $0x190] sm:$0xff]
    %v3463 = vld [vmem:[#allocation25 + $0x198] sm:$0xff]
    %v3464 = vld [vmem:[#allocation25 + $0x1a0] sm:$0xff]
    %v3465 = vld [vmem:[#allocation25 + $0x1a8] sm:$0xff]
    %v3466 = vld [vmem:[#allocation25 + $0x1b0] sm:$0xff]
    %v3467 = vld [vmem:[#allocation25 + $0x1b8] sm:$0xff]
    %v3468 = vld [vmem:[#allocation25 + $0x1c0] sm:$0xff]
    %v3469 = vld [vmem:[#allocation25 + $0x1c8] sm:$0xff]
    %v3470 = vld [vmem:[#allocation25 + $0x1d0] sm:$0xff]
    %v3471 = vld [vmem:[#allocation25 + $0x1d8] sm:$0xff]
    %v3472 = vld [vmem:[#allocation25 + $0x1e0] sm:$0xff]
    %v3473 = vld [vmem:[#allocation25 + $0x1e8] sm:$0xff]
    %v3474 = vld [vmem:[#allocation25 + $0x1f0] sm:$0xff]
    %v3475 = vld [vmem:[#allocation25 + $0x1f8] sm:$0xff]
    %v3476 = vld [vmem:[#allocation25 + $0x200] sm:$0xff]
    %v3477 = vld [vmem:[#allocation25 + $0x208] sm:$0xff]
    %v3478 = vld [vmem:[#allocation25 + $0x210] sm:$0xff]
    %v3479 = vld [vmem:[#allocation25 + $0x218] sm:$0xff]
    %v3480 = vld [vmem:[#allocation25 + $0x220] sm:$0xff]
    %v3481 = vld [vmem:[#allocation25 + $0x228] sm:$0xff]
    %v3482 = vld [vmem:[#allocation25 + $0x230] sm:$0xff]
    %v3483 = vld [vmem:[#allocation25 + $0x238] sm:$0xff]
    %v3484 = vld [vmem:[#allocation25 + $0x240] sm:$0xff]
    %v3485 = vld [vmem:[#allocation25 + $0x248] sm:$0xff]
    %v3486 = vld [vmem:[#allocation25 + $0x250] sm:$0xff]
    %v3487 = vld [vmem:[#allocation25 + $0x258] sm:$0xff]
    %v3488 = vld [vmem:[#allocation25 + $0x260] sm:$0xff]
    %v3489 = vld [vmem:[#allocation25 + $0x268] sm:$0xff]
    %v3490 = vld [vmem:[#allocation25 + $0x270] sm:$0xff]
    %v3491 = vld [vmem:[#allocation25 + $0x278] sm:$0xff]
    %v3492 = vld [vmem:[#allocation25 + $0x280] sm:$0xff]
    %v3493 = vld [vmem:[#allocation25 + $0x288] sm:$0xff]
    %v3494 = vld [vmem:[#allocation25 + $0x290] sm:$0xff]
    %v3495 = vld [vmem:[#allocation25 + $0x298] sm:$0xff]
    %v3496 = vld [vmem:[#allocation25 + $0x2a0] sm:$0xff]
    %v3497 = vld [vmem:[#allocation25 + $0x2a8] sm:$0xff]
    %v3498 = vld [vmem:[#allocation25 + $0x2b0] sm:$0xff]
    %v3499 = vld [vmem:[#allocation25 + $0x2b8] sm:$0xff]
    %v3500 = vld [vmem:[#allocation25 + $0x2c0] sm:$0xff]
    %v3501 = vld [vmem:[#allocation25 + $0x2c8] sm:$0xff]
    %v3502 = vld [vmem:[#allocation25 + $0x2d0] sm:$0xff]
    %v3503 = vld [vmem:[#allocation25 + $0x2d8] sm:$0xff]
    %v3504 = vld [vmem:[#allocation25 + $0x2e0] sm:$0xff]
    %v3505 = vld [vmem:[#allocation25 + $0x2e8] sm:$0xff]
    %v3506 = vld [vmem:[#allocation25 + $0x2f0] sm:$0xff]
    %v3507 = vld [vmem:[#allocation25 + $0x2f8] sm:$0xff]
    %v3508 = vld [vmem:[#allocation25 + $0x300] sm:$0xff]
    %v3509 = vld [vmem:[#allocation25 + $0x308] sm:$0xff]
    %v3510 = vld [vmem:[#allocation25 + $0x310] sm:$0xff]
    %v3511 = vld [vmem:[#allocation25 + $0x318] sm:$0xff]
    %v3512 = vld [vmem:[#allocation25 + $0x320] sm:$0xff]
    %v3513 = vld [vmem:[#allocation25 + $0x328] sm:$0xff]
    %v3514 = vld [vmem:[#allocation25 + $0x330] sm:$0xff]
    %v3515 = vld [vmem:[#allocation25 + $0x338] sm:$0xff]
    %v3516 = vld [vmem:[#allocation25 + $0x340] sm:$0xff]
    %v3517 = vld [vmem:[#allocation25 + $0x348] sm:$0xff]
    %v3518 = vld [vmem:[#allocation25 + $0x350] sm:$0xff]
    %v3519 = vld [vmem:[#allocation25 + $0x358] sm:$0xff]
    %v3520 = vld [vmem:[#allocation25 + $0x360] sm:$0xff]
    %v3521 = vld [vmem:[#allocation25 + $0x368] sm:$0xff]
    %v3522 = vld [vmem:[#allocation25 + $0x370] sm:$0xff]
    %v3523 = vld [vmem:[#allocation25 + $0x378] sm:$0xff]
    %v3524 = vld [vmem:[#allocation25 + $0x380] sm:$0xff]
    %v3525 = vld [vmem:[#allocation25 + $0x388] sm:$0xff]
    %v3526 = vld [vmem:[#allocation25 + $0x390] sm:$0xff]
    %v3527 = vld [vmem:[#allocation25 + $0x398] sm:$0xff]
    %v3528 = vld [vmem:[#allocation25 + $0x3a0] sm:$0xff]
    %v3529 = vld [vmem:[#allocation25 + $0x3a8] sm:$0xff]
    %v3530 = vld [vmem:[#allocation25 + $0x3b0] sm:$0xff]
    %v3531 = vld [vmem:[#allocation25 + $0x3b8] sm:$0xff]
    %v3532 = vld [vmem:[#allocation25 + $0x3c0] sm:$0xff]
    %v3533 = vld [vmem:[#allocation25 + $0x3c8] sm:$0xff]
    %v3534 = vld [vmem:[#allocation25 + $0x3d0] sm:$0xff]
    %v3535 = vld [vmem:[#allocation25 + $0x3d8] sm:$0xff]
    %v3536 = vld [vmem:[#allocation25 + $0x3e0] sm:$0xff]
    %v3537 = vld [vmem:[#allocation25 + $0x3e8] sm:$0xff]
    %v3538 = vld [vmem:[#allocation25 + $0x3f0] sm:$0xff]
    %v3539 = vld [vmem:[#allocation25 + $0x3f8] sm:$0xff]
    %v3540 = vld [vmem:[#allocation25 + $0x400] sm:$0xff]
    %v3541 = vld [vmem:[#allocation25 + $0x408] sm:$0xff]
    %v3542 = vld [vmem:[#allocation25 + $0x410] sm:$0xff]
    %v3543 = vld [vmem:[#allocation25 + $0x418] sm:$0xff]
    %v3544 = vld [vmem:[#allocation25 + $0x420] sm:$0xff]
    %v3545 = vld [vmem:[#allocation25 + $0x428] sm:$0xff]
    %v3546 = vld [vmem:[#allocation25 + $0x430] sm:$0xff]
    %v3547 = vld [vmem:[#allocation25 + $0x438] sm:$0xff]
    %v3548 = vld [vmem:[#allocation25 + $0x440] sm:$0xff]
    %v3549 = vld [vmem:[#allocation25 + $0x448] sm:$0xff]
    %v3550 = vld [vmem:[#allocation25 + $0x450] sm:$0xff]
    %v3551 = vld [vmem:[#allocation25 + $0x458] sm:$0xff]
    %v3552 = vld [vmem:[#allocation25 + $0x460] sm:$0xff]
    %v3553 = vld [vmem:[#allocation25 + $0x468] sm:$0xff]
    %v3554 = vld [vmem:[#allocation25 + $0x470] sm:$0xff]
    %v3555 = vld [vmem:[#allocation25 + $0x478] sm:$0xff]
    %v3556 = vld [vmem:[#allocation25 + $0x480] sm:$0xff]
    %v3557 = vld [vmem:[#allocation25 + $0x488] sm:$0xff]
    %v3558 = vld [vmem:[#allocation25 + $0x490] sm:$0xff]
    %v3559 = vld [vmem:[#allocation25 + $0x498] sm:$0xff]
    %v3560 = vld [vmem:[#allocation25 + $0x4a0] sm:$0xff]
    %v3561 = vld [vmem:[#allocation25 + $0x4a8] sm:$0xff]
    %v3562 = vld [vmem:[#allocation25 + $0x4b0] sm:$0xff]
    %v3563 = vld [vmem:[#allocation25 + $0x4b8] sm:$0xff]
    %v3564 = vld [vmem:[#allocation25 + $0x4c0] sm:$0xff]
    %v3565 = vld [vmem:[#allocation25 + $0x4c8] sm:$0xff]
    %v3566 = vld [vmem:[#allocation25 + $0x4d0] sm:$0xff]
    %v3567 = vld [vmem:[#allocation25 + $0x4d8] sm:$0xff]
    %v3568 = vld [vmem:[#allocation25 + $0x4e0] sm:$0xff]
    %v3569 = vld [vmem:[#allocation25 + $0x4e8] sm:$0xff]
    %v3570 = vld [vmem:[#allocation25 + $0x4f0] sm:$0xff]
    %v3571 = vld [vmem:[#allocation25 + $0x4f8] sm:$0xff]
    %v3572 = vld [vmem:[#allocation25 + $0x500] sm:$0xff]
    %v3573 = vld [vmem:[#allocation25 + $0x508] sm:$0xff]
    %v3574 = vld [vmem:[#allocation25 + $0x510] sm:$0xff]
    %v3575 = vld [vmem:[#allocation25 + $0x518] sm:$0xff]
    %v3576 = vld [vmem:[#allocation25 + $0x520] sm:$0xff]
    %v3577 = vld [vmem:[#allocation25 + $0x528] sm:$0xff]
    %v3578 = vld [vmem:[#allocation25 + $0x530] sm:$0xff]
    %v3579 = vld [vmem:[#allocation25 + $0x538] sm:$0xff]
    %v3580 = vld [vmem:[#allocation25 + $0x540] sm:$0xff]
    %v3581 = vld [vmem:[#allocation25 + $0x548] sm:$0xff]
    %v3582 = vld [vmem:[#allocation25 + $0x550] sm:$0xff]
    %v3583 = vld [vmem:[#allocation25 + $0x558] sm:$0xff]
    %v3584 = vld [vmem:[#allocation25 + $0x560] sm:$0xff]
    %v3585 = vld [vmem:[#allocation25 + $0x568] sm:$0xff]
    %v3586 = vld [vmem:[#allocation25 + $0x570] sm:$0xff]
    %v3587 = vld [vmem:[#allocation25 + $0x578] sm:$0xff]
    %v3588 = vld [vmem:[#allocation25 + $0x580] sm:$0xff]
    %v3589 = vld [vmem:[#allocation25 + $0x588] sm:$0xff]
    %v3590 = vld [vmem:[#allocation25 + $0x590] sm:$0xff]
    %v3591 = vld [vmem:[#allocation25 + $0x598] sm:$0xff]
    %v3592 = vld [vmem:[#allocation25 + $0x5a0] sm:$0xff]
    %v3593 = vld [vmem:[#allocation25 + $0x5a8] sm:$0xff]
    %v3594 = vld [vmem:[#allocation25 + $0x5b0] sm:$0xff]
    %v3595 = vld [vmem:[#allocation25 + $0x5b8] sm:$0xff]
    %v3596 = vld [vmem:[#allocation25 + $0x5c0] sm:$0xff]
    %v3597 = vld [vmem:[#allocation25 + $0x5c8] sm:$0xff]
    %v3598 = vld [vmem:[#allocation25 + $0x5d0] sm:$0xff]
    %v3599 = vld [vmem:[#allocation25 + $0x5d8] sm:$0xff]
    %v3600 = vld [vmem:[#allocation25 + $0x5e0] sm:$0xff]
    %v3601 = vld [vmem:[#allocation25 + $0x5e8] sm:$0xff]
    %v3602 = vld [vmem:[#allocation25 + $0x5f0] sm:$0xff]
    %v3603 = vld [vmem:[#allocation25 + $0x5f8] sm:$0xff]
    %v3604 = vld [vmem:[#allocation25 + $0x600] sm:$0xff]
    %v3605 = vld [vmem:[#allocation25 + $0x608] sm:$0xff]
    %v3606 = vld [vmem:[#allocation25 + $0x610] sm:$0xff]
    %v3607 = vld [vmem:[#allocation25 + $0x618] sm:$0xff]
    %v3608 = vld [vmem:[#allocation25 + $0x620] sm:$0xff]
    %v3609 = vld [vmem:[#allocation25 + $0x628] sm:$0xff]
    %v3610 = vld [vmem:[#allocation25 + $0x630] sm:$0xff]
    %v3611 = vld [vmem:[#allocation25 + $0x638] sm:$0xff]
    %v3612 = vld [vmem:[#allocation25 + $0x640] sm:$0xff]
    %v3613 = vld [vmem:[#allocation25 + $0x648] sm:$0xff]
    %v3614 = vld [vmem:[#allocation25 + $0x650] sm:$0xff]
    %v3615 = vld [vmem:[#allocation25 + $0x658] sm:$0xff]
    %v3616 = vld [vmem:[#allocation25 + $0x660] sm:$0xff]
    %v3617 = vld [vmem:[#allocation25 + $0x668] sm:$0xff]
    %v3618 = vld [vmem:[#allocation25 + $0x670] sm:$0xff]
    %v3619 = vld [vmem:[#allocation25 + $0x678] sm:$0xff]
    %v3620 = vld [vmem:[#allocation25 + $0x680] sm:$0xff]
    %v3621 = vld [vmem:[#allocation25 + $0x688] sm:$0xff]
    %v3622 = vld [vmem:[#allocation25 + $0x690] sm:$0xff]
    %v3623 = vld [vmem:[#allocation25 + $0x698] sm:$0xff]
    %v3624 = vld [vmem:[#allocation25 + $0x6a0] sm:$0xff]
    %v3625 = vld [vmem:[#allocation25 + $0x6a8] sm:$0xff]
    %v3626 = vld [vmem:[#allocation25 + $0x6b0] sm:$0xff]
    %v3627 = vld [vmem:[#allocation25 + $0x6b8] sm:$0xff]
    %v3628 = vld [vmem:[#allocation25 + $0x6c0] sm:$0xff]
    %v3629 = vld [vmem:[#allocation25 + $0x6c8] sm:$0xff]
    %v3630 = vld [vmem:[#allocation25 + $0x6d0] sm:$0xff]
    %v3631 = vld [vmem:[#allocation25 + $0x6d8] sm:$0xff]
    %v3632 = vld [vmem:[#allocation25 + $0x6e0] sm:$0xff]
    %v3633 = vld [vmem:[#allocation25 + $0x6e8] sm:$0xff]
    %v3634 = vld [vmem:[#allocation25 + $0x6f0] sm:$0xff]
    %v3635 = vld [vmem:[#allocation25 + $0x6f8] sm:$0xff]
    %v3636 = vld [vmem:[#allocation26] sm:$0x3]
    %v3638 = vlaneseq
    %v3639 = vshrl.u32 %v3638, 7
    %v3640 = vsub.s32 0, %v3639
    %v3641 = vrot.slane %v3636, %v3640
    %v3642 = vlaneseq
    %v3643 = vshrl.u32 %v3642, 7
    %v3644 = vsub.s32 1, %v3643
    %v3645 = vrot.slane %v3636, %v3644
    %3648 = vmatprep.subr.mxu0 %v3413
    %3649 = vmatpush1.msra.mxu0 %v3412
    %3650 = vmatprep.subr.mxu0 %v3415
    %3651 = vmatpush1.msra.mxu0 %v3414
    %3652 = vmatprep.subr.mxu0 %v3417
    %3653 = vmatpush1.msra.mxu0 %v3416
    %3654 = vmatprep.subr.mxu0 %v3419
    %3655 = vmatpush1.msra.mxu0 %v3418
    %3656 = vmatprep.subr.mxu0 %v3421
    %3657 = vmatpush1.msra.mxu0 %v3420
    %3658 = vmatprep.subr.mxu0 %v3423
    %3659 = vmatpush1.msra.mxu0 %v3422
    %3660 = vmatprep.subr.mxu0 %v3425
    %3661 = vmatpush1.msra.mxu0 %v3424
    %3662 = vmatprep.subr.mxu0 %v3427
    %3663 = vmatpush1.msra.mxu0 %v3426
    %3664 = vmatprep.subr.mxu0 %v3429
    %3665 = vmatpush1.msra.mxu0 %v3428
    %3666 = vmatprep.subr.mxu0 %v3431
    %3667 = vmatpush1.msra.mxu0 %v3430
    %3668 = vmatprep.subr.mxu0 %v3433
    %3669 = vmatpush1.msra.mxu0 %v3432
    %3670 = vmatprep.subr.mxu0 %v3435
    %3671 = vmatpush1.msra.mxu0 %v3434
    %3672 = vmatprep.subr.mxu0 %v3437
    %3673 = vmatpush1.msra.mxu0 %v3436
    %3674 = vmatprep.subr.mxu0 %v3439
    %3675 = vmatpush1.msra.mxu0 %v3438
    %3676 = vmatprep.subr.mxu0 %v3441
    %3677 = vmatpush1.msra.mxu0 %v3440
    %3678 = vmatprep.subr.mxu0 %v3443
    %3679 = vmatpush1.msra.mxu0 %v3442
    %3680 = vmatprep.subr.mxu0 %v3445
    %3681 = vmatpush1.msra.mxu0 %v3444
    %3682 = vmatprep.subr.mxu0 %v3447
    %3683 = vmatpush1.msra.mxu0 %v3446
    %3684 = vmatprep.subr.mxu0 %v3449
    %3685 = vmatpush1.msra.mxu0 %v3448
    %3686 = vmatprep.subr.mxu0 %v3451
    %3687 = vmatpush1.msra.mxu0 %v3450
    %3688 = vmatprep.subr.mxu0 %v3453
    %3689 = vmatpush1.msra.mxu0 %v3452
    %3690 = vmatprep.subr.mxu0 %v3455
    %3691 = vmatpush1.msra.mxu0 %v3454
    %3692 = vmatprep.subr.mxu0 %v3457
    %3693 = vmatpush1.msra.mxu0 %v3456
    %3694 = vmatprep.subr.mxu0 %v3459
    %3695 = vmatpush1.msra.mxu0 %v3458
    %3696 = vmatprep.subr.mxu0 %v3461
    %3697 = vmatpush1.msra.mxu0 %v3460
    %3698 = vmatprep.subr.mxu0 %v3463
    %3699 = vmatpush1.msra.mxu0 %v3462
    %3700 = vmatprep.subr.mxu0 %v3465
    %3701 = vmatpush1.msra.mxu0 %v3464
    %3702 = vmatprep.subr.mxu0 %v3467
    %3703 = vmatpush1.msra.mxu0 %v3466
    %3704 = vmatprep.subr.mxu0 %v3469
    %3705 = vmatpush1.msra.mxu0 %v3468
    %3706 = vmatprep.subr.mxu0 %v3471
    %3707 = vmatpush1.msra.mxu0 %v3470
    %3708 = vmatprep.subr.mxu0 %v3473
    %3709 = vmatpush1.msra.mxu0 %v3472
    %3710 = vmatprep.subr.mxu0 %v3475
    %3711 = vmatpush1.msra.mxu0 %v3474
    %3712 = vmatprep.mubr.f32.mxu0 %v3385
    %3713 = vmatmul.mubr.f32.gmra.mrb[0].mxu0 %v3384
    %v3714 = vpop.f32.mrb[0].mxu0
    %v3715 = vadd.f32 %v3641, %v3714
    %v3716 = vpop.f32.mrb[0].mxu0
    %v3717 = vadd.f32 %v3645, %v3716
    %3718 = vmatprep.mubr.f32.mxu0 %v3406
    %3719 = vmatmul.mubr.f32.gmra.mrb[0].mxu0 %v3405
    %v3720 = vpop.f32.mrb[0].mxu0
    %v3721 = vadd.f32 %v3641, %v3720
    %v3722 = vpop.f32.mrb[0].mxu0
    %v3723 = vadd.f32 %v3645, %v3722
    %3724 = vdwg.mxu0
    %3725 = vmatprep.subr.mxu0 %v3477
    %3726 = vmatpush1.msra.mxu0 %v3476
    %3727 = vmatprep.subr.mxu0 %v3479
    %3728 = vmatpush1.msra.mxu0 %v3478
    %3729 = vmatprep.subr.mxu0 %v3481
    %3730 = vmatpush1.msra.mxu0 %v3480
    %3731 = vmatprep.subr.mxu0 %v3483
    %3732 = vmatpush1.msra.mxu0 %v3482
    %3733 = vmatprep.subr.mxu0 %v3485
    %3734 = vmatpush1.msra.mxu0 %v3484
    %3735 = vmatprep.subr.mxu0 %v3487
    %3736 = vmatpush1.msra.mxu0 %v3486
    %3737 = vmatprep.subr.mxu0 %v3489
    %3738 = vmatpush1.msra.mxu0 %v3488
    %3739 = vmatprep.subr.mxu0 %v3491
    %3740 = vmatpush1.msra.mxu0 %v3490
    %3741 = vmatprep.subr.mxu0 %v3493
    %3742 = vmatpush1.msra.mxu0 %v3492
    %3743 = vmatprep.subr.mxu0 %v3495
    %3744 = vmatpush1.msra.mxu0 %v3494
    %3745 = vmatprep.subr.mxu0 %v3497
    %3746 = vmatpush1.msra.mxu0 %v3496
    %3747 = vmatprep.subr.mxu0 %v3499
    %3748 = vmatpush1.msra.mxu0 %v3498
    %3749 = vmatprep.subr.mxu0 %v3501
    %3750 = vmatpush1.msra.mxu0 %v3500
    %3751 = vmatprep.subr.mxu0 %v3503
    %3752 = vmatpush1.msra.mxu0 %v3502
    %3753 = vmatprep.subr.mxu0 %v3505
    %3754 = vmatpush1.msra.mxu0 %v3504
    %3755 = vmatprep.subr.mxu0 %v3507
    %3756 = vmatpush1.msra.mxu0 %v3506
    %3757 = vmatprep.subr.mxu0 %v3509
    %3758 = vmatpush1.msra.mxu0 %v3508
    %3759 = vmatprep.subr.mxu0 %v3511
    %3760 = vmatpush1.msra.mxu0 %v3510
    %3761 = vmatprep.subr.mxu0 %v3513
    %3762 = vmatpush1.msra.mxu0 %v3512
    %3763 = vmatprep.subr.mxu0 %v3515
    %3764 = vmatpush1.msra.mxu0 %v3514
    %3765 = vmatprep.subr.mxu0 %v3517
    %3766 = vmatpush1.msra.mxu0 %v3516
    %3767 = vmatprep.subr.mxu0 %v3519
    %3768 = vmatpush1.msra.mxu0 %v3518
    %3769 = vmatprep.subr.mxu0 %v3521
    %3770 = vmatpush1.msra.mxu0 %v3520
    %3771 = vmatprep.subr.mxu0 %v3523
    %3772 = vmatpush1.msra.mxu0 %v3522
    %3773 = vmatprep.subr.mxu0 %v3525
    %3774 = vmatpush1.msra.mxu0 %v3524
    %3775 = vmatprep.subr.mxu0 %v3527
    %3776 = vmatpush1.msra.mxu0 %v3526
    %3777 = vmatprep.subr.mxu0 %v3529
    %3778 = vmatpush1.msra.mxu0 %v3528
    %3779 = vmatprep.subr.mxu0 %v3531
    %3780 = vmatpush1.msra.mxu0 %v3530
    %3781 = vmatprep.subr.mxu0 %v3533
    %3782 = vmatpush1.msra.mxu0 %v3532
    %3783 = vmatprep.subr.mxu0 %v3535
    %3784 = vmatpush1.msra.mxu0 %v3534
    %3785 = vmatprep.subr.mxu0 %v3537
    %3786 = vmatpush1.msra.mxu0 %v3536
    %3787 = vmatprep.subr.mxu0 %v3539
    %3788 = vmatpush1.msra.mxu0 %v3538
    %3789 = vmatprep.mubr.f32.mxu0 %v3387
    %3790 = vmatmul.mubr.f32.gmra.mrb[0].mxu0 %v3386
    %v3791 = vpop.f32.mrb[0].mxu0
    %v3792 = vadd.f32 %v3715, %v3791
    %v3793 = vpop.f32.mrb[0].mxu0
    %v3794 = vadd.f32 %v3717, %v3793
    %3795 = vmatprep.mubr.f32.mxu0 %v3408
    %3796 = vmatmul.mubr.f32.gmra.mrb[0].mxu0 %v3407
    %v3797 = vpop.f32.mrb[0].mxu0
    %v3798 = vadd.f32 %v3721, %v3797
    %v3799 = vpop.f32.mrb[0].mxu0
    %v3800 = vadd.f32 %v3723, %v3799
    %3801 = vdwg.mxu0
    %3802 = vmatprep.subr.mxu0 %v3541
    %3803 = vmatpush1.msra.mxu0 %v3540
    %3804 = vmatprep.subr.mxu0 %v3543
    %3805 = vmatpush1.msra.mxu0 %v3542
    %3806 = vmatprep.subr.mxu0 %v3545
    %3807 = vmatpush1.msra.mxu0 %v3544
    %3808 = vmatprep.subr.mxu0 %v3547
    %3809 = vmatpush1.msra.mxu0 %v3546
    %3810 = vmatprep.subr.mxu0 %v3549
    %3811 = vmatpush1.msra.mxu0 %v3548
    %3812 = vmatprep.subr.mxu0 %v3551
    %3813 = vmatpush1.msra.mxu0 %v3550
    %3814 = vmatprep.subr.mxu0 %v3553
    %3815 = vmatpush1.msra.mxu0 %v3552
    %3816 = vmatprep.subr.mxu0 %v3555
    %3817 = vmatpush1.msra.mxu0 %v3554
    %3818 = vmatprep.subr.mxu0 %v3557
    %3819 = vmatpush1.msra.mxu0 %v3556
    %3820 = vmatprep.subr.mxu0 %v3559
    %3821 = vmatpush1.msra.mxu0 %v3558
    %3822 = vmatprep.subr.mxu0 %v3561
    %3823 = vmatpush1.msra.mxu0 %v3560
    %3824 = vmatprep.subr.mxu0 %v3563
    %3825 = vmatpush1.msra.mxu0 %v3562
    %3826 = vmatprep.subr.mxu0 %v3565
    %3827 = vmatpush1.msra.mxu0 %v3564
    %3828 = vmatprep.subr.mxu0 %v3567
    %3829 = vmatpush1.msra.mxu0 %v3566
    %3830 = vmatprep.subr.mxu0 %v3569
    %3831 = vmatpush1.msra.mxu0 %v3568
    %3832 = vmatprep.subr.mxu0 %v3571
    %3833 = vmatpush1.msra.mxu0 %v3570
    %3834 = vmatprep.subr.mxu0 %v3573
    %3835 = vmatpush1.msra.mxu0 %v3572
    %3836 = vmatprep.subr.mxu0 %v3575
    %3837 = vmatpush1.msra.mxu0 %v3574
    %3838 = vmatprep.subr.mxu0 %v3577
    %3839 = vmatpush1.msra.mxu0 %v3576
    %3840 = vmatprep.subr.mxu0 %v3579
    %3841 = vmatpush1.msra.mxu0 %v3578
    %3842 = vmatprep.subr.mxu0 %v3581
    %3843 = vmatpush1.msra.mxu0 %v3580
    %3844 = vmatprep.subr.mxu0 %v3583
    %3845 = vmatpush1.msra.mxu0 %v3582
    %3846 = vmatprep.subr.mxu0 %v3585
    %3847 = vmatpush1.msra.mxu0 %v3584
    %3848 = vmatprep.subr.mxu0 %v3587
    %3849 = vmatpush1.msra.mxu0 %v3586
    %3850 = vmatprep.subr.mxu0 %v3589
    %3851 = vmatpush1.msra.mxu0 %v3588
    %3852 = vmatprep.subr.mxu0 %v3591
    %3853 = vmatpush1.msra.mxu0 %v3590
    %3854 = vmatprep.subr.mxu0 %v3593
    %3855 = vmatpush1.msra.mxu0 %v3592
    %3856 = vmatprep.subr.mxu0 %v3595
    %3857 = vmatpush1.msra.mxu0 %v3594
    %3858 = vmatprep.subr.mxu0 %v3597
    %3859 = vmatpush1.msra.mxu0 %v3596
    %3860 = vmatprep.subr.mxu0 %v3599
    %3861 = vmatpush1.msra.mxu0 %v3598
    %3862 = vmatprep.subr.mxu0 %v3601
    %3863 = vmatpush1.msra.mxu0 %v3600
    %3864 = vmatprep.subr.mxu0 %v3603
    %3865 = vmatpush1.msra.mxu0 %v3602
    %3866 = vmatprep.mubr.f32.mxu0 %v3389
    %3867 = vmatmul.mubr.f32.gmra.mrb[0].mxu0 %v3388
    %v3868 = vpop.f32.mrb[0].mxu0
    %v3869 = vadd.f32 %v3792, %v3868
    %v3870 = vpop.f32.mrb[0].mxu0
    %v3871 = vadd.f32 %v3794, %v3870
    %3872 = vmatprep.mubr.f32.mxu0 %v3410
    %3873 = vmatmul.mubr.f32.gmra.mrb[0].mxu0 %v3409
    %v3874 = vpop.f32.mrb[0].mxu0
    %v3875 = vadd.f32 %v3798, %v3874
    %v3876 = vpop.f32.mrb[0].mxu0
    %v3877 = vadd.f32 %v3800, %v3876
    %3878 = vdwg.mxu0
    %3879 = vmatprep.subr.mxu0 %v3605
    %3880 = vmatpush1.msra.mxu0 %v3604
    %3881 = vmatprep.subr.mxu0 %v3607
    %3882 = vmatpush1.msra.mxu0 %v3606
    %3883 = vmatprep.subr.mxu0 %v3609
    %3884 = vmatpush1.msra.mxu0 %v3608
    %3885 = vmatprep.subr.mxu0 %v3611
    %3886 = vmatpush1.msra.mxu0 %v3610
    %3887 = vmatprep.subr.mxu0 %v3613
    %3888 = vmatpush1.msra.mxu0 %v3612
    %3889 = vmatprep.subr.mxu0 %v3615
    %3890 = vmatpush1.msra.mxu0 %v3614
    %3891 = vmatprep.subr.mxu0 %v3617
    %3892 = vmatpush1.msra.mxu0 %v3616
    %3893 = vmatprep.subr.mxu0 %v3619
    %3894 = vmatpush1.msra.mxu0 %v3618
    %3895 = vmatprep.subr.mxu0 %v3621
    %3896 = vmatpush1.msra.mxu0 %v3620
    %3897 = vmatprep.subr.mxu0 %v3623
    %3898 = vmatpush1.msra.mxu0 %v3622
    %3899 = vmatprep.subr.mxu0 %v3625
    %3900 = vmatpush1.msra.mxu0 %v3624
    %3901 = vmatprep.subr.mxu0 %v3627
    %3902 = vmatpush1.msra.mxu0 %v3626
    %3903 = vmatprep.subr.mxu0 %v3629
    %3904 = vmatpush1.msra.mxu0 %v3628
    %3905 = vmatprep.subr.mxu0 %v3631
    %3906 = vmatpush1.msra.mxu0 %v3630
    %3907 = vmatprep.subr.mxu0 %v3633
    %3908 = vmatpush1.msra.mxu0 %v3632
    %3909 = vmatprep.subr.mxu0 %v3635
    %3910 = vmatpush1.msra.mxu0 %v3634
    %3911 = vmatprep.subr.mxu0 0.0
    %3912 = vmatpush1.msra.mxu0 0.0
    %3913 = vmatprep.subr.mxu0 0.0
    %3914 = vmatpush1.msra.mxu0 0.0
    %3915 = vmatprep.subr.mxu0 0.0
    %3916 = vmatpush1.msra.mxu0 0.0
    %3917 = vmatprep.subr.mxu0 0.0
    %3918 = vmatpush1.msra.mxu0 0.0
    %3919 = vmatprep.subr.mxu0 0.0
    %3920 = vmatpush1.msra.mxu0 0.0
    %3921 = vmatprep.subr.mxu0 0.0
    %3922 = vmatpush1.msra.mxu0 0.0
    %3923 = vmatprep.subr.mxu0 0.0
    %3924 = vmatpush1.msra.mxu0 0.0
    %3925 = vmatprep.subr.mxu0 0.0
    %3926 = vmatpush1.msra.mxu0 0.0
    %3927 = vmatprep.subr.mxu0 0.0
    %3928 = vmatpush1.msra.mxu0 0.0
    %3929 = vmatprep.subr.mxu0 0.0
    %3930 = vmatpush1.msra.mxu0 0.0
    %3931 = vmatprep.subr.mxu0 0.0
    %3932 = vmatpush1.msra.mxu0 0.0
    %3933 = vmatprep.subr.mxu0 0.0
    %3934 = vmatpush1.msra.mxu0 0.0
    %3935 = vmatprep.subr.mxu0 0.0
    %3936 = vmatpush1.msra.mxu0 0.0
    %3937 = vmatprep.subr.mxu0 0.0
    %3938 = vmatpush1.msra.mxu0 0.0
    %3939 = vmatprep.subr.mxu0 0.0
    %3940 = vmatpush1.msra.mxu0 0.0
    %3941 = vmatprep.subr.mxu0 0.0
    %3942 = vmatpush1.msra.mxu0 0.0
    %3943 = vmatprep.mubr.f32.mxu0 0.0
    %3944 = vmatmul.mubr.f32.gmra.mrb[0].mxu0 %v3390
    %v3945 = vpop.f32.mrb[0].mxu0
    %v3946 = vadd.f32 %v3869, %v3945
    %v3947 = vpop.f32.mrb[0].mxu0
    %v3948 = vadd.f32 %v3871, %v3947
    %3949 = vmatprep.mubr.f32.mxu0 0.0
    %3950 = vmatmul.mubr.f32.gmra.mrb[0].mxu0 %v3411
    %v3951 = vpop.f32.mrb[0].mxu0
    %v3952 = vadd.f32 %v3875, %v3951
    %v3953 = vpop.f32.mrb[0].mxu0
    %v3954 = vadd.f32 %v3877, %v3953
    %3955 = vdwg.mxu0
    %v3956 = vsub.f32 %v3946, %v382
    %v3957 = vsub.f32 %v3948, %v383
    %v3958 = vsub.f32 %v3952, %v384
    %v3959 = vsub.f32 %v3954, %v385
    %v3960 = vmul.f32 %v3956, %v3956
    %v3961 = vmul.f32 %v3957, %v3957
    %v3962 = vmul.f32 %v3958, %v3958
    %v3963 = vmul.f32 %v3959, %v3959
    %3965 = vset.pattern.permute.xlu0 0
    %3966 = vperm.xlu0 %3965, %v285
    %v3967 = vpop.permute.xlu0 %3966
    %v3969 = vmul.f32 %v3967, %v3960
    %v3970 = vmul.f32 %v3967, %v3961
    %v3971 = vmul.f32 %v3967, %v3962
    %v3972 = vmul.f32 %v3967, %v3963
    %v3973 = vadd.f32 %v3969, %v3970
    %v3974 = vadd.f32 %v3973, %v3971
    %v3975 = vadd.f32 %v3974, %v3972
    %3976 = vadd.xlane.f32.xlu0 %v3975
    %v3977 = vpop.xlane.xlu0 %3976
    %v3978 = vrot.slane %v3977, 4
    %v3979 = vadd.f32 %v3977, %v3978
    %v3980 = vrot.slane %v3979, 2
    %v3981 = vadd.f32 %v3979, %v3980
    %v3982 = vrot.slane %v3981, 1
    %v3983 = vadd.f32 %v3981, %v3982
    %s3984 = vtos %v3983
    %s3985 = smul.f32 %s3984, 0.001953125
    %v3986 = vstv %s3985
    %vm3987 = vcmask 0
    %3988 = vst.msk [vmem:[#allocation29] sm:$0x1] %vm3987, %v3986
    %v3991 = vrot.slane %v3946, 7
    %v3992 = vrot.slane %v3948, 7
    %v3997 = vrot.slane %v3952, 6
    %v3998 = vrot.slane %v3954, 6
    %vm4001 = vcmask 1040384
    %v4002 = vsel %vm4001, %v3991, %v3997
    %v4003 = vsel %vm4001, %v3992, %v3998
    %v4006 = vcombine.low %v4002, %v4003
    %v4008 = vunpack.c.l.s4 1983009808
    %v4009 = vunpack.c.0.s8 %v4008
    %v4010 = vlaneseq
    %v4011 = vshrl.u32 %v4010, 7
    %v4012 = vsub.s32 %v4009, %v4011
    %v4013 = vrot.slane %v4006, %v4012
    %4015 = vst [vmem:[#allocation28] sm:$0xf] %v4013
    // Predicated region
    $region130: #{tpu_custom_call.1} parent=1 // pred_check
      _
    $region131: #{tpu_custom_call.1} parent=1 // pred_check_branch
      %4017 = sbr.rel (0) target = $region133
    $region132: #{tpu_custom_call.1} parent=1 // pred_region
      %s4019 = ssub.s32 64, 64
      %4020 = vsyncadd [#allocation4], %s4019
      %s4022 = sshll.u32 [#allocation28], 4
      %s4023 = int_to_ptr.vmem [resolvable:$true] %s4022
      %4025 = dma.vmem_to_hbm [thread:$0]  %s4023, 64, %s16, [#allocation4]
    $region133: #{tpu_custom_call.1} parent=1 // pred_fallthru
      _
    // Predicated region
    $region134: #{tpu_custom_call.1} parent=1 // pred_check
      _
    $region135: #{tpu_custom_call.1} parent=1 // pred_check_branch
      %4027 = sbr.rel (0) target = $region137
    $region136: #{tpu_custom_call.1} parent=1 // pred_region
      %s4029 = ssub.s32 16, 16
      %4030 = vsyncadd [#allocation30], %s4029
      %s4032 = sshll.u32 [#allocation29], 4
      %s4033 = int_to_ptr.vmem [resolvable:$true] %s4032
      %4035 = dma.vmem_to_hbm [thread:$0]  %s4033, 16, %s17, [#allocation30]
    $region137: #{tpu_custom_call.1} parent=1 // pred_fallthru
      _
    // Predicated region
    $region138: #{tpu_custom_call.1} parent=1 // pred_check
      _
    $region139: #{tpu_custom_call.1} parent=1 // pred_check_branch
      %4037 = sbr.rel (0) target = $region141
    $region140: #{tpu_custom_call.1} parent=1 // pred_region
      %4038 = dma.done [#allocation4], 64
    $region141: #{tpu_custom_call.1} parent=1 // pred_fallthru
      _
    // Predicated region
    $region142: #{tpu_custom_call.1} parent=1 // pred_check
      _
    $region143: #{tpu_custom_call.1} parent=1 // pred_check_branch
      %4040 = sbr.rel (0) target = $region145
    $region144: #{tpu_custom_call.1} parent=1 // pred_region
      %4041 = dma.done [#allocation30], 16
    $region145: #{tpu_custom_call.1} parent=1 // pred_fallthru
      _
    %4042 = vsyncpa [#allocation3], 1
    %4043 = vsyncpa [#allocation6], 1
    %4044 = vsyncpa [#allocation9], 1
    %4045 = vsyncpa [#allocation12], 1
    %4046 = vsyncpa [#allocation15], 1
    %4047 = vsyncpa [#allocation18], 1
    %4048 = vsyncpa [#allocation21], 1
    %4049 = vsyncpa [#allocation24], 1
    %4050 = vsyncpa [#allocation27], 1
    %4051 = vsyncpa [#allocation4], 1
    %4052 = vsyncpa [#allocation30], 1

</llo_original>
